<compile_context>
chip_gen: v5e
topology: v5e:2x2
jax: 0.10.0
libtpu: 0.0.40
codegen_flags: <defaults>
</compile_context>

<pallas_src>
import jax
import jax.numpy as jnp
from jax.experimental import pallas as pl
from jax.experimental.pallas import tpu as pltpu


def _pick_tile_c(C, HW, itemsize, vmem_budget_bytes=8 << 20):
    """Largest channel tile that divides C, satisfies the (8,128) rule, and
    keeps one (double-buffered) input block under the VMEM budget."""
    max_tile = max(8, vmem_budget_bytes // (HW * itemsize * 2))
    if C <= max_tile:
        return C                      # block dim == full dim is always legal
    start = int(max_tile) - (int(max_tile) % 8)
    for t in range(start, 7, -8):     # multiples of 8 only
        if C % t == 0:
            return t
    return C                          # fallback: whole C in one block


def spatial_attention_pallas(x, w, kernel_size=7):
    """x: [N, C, H, W], w: [1, 2, k, k] f32 -> [N, 1, H, W] sigmoid mask."""
    N, C, H, W = x.shape
    k = kernel_size
    p = (k - 1) // 2
    Hp, Wp = H + 2 * p, W + 2 * p
    HW = H * W

    tile_c = _pick_tile_c(C, HW, x.dtype.itemsize)
    n_ct = C // tile_c
    inv_c = 1.0 / C

    # Free layout changes in the wrapper: lane-dense input, flat SMEM weights.
    xf = x.reshape(N, C, HW)
    wf = w.reshape(-1).astype(jnp.float32)   # (2*k*k,) : [avg taps | max taps]

    def kernel(x_ref, w_ref, o_ref, sum_ref, max_ref, pad_a_ref, pad_m_ref):
        c = pl.program_id(1)

        # ---- streaming channel reduction (dominant, memory-bound work) ----
        xb = x_ref[0].astype(jnp.float32)                 # (tile_c, HW)
        psum = jnp.sum(xb, axis=0, keepdims=True)         # (1, HW)
        pmax = jnp.max(xb, axis=0, keepdims=True)         # (1, HW)

        @pl.when(c == 0)
        def _():
            sum_ref[...] = psum
            max_ref[...] = pmax

        @pl.when(c > 0)
        def _():
            sum_ref[...] = sum_ref[...] + psum
            max_ref[...] = jnp.maximum(max_ref[...], pmax)

        # ---- finalize: pad reduced maps, 7x7x2 conv, sigmoid (once per b) --
        @pl.when(c == pl.num_programs(1) - 1)
        def _():
            avg2 = sum_ref[...] * inv_c                   # (1, HW)
            mx2 = max_ref[...]                            # (1, HW)

            # Zero-padded 2-D maps built in tiny VMEM scratch: only the
            # reduced avg/max maps are padded, never the full NCHW tensor.
            pad_a_ref[...] = jnp.zeros_like(pad_a_ref)
            pad_m_ref[...] = jnp.zeros_like(pad_m_ref)
            for i in range(H):                            # flat -> 2-D rows
                lo = i * W
                pad_a_ref[p + i:p + i + 1, p:p + W] = avg2[:, lo:lo + W]
                pad_m_ref[p + i:p + i + 1, p:p + W] = mx2[:, lo:lo + W]

            # Load each padded map once; all conv taps are register slices.
            pa = pad_a_ref[...]                           # (Hp, Wp)
            pm = pad_m_ref[...]                           # (Hp, Wp)

            # 7x7x2 MACs: lane (dw) shift hoisted out of the inner loop; the
            # inner loop only takes sublane-offset slices. 4 independent
            # accumulators (avg/max x dh parity) break the serial add chain.
            accs = [jnp.zeros((H, W), jnp.float32) for _ in range(4)]
            for dw in range(k):
                sa = pa[:, dw:dw + W]                     # (Hp, W) lane shift
                sm = pm[:, dw:dw + W]
                for dh in range(k):
                    j = 2 * (dh & 1)
                    wa = w_ref[dh * k + dw]               # SMEM scalar (avg tap)
                    wm = w_ref[k * k + dh * k + dw]       # SMEM scalar (max tap)
                    accs[j] = accs[j] + sa[dh:dh + H, :] * wa
                    accs[j + 1] = accs[j + 1] + sm[dh:dh + H, :] * wm
            conv = (accs[0] + accs[1]) + (accs[2] + accs[3])
            o_ref[0, 0] = jax.nn.sigmoid(conv).astype(o_ref.dtype)

    return pl.pallas_call(
        kernel,
        out_shape=jax.ShapeDtypeStruct((N, 1, H, W), x.dtype),
        grid=(N, n_ct),
        in_specs=[
            pl.BlockSpec((1, tile_c, HW), lambda b, c: (b, c, 0)),
            pl.BlockSpec(memory_space=pltpu.MemorySpace.SMEM),
        ],
        out_specs=pl.BlockSpec((1, 1, H, W), lambda b, c: (b, 0, 0, 0)),
        scratch_shapes=[
            pltpu.VMEM((1, HW), jnp.float32),      # running channel sum
            pltpu.VMEM((1, HW), jnp.float32),      # running channel max
            pltpu.VMEM((Hp, Wp), jnp.float32),     # zero-padded avg map
            pltpu.VMEM((Hp, Wp), jnp.float32),     # zero-padded max map
        ],
        compiler_params=pltpu.CompilerParams(
            dimension_semantics=("parallel", "arbitrary")),
    )(xf, wf)


def spatial_attention_ref(x, w, kernel_size=7):
    """Pure-JAX reference matching the PyTorch forward."""
    p = (kernel_size - 1) // 2
    avg = jnp.mean(x, axis=1, keepdims=True)
    mx = jnp.max(x, axis=1, keepdims=True)
    cat = jnp.concatenate([avg, mx], axis=1)
    y = jax.lax.conv_general_dilated(
        cat, w, window_strides=(1, 1), padding=[(p, p), (p, p)],
        dimension_numbers=("NCHW", "OIHW", "NCHW"))
    return jax.nn.sigmoid(y)


if __name__ == "__main__":
    key = jax.random.PRNGKey(0)
    kx, kw = jax.random.split(key)

    N, C, H, W = 2, 4, 16, 16
    kernel_size = 7

    x = jax.random.normal(kx, (N, C, H, W), dtype=jnp.float32)

    # Deterministic Conv2d(2, 1, 7, bias=False) weight init (kaiming-uniform
    # style bound = 1/sqrt(fan_in), fan_in = 2 * 7 * 7).
    fan_in = 2 * kernel_size * kernel_size
    bound = 1.0 / jnp.sqrt(jnp.float32(fan_in))
    w = jax.random.uniform(kw, (1, 2, kernel_size, kernel_size),
                           dtype=jnp.float32, minval=-bound, maxval=bound)

    out = spatial_attention_pallas(x, w, kernel_size)
    out = jax.block_until_ready(out)

    ref = spatial_attention_ref(x, w, kernel_size)
    assert out.shape == (N, 1, H, W), out.shape
    assert jnp.allclose(out, ref, atol=1e-5, rtol=1e-5), \
        float(jnp.max(jnp.abs(out - ref)))

    print("KERNEL_OK")
</pallas_src>

<mosaic_0001>
module attributes {stable_mosaic.version = 11 : i64} {
  func.func @kernel(%arg0: i32, %arg1: i32, %arg2: memref<1x4x256xf32, #tpu.memory_space<vmem>>, %arg3: memref<98xf32, #tpu.memory_space<smem>>, %arg4: memref<1x1x16x16xf32, #tpu.memory_space<vmem>>, %arg5: memref<1x256xf32, #tpu.memory_space<vmem>>, %arg6: memref<1x256xf32, #tpu.memory_space<vmem>>, %arg7: memref<22x22xf32, #tpu.memory_space<vmem>>, %arg8: memref<22x22xf32, #tpu.memory_space<vmem>>) attributes {dimension_semantics = [#tpu.dimension_semantics<parallel>, #tpu.dimension_semantics<arbitrary>], iteration_bounds = array<i64: 2, 1>, scalar_prefetch = 0 : i64, scratch_operands = 4 : i64, tpu.core_type = #tpu.core_type<tc>, window_params = [{transform_indices = @transform_0, window_bounds = array<i64: 1, 4, 256>}, {transform_indices = @transform_1, window_bounds = array<i64: 98>}, {transform_indices = @transform_2, window_bounds = array<i64: 1, 1, 16, 16>}]} {
    %c0 = arith.constant 0 : index
    %c0_0 = arith.constant 0 : index
    %c0_1 = arith.constant 0 : index
    %0 = vector.load %arg2[%c0, %c0_0, %c0_1] : memref<1x4x256xf32, #tpu.memory_space<vmem>>, vector<1x4x256xf32>
    %1 = vector.shape_cast %0 : vector<1x4x256xf32> to vector<4x256xf32>
    %cst = arith.constant dense<0.000000e+00> : vector<256xf32>
    %2 = vector.multi_reduction <add>, %1, %cst [0] : vector<4x256xf32> to vector<256xf32>
    %3 = vector.shape_cast %2 : vector<256xf32> to vector<1x256xf32>
    %cst_2 = arith.constant dense<0xFF800000> : vector<256xf32>
    %4 = vector.multi_reduction <maximumf>, %1, %cst_2 [0] : vector<4x256xf32> to vector<256xf32>
    %5 = vector.shape_cast %4 : vector<256xf32> to vector<1x256xf32>
    %c0_i32 = arith.constant 0 : i32
    %6 = arith.cmpi eq, %arg1, %c0_i32 : i32
    %7 = arith.extui %6 : i1 to i32
    %c0_i32_3 = arith.constant 0 : i32
    %8 = arith.cmpi ne, %7, %c0_i32_3 : i32
    scf.if %8 {
      %c0_8 = arith.constant 0 : index
      %c0_9 = arith.constant 0 : index
      %15 = vector.load %arg5[%c0_8, %c0_9] : memref<1x256xf32, #tpu.memory_space<vmem>>, vector<1x256xf32>
      tpu.vector_store %arg5[%c0_8, %c0_9], %3 {strides = array<i32>} : memref<1x256xf32, #tpu.memory_space<vmem>>, vector<1x256xf32>,
      %c0_10 = arith.constant 0 : index
      %c0_11 = arith.constant 0 : index
      %16 = vector.load %arg6[%c0_10, %c0_11] : memref<1x256xf32, #tpu.memory_space<vmem>>, vector<1x256xf32>
      tpu.vector_store %arg6[%c0_10, %c0_11], %5 {strides = array<i32>} : memref<1x256xf32, #tpu.memory_space<vmem>>, vector<1x256xf32>,
    } else {
    }
    %c0_i32_4 = arith.constant 0 : i32
    %9 = arith.cmpi sgt, %arg1, %c0_i32_4 : i32
    %10 = arith.extui %9 : i1 to i32
    %c0_i32_5 = arith.constant 0 : i32
    %11 = arith.cmpi ne, %10, %c0_i32_5 : i32
    scf.if %11 {
      %c0_8 = arith.constant 0 : index
      %c0_9 = arith.constant 0 : index
      %15 = vector.load %arg5[%c0_8, %c0_9] : memref<1x256xf32, #tpu.memory_space<vmem>>, vector<1x256xf32>
      %16 = arith.addf %15, %3 : vector<1x256xf32>
      %c0_10 = arith.constant 0 : index
      %c0_11 = arith.constant 0 : index
      %17 = vector.load %arg5[%c0_10, %c0_11] : memref<1x256xf32, #tpu.memory_space<vmem>>, vector<1x256xf32>
      tpu.vector_store %arg5[%c0_10, %c0_11], %16 {strides = array<i32>} : memref<1x256xf32, #tpu.memory_space<vmem>>, vector<1x256xf32>,
      %c0_12 = arith.constant 0 : index
      %c0_13 = arith.constant 0 : index
      %18 = vector.load %arg6[%c0_12, %c0_13] : memref<1x256xf32, #tpu.memory_space<vmem>>, vector<1x256xf32>
      %19 = arith.maximumf %18, %5 : vector<1x256xf32>
      %c0_14 = arith.constant 0 : index
      %c0_15 = arith.constant 0 : index
      %20 = vector.load %arg6[%c0_14, %c0_15] : memref<1x256xf32, #tpu.memory_space<vmem>>, vector<1x256xf32>
      tpu.vector_store %arg6[%c0_14, %c0_15], %19 {strides = array<i32>} : memref<1x256xf32, #tpu.memory_space<vmem>>, vector<1x256xf32>,
    } else {
    }
    %c0_i32_6 = arith.constant 0 : i32
    %12 = arith.cmpi eq, %arg1, %c0_i32_6 : i32
    %13 = arith.extui %12 : i1 to i32
    %c0_i32_7 = arith.constant 0 : i32
    %14 = arith.cmpi ne, %13, %c0_i32_7 : i32
    scf.if %14 {
      %c0_8 = arith.constant 0 : index
      %c0_9 = arith.constant 0 : index
      %15 = vector.load %arg5[%c0_8, %c0_9] : memref<1x256xf32, #tpu.memory_space<vmem>>, vector<1x256xf32>
      %cst_10 = arith.constant 2.500000e-01 : f32
      %16 = vector.broadcast %cst_10 : f32 to vector<1x256xf32>
      %17 = arith.mulf %15, %16 : vector<1x256xf32>
      %c0_11 = arith.constant 0 : index
      %c0_12 = arith.constant 0 : index
      %18 = vector.load %arg6[%c0_11, %c0_12] : memref<1x256xf32, #tpu.memory_space<vmem>>, vector<1x256xf32>
      %cst_13 = arith.constant 0.000000e+00 : f32
      %19 = vector.broadcast %cst_13 : f32 to vector<22x22xf32>
      %c0_14 = arith.constant 0 : index
      %c0_15 = arith.constant 0 : index
      %20 = vector.load %arg7[%c0_14, %c0_15] : memref<22x22xf32, #tpu.memory_space<vmem>>, vector<22x22xf32>
      tpu.vector_store %arg7[%c0_14, %c0_15], %19 {strides = array<i32>} : memref<22x22xf32, #tpu.memory_space<vmem>>, vector<22x22xf32>,
      %cst_16 = arith.constant 0.000000e+00 : f32
      %21 = vector.broadcast %cst_16 : f32 to vector<22x22xf32>
      %c0_17 = arith.constant 0 : index
      %c0_18 = arith.constant 0 : index
      %22 = vector.load %arg8[%c0_17, %c0_18] : memref<22x22xf32, #tpu.memory_space<vmem>>, vector<22x22xf32>
      tpu.vector_store %arg8[%c0_17, %c0_18], %21 {strides = array<i32>} : memref<22x22xf32, #tpu.memory_space<vmem>>, vector<22x22xf32>,
      %23 = vector.extract_strided_slice %17 {offsets = [0, 0], sizes = [1, 16], strides = [1, 1]} : vector<1x256xf32> to vector<1x16xf32>
      %c3 = arith.constant 3 : index
      %c3_19 = arith.constant 3 : index
      %24 = vector.load %arg7[%c3, %c3_19] : memref<22x22xf32, #tpu.memory_space<vmem>>, vector<1x16xf32>
      tpu.vector_store %arg7[%c3, %c3_19], %23 {strides = array<i32>} : memref<22x22xf32, #tpu.memory_space<vmem>>, vector<1x16xf32>,
      %25 = vector.extract_strided_slice %18 {offsets = [0, 0], sizes = [1, 16], strides = [1, 1]} : vector<1x256xf32> to vector<1x16xf32>
      %c3_20 = arith.constant 3 : index
      %c3_21 = arith.constant 3 : index
      %26 = vector.load %arg8[%c3_20, %c3_21] : memref<22x22xf32, #tpu.memory_space<vmem>>, vector<1x16xf32>
      tpu.vector_store %arg8[%c3_20, %c3_21], %25 {strides = array<i32>} : memref<22x22xf32, #tpu.memory_space<vmem>>, vector<1x16xf32>,
      %27 = vector.extract_strided_slice %17 {offsets = [0, 16], sizes = [1, 16], strides = [1, 1]} : vector<1x256xf32> to vector<1x16xf32>
      %c4 = arith.constant 4 : index
      %c3_22 = arith.constant 3 : index
      %28 = vector.load %arg7[%c4, %c3_22] : memref<22x22xf32, #tpu.memory_space<vmem>>, vector<1x16xf32>
      tpu.vector_store %arg7[%c4, %c3_22], %27 {strides = array<i32>} : memref<22x22xf32, #tpu.memory_space<vmem>>, vector<1x16xf32>,
      %29 = vector.extract_strided_slice %18 {offsets = [0, 16], sizes = [1, 16], strides = [1, 1]} : vector<1x256xf32> to vector<1x16xf32>
      %c4_23 = arith.constant 4 : index
      %c3_24 = arith.constant 3 : index
      %30 = vector.load %arg8[%c4_23, %c3_24] : memref<22x22xf32, #tpu.memory_space<vmem>>, vector<1x16xf32>
      tpu.vector_store %arg8[%c4_23, %c3_24], %29 {strides = array<i32>} : memref<22x22xf32, #tpu.memory_space<vmem>>, vector<1x16xf32>,
      %31 = vector.extract_strided_slice %17 {offsets = [0, 32], sizes = [1, 16], strides = [1, 1]} : vector<1x256xf32> to vector<1x16xf32>
      %c5 = arith.constant 5 : index
      %c3_25 = arith.constant 3 : index
      %32 = vector.load %arg7[%c5, %c3_25] : memref<22x22xf32, #tpu.memory_space<vmem>>, vector<1x16xf32>
      tpu.vector_store %arg7[%c5, %c3_25], %31 {strides = array<i32>} : memref<22x22xf32, #tpu.memory_space<vmem>>, vector<1x16xf32>,
      %33 = vector.extract_strided_slice %18 {offsets = [0, 32], sizes = [1, 16], strides = [1, 1]} : vector<1x256xf32> to vector<1x16xf32>
      %c5_26 = arith.constant 5 : index
      %c3_27 = arith.constant 3 : index
      %34 = vector.load %arg8[%c5_26, %c3_27] : memref<22x22xf32, #tpu.memory_space<vmem>>, vector<1x16xf32>
      tpu.vector_store %arg8[%c5_26, %c3_27], %33 {strides = array<i32>} : memref<22x22xf32, #tpu.memory_space<vmem>>, vector<1x16xf32>,
      %35 = vector.extract_strided_slice %17 {offsets = [0, 48], sizes = [1, 16], strides = [1, 1]} : vector<1x256xf32> to vector<1x16xf32>
      %c6 = arith.constant 6 : index
      %c3_28 = arith.constant 3 : index
      %36 = vector.load %arg7[%c6, %c3_28] : memref<22x22xf32, #tpu.memory_space<vmem>>, vector<1x16xf32>
      tpu.vector_store %arg7[%c6, %c3_28], %35 {strides = array<i32>} : memref<22x22xf32, #tpu.memory_space<vmem>>, vector<1x16xf32>,
      %37 = vector.extract_strided_slice %18 {offsets = [0, 48], sizes = [1, 16], strides = [1, 1]} : vector<1x256xf32> to vector<1x16xf32>
      %c6_29 = arith.constant 6 : index
      %c3_30 = arith.constant 3 : index
      %38 = vector.load %arg8[%c6_29, %c3_30] : memref<22x22xf32, #tpu.memory_space<vmem>>, vector<1x16xf32>
      tpu.vector_store %arg8[%c6_29, %c3_30], %37 {strides = array<i32>} : memref<22x22xf32, #tpu.memory_space<vmem>>, vector<1x16xf32>,
      %39 = vector.extract_strided_slice %17 {offsets = [0, 64], sizes = [1, 16], strides = [1, 1]} : vector<1x256xf32> to vector<1x16xf32>
      %c7 = arith.constant 7 : index
      %c3_31 = arith.constant 3 : index
      %40 = vector.load %arg7[%c7, %c3_31] : memref<22x22xf32, #tpu.memory_space<vmem>>, vector<1x16xf32>
      tpu.vector_store %arg7[%c7, %c3_31], %39 {strides = array<i32>} : memref<22x22xf32, #tpu.memory_space<vmem>>, vector<1x16xf32>,
      %41 = vector.extract_strided_slice %18 {offsets = [0, 64], sizes = [1, 16], strides = [1, 1]} : vector<1x256xf32> to vector<1x16xf32>
      %c7_32 = arith.constant 7 : index
      %c3_33 = arith.constant 3 : index
      %42 = vector.load %arg8[%c7_32, %c3_33] : memref<22x22xf32, #tpu.memory_space<vmem>>, vector<1x16xf32>
      tpu.vector_store %arg8[%c7_32, %c3_33], %41 {strides = array<i32>} : memref<22x22xf32, #tpu.memory_space<vmem>>, vector<1x16xf32>,
      %43 = vector.extract_strided_slice %17 {offsets = [0, 80], sizes = [1, 16], strides = [1, 1]} : vector<1x256xf32> to vector<1x16xf32>
      %c8 = arith.constant 8 : index
      %c3_34 = arith.constant 3 : index
      %44 = vector.load %arg7[%c8, %c3_34] : memref<22x22xf32, #tpu.memory_space<vmem>>, vector<1x16xf32>
      tpu.vector_store %arg7[%c8, %c3_34], %43 {strides = array<i32>} : memref<22x22xf32, #tpu.memory_space<vmem>>, vector<1x16xf32>,
      %45 = vector.extract_strided_slice %18 {offsets = [0, 80], sizes = [1, 16], strides = [1, 1]} : vector<1x256xf32> to vector<1x16xf32>
      %c8_35 = arith.constant 8 : index
      %c3_36 = arith.constant 3 : index
      %46 = vector.load %arg8[%c8_35, %c3_36] : memref<22x22xf32, #tpu.memory_space<vmem>>, vector<1x16xf32>
      tpu.vector_store %arg8[%c8_35, %c3_36], %45 {strides = array<i32>} : memref<22x22xf32, #tpu.memory_space<vmem>>, vector<1x16xf32>,
      %47 = vector.extract_strided_slice %17 {offsets = [0, 96], sizes = [1, 16], strides = [1, 1]} : vector<1x256xf32> to vector<1x16xf32>
      %c9 = arith.constant 9 : index
      %c3_37 = arith.constant 3 : index
      %48 = vector.load %arg7[%c9, %c3_37] : memref<22x22xf32, #tpu.memory_space<vmem>>, vector<1x16xf32>
      tpu.vector_store %arg7[%c9, %c3_37], %47 {strides = array<i32>} : memref<22x22xf32, #tpu.memory_space<vmem>>, vector<1x16xf32>,
      %49 = vector.extract_strided_slice %18 {offsets = [0, 96], sizes = [1, 16], strides = [1, 1]} : vector<1x256xf32> to vector<1x16xf32>
      %c9_38 = arith.constant 9 : index
      %c3_39 = arith.constant 3 : index
      %50 = vector.load %arg8[%c9_38, %c3_39] : memref<22x22xf32, #tpu.memory_space<vmem>>, vector<1x16xf32>
      tpu.vector_store %arg8[%c9_38, %c3_39], %49 {strides = array<i32>} : memref<22x22xf32, #tpu.memory_space<vmem>>, vector<1x16xf32>,
      %51 = vector.extract_strided_slice %17 {offsets = [0, 112], sizes = [1, 16], strides = [1, 1]} : vector<1x256xf32> to vector<1x16xf32>
      %c10 = arith.constant 10 : index
      %c3_40 = arith.constant 3 : index
      %52 = vector.load %arg7[%c10, %c3_40] : memref<22x22xf32, #tpu.memory_space<vmem>>, vector<1x16xf32>
      tpu.vector_store %arg7[%c10, %c3_40], %51 {strides = array<i32>} : memref<22x22xf32, #tpu.memory_space<vmem>>, vector<1x16xf32>,
      %53 = vector.extract_strided_slice %18 {offsets = [0, 112], sizes = [1, 16], strides = [1, 1]} : vector<1x256xf32> to vector<1x16xf32>
      %c10_41 = arith.constant 10 : index
      %c3_42 = arith.constant 3 : index
      %54 = vector.load %arg8[%c10_41, %c3_42] : memref<22x22xf32, #tpu.memory_space<vmem>>, vector<1x16xf32>
      tpu.vector_store %arg8[%c10_41, %c3_42], %53 {strides = array<i32>} : memref<22x22xf32, #tpu.memory_space<vmem>>, vector<1x16xf32>,
      %55 = vector.extract_strided_slice %17 {offsets = [0, 128], sizes = [1, 16], strides = [1, 1]} : vector<1x256xf32> to vector<1x16xf32>
      %c11 = arith.constant 11 : index
      %c3_43 = arith.constant 3 : index
      %56 = vector.load %arg7[%c11, %c3_43] : memref<22x22xf32, #tpu.memory_space<vmem>>, vector<1x16xf32>
      tpu.vector_store %arg7[%c11, %c3_43], %55 {strides = array<i32>} : memref<22x22xf32, #tpu.memory_space<vmem>>, vector<1x16xf32>,
      %57 = vector.extract_strided_slice %18 {offsets = [0, 128], sizes = [1, 16], strides = [1, 1]} : vector<1x256xf32> to vector<1x16xf32>
      %c11_44 = arith.constant 11 : index
      %c3_45 = arith.constant 3 : index
      %58 = vector.load %arg8[%c11_44, %c3_45] : memref<22x22xf32, #tpu.memory_space<vmem>>, vector<1x16xf32>
      tpu.vector_store %arg8[%c11_44, %c3_45], %57 {strides = array<i32>} : memref<22x22xf32, #tpu.memory_space<vmem>>, vector<1x16xf32>,
      %59 = vector.extract_strided_slice %17 {offsets = [0, 144], sizes = [1, 16], strides = [1, 1]} : vector<1x256xf32> to vector<1x16xf32>
      %c12 = arith.constant 12 : index
      %c3_46 = arith.constant 3 : index
      %60 = vector.load %arg7[%c12, %c3_46] : memref<22x22xf32, #tpu.memory_space<vmem>>, vector<1x16xf32>
      tpu.vector_store %arg7[%c12, %c3_46], %59 {strides = array<i32>} : memref<22x22xf32, #tpu.memory_space<vmem>>, vector<1x16xf32>,
      %61 = vector.extract_strided_slice %18 {offsets = [0, 144], sizes = [1, 16], strides = [1, 1]} : vector<1x256xf32> to vector<1x16xf32>
      %c12_47 = arith.constant 12 : index
      %c3_48 = arith.constant 3 : index
      %62 = vector.load %arg8[%c12_47, %c3_48] : memref<22x22xf32, #tpu.memory_space<vmem>>, vector<1x16xf32>
      tpu.vector_store %arg8[%c12_47, %c3_48], %61 {strides = array<i32>} : memref<22x22xf32, #tpu.memory_space<vmem>>, vector<1x16xf32>,
      %63 = vector.extract_strided_slice %17 {offsets = [0, 160], sizes = [1, 16], strides = [1, 1]} : vector<1x256xf32> to vector<1x16xf32>
      %c13 = arith.constant 13 : index
      %c3_49 = arith.constant 3 : index
      %64 = vector.load %arg7[%c13, %c3_49] : memref<22x22xf32, #tpu.memory_space<vmem>>, vector<1x16xf32>
      tpu.vector_store %arg7[%c13, %c3_49], %63 {strides = array<i32>} : memref<22x22xf32, #tpu.memory_space<vmem>>, vector<1x16xf32>,
      %65 = vector.extract_strided_slice %18 {offsets = [0, 160], sizes = [1, 16], strides = [1, 1]} : vector<1x256xf32> to vector<1x16xf32>
      %c13_50 = arith.constant 13 : index
      %c3_51 = arith.constant 3 : index
      %66 = vector.load %arg8[%c13_50, %c3_51] : memref<22x22xf32, #tpu.memory_space<vmem>>, vector<1x16xf32>
      tpu.vector_store %arg8[%c13_50, %c3_51], %65 {strides = array<i32>} : memref<22x22xf32, #tpu.memory_space<vmem>>, vector<1x16xf32>,
      %67 = vector.extract_strided_slice %17 {offsets = [0, 176], sizes = [1, 16], strides = [1, 1]} : vector<1x256xf32> to vector<1x16xf32>
      %c14 = arith.constant 14 : index
      %c3_52 = arith.constant 3 : index
      %68 = vector.load %arg7[%c14, %c3_52] : memref<22x22xf32, #tpu.memory_space<vmem>>, vector<1x16xf32>
      tpu.vector_store %arg7[%c14, %c3_52], %67 {strides = array<i32>} : memref<22x22xf32, #tpu.memory_space<vmem>>, vector<1x16xf32>,
      %69 = vector.extract_strided_slice %18 {offsets = [0, 176], sizes = [1, 16], strides = [1, 1]} : vector<1x256xf32> to vector<1x16xf32>
      %c14_53 = arith.constant 14 : index
      %c3_54 = arith.constant 3 : index
      %70 = vector.load %arg8[%c14_53, %c3_54] : memref<22x22xf32, #tpu.memory_space<vmem>>, vector<1x16xf32>
      tpu.vector_store %arg8[%c14_53, %c3_54], %69 {strides = array<i32>} : memref<22x22xf32, #tpu.memory_space<vmem>>, vector<1x16xf32>,
      %71 = vector.extract_strided_slice %17 {offsets = [0, 192], sizes = [1, 16], strides = [1, 1]} : vector<1x256xf32> to vector<1x16xf32>
      %c15 = arith.constant 15 : index
      %c3_55 = arith.constant 3 : index
      %72 = vector.load %arg7[%c15, %c3_55] : memref<22x22xf32, #tpu.memory_space<vmem>>, vector<1x16xf32>
      tpu.vector_store %arg7[%c15, %c3_55], %71 {strides = array<i32>} : memref<22x22xf32, #tpu.memory_space<vmem>>, vector<1x16xf32>,
      %73 = vector.extract_strided_slice %18 {offsets = [0, 192], sizes = [1, 16], strides = [1, 1]} : vector<1x256xf32> to vector<1x16xf32>
      %c15_56 = arith.constant 15 : index
      %c3_57 = arith.constant 3 : index
      %74 = vector.load %arg8[%c15_56, %c3_57] : memref<22x22xf32, #tpu.memory_space<vmem>>, vector<1x16xf32>
      tpu.vector_store %arg8[%c15_56, %c3_57], %73 {strides = array<i32>} : memref<22x22xf32, #tpu.memory_space<vmem>>, vector<1x16xf32>,
      %75 = vector.extract_strided_slice %17 {offsets = [0, 208], sizes = [1, 16], strides = [1, 1]} : vector<1x256xf32> to vector<1x16xf32>
      %c16 = arith.constant 16 : index
      %c3_58 = arith.constant 3 : index
      %76 = vector.load %arg7[%c16, %c3_58] : memref<22x22xf32, #tpu.memory_space<vmem>>, vector<1x16xf32>
      tpu.vector_store %arg7[%c16, %c3_58], %75 {strides = array<i32>} : memref<22x22xf32, #tpu.memory_space<vmem>>, vector<1x16xf32>,
      %77 = vector.extract_strided_slice %18 {offsets = [0, 208], sizes = [1, 16], strides = [1, 1]} : vector<1x256xf32> to vector<1x16xf32>
      %c16_59 = arith.constant 16 : index
      %c3_60 = arith.constant 3 : index
      %78 = vector.load %arg8[%c16_59, %c3_60] : memref<22x22xf32, #tpu.memory_space<vmem>>, vector<1x16xf32>
      tpu.vector_store %arg8[%c16_59, %c3_60], %77 {strides = array<i32>} : memref<22x22xf32, #tpu.memory_space<vmem>>, vector<1x16xf32>,
      %79 = vector.extract_strided_slice %17 {offsets = [0, 224], sizes = [1, 16], strides = [1, 1]} : vector<1x256xf32> to vector<1x16xf32>
      %c17 = arith.constant 17 : index
      %c3_61 = arith.constant 3 : index
      %80 = vector.load %arg7[%c17, %c3_61] : memref<22x22xf32, #tpu.memory_space<vmem>>, vector<1x16xf32>
      tpu.vector_store %arg7[%c17, %c3_61], %79 {strides = array<i32>} : memref<22x22xf32, #tpu.memory_space<vmem>>, vector<1x16xf32>,
      %81 = vector.extract_strided_slice %18 {offsets = [0, 224], sizes = [1, 16], strides = [1, 1]} : vector<1x256xf32> to vector<1x16xf32>
      %c17_62 = arith.constant 17 : index
      %c3_63 = arith.constant 3 : index
      %82 = vector.load %arg8[%c17_62, %c3_63] : memref<22x22xf32, #tpu.memory_space<vmem>>, vector<1x16xf32>
      tpu.vector_store %arg8[%c17_62, %c3_63], %81 {strides = array<i32>} : memref<22x22xf32, #tpu.memory_space<vmem>>, vector<1x16xf32>,
      %83 = vector.extract_strided_slice %17 {offsets = [0, 240], sizes = [1, 16], strides = [1, 1]} : vector<1x256xf32> to vector<1x16xf32>
      %c18 = arith.constant 18 : index
      %c3_64 = arith.constant 3 : index
      %84 = vector.load %arg7[%c18, %c3_64] : memref<22x22xf32, #tpu.memory_space<vmem>>, vector<1x16xf32>
      tpu.vector_store %arg7[%c18, %c3_64], %83 {strides = array<i32>} : memref<22x22xf32, #tpu.memory_space<vmem>>, vector<1x16xf32>,
      %85 = vector.extract_strided_slice %18 {offsets = [0, 240], sizes = [1, 16], strides = [1, 1]} : vector<1x256xf32> to vector<1x16xf32>
      %c18_65 = arith.constant 18 : index
      %c3_66 = arith.constant 3 : index
      %86 = vector.load %arg8[%c18_65, %c3_66] : memref<22x22xf32, #tpu.memory_space<vmem>>, vector<1x16xf32>
      tpu.vector_store %arg8[%c18_65, %c3_66], %85 {strides = array<i32>} : memref<22x22xf32, #tpu.memory_space<vmem>>, vector<1x16xf32>,
      %c0_67 = arith.constant 0 : index
      %c0_68 = arith.constant 0 : index
      %87 = vector.load %arg7[%c0_67, %c0_68] : memref<22x22xf32, #tpu.memory_space<vmem>>, vector<22x22xf32>
      %c0_69 = arith.constant 0 : index
      %c0_70 = arith.constant 0 : index
      %88 = vector.load %arg8[%c0_69, %c0_70] : memref<22x22xf32, #tpu.memory_space<vmem>>, vector<22x22xf32>
      %cst_71 = arith.constant 0.000000e+00 : f32
      %89 = vector.broadcast %cst_71 : f32 to vector<16x16xf32>
      %cst_72 = arith.constant 0.000000e+00 : f32
      %90 = vector.broadcast %cst_72 : f32 to vector<16x16xf32>
      %cst_73 = arith.constant 0.000000e+00 : f32
      %91 = vector.broadcast %cst_73 : f32 to vector<16x16xf32>
      %cst_74 = arith.constant 0.000000e+00 : f32
      %92 = vector.broadcast %cst_74 : f32 to vector<16x16xf32>
      %93 = vector.extract_strided_slice %87 {offsets = [0, 0], sizes = [22, 16], strides = [1, 1]} : vector<22x22xf32> to vector<22x16xf32>
      %94 = vector.extract_strided_slice %88 {offsets = [0, 0], sizes = [22, 16], strides = [1, 1]} : vector<22x22xf32> to vector<22x16xf32>
      %c0_75 = arith.constant 0 : index
      %95 = memref.load %arg3[%c0_75] : memref<98xf32, #tpu.memory_space<smem>>
      %c49 = arith.constant 49 : index
      %96 = memref.load %arg3[%c49] : memref<98xf32, #tpu.memory_space<smem>>
      %97 = vector.extract_strided_slice %93 {offsets = [0, 0], sizes = [16, 16], strides = [1, 1]} : vector<22x16xf32> to vector<16x16xf32>
      %98 = vector.broadcast %95 : f32 to vector<16x16xf32>
      %99 = arith.mulf %97, %98 : vector<16x16xf32>
      %100 = arith.addf %89, %99 : vector<16x16xf32>
      %101 = vector.extract_strided_slice %94 {offsets = [0, 0], sizes = [16, 16], strides = [1, 1]} : vector<22x16xf32> to vector<16x16xf32>
      %102 = vector.broadcast %96 : f32 to vector<16x16xf32>
      %103 = arith.mulf %101, %102 : vector<16x16xf32>
      %104 = arith.addf %90, %103 : vector<16x16xf32>
      %c7_76 = arith.constant 7 : index
      %105 = memref.load %arg3[%c7_76] : memref<98xf32, #tpu.memory_space<smem>>
      %c56 = arith.constant 56 : index
      %106 = memref.load %arg3[%c56] : memref<98xf32, #tpu.memory_space<smem>>
      %107 = vector.extract_strided_slice %93 {offsets = [1, 0], sizes = [16, 16], strides = [1, 1]} : vector<22x16xf32> to vector<16x16xf32>
      %108 = vector.broadcast %105 : f32 to vector<16x16xf32>
      %109 = arith.mulf %107, %108 : vector<16x16xf32>
      %110 = arith.addf %91, %109 : vector<16x16xf32>
      %111 = vector.extract_strided_slice %94 {offsets = [1, 0], sizes = [16, 16], strides = [1, 1]} : vector<22x16xf32> to vector<16x16xf32>
      %112 = vector.broadcast %106 : f32 to vector<16x16xf32>
      %113 = arith.mulf %111, %112 : vector<16x16xf32>
      %114 = arith.addf %92, %113 : vector<16x16xf32>
      %c14_77 = arith.constant 14 : index
      %115 = memref.load %arg3[%c14_77] : memref<98xf32, #tpu.memory_space<smem>>
      %c63 = arith.constant 63 : index
      %116 = memref.load %arg3[%c63] : memref<98xf32, #tpu.memory_space<smem>>
      %117 = vector.extract_strided_slice %93 {offsets = [2, 0], sizes = [16, 16], strides = [1, 1]} : vector<22x16xf32> to vector<16x16xf32>
      %118 = vector.broadcast %115 : f32 to vector<16x16xf32>
      %119 = arith.mulf %117, %118 : vector<16x16xf32>
      %120 = arith.addf %100, %119 : vector<16x16xf32>
      %121 = vector.extract_strided_slice %94 {offsets = [2, 0], sizes = [16, 16], strides = [1, 1]} : vector<22x16xf32> to vector<16x16xf32>
      %122 = vector.broadcast %116 : f32 to vector<16x16xf32>
      %123 = arith.mulf %121, %122 : vector<16x16xf32>
      %124 = arith.addf %104, %123 : vector<16x16xf32>
      %c21 = arith.constant 21 : index
      %125 = memref.load %arg3[%c21] : memref<98xf32, #tpu.memory_space<smem>>
      %c70 = arith.constant 70 : index
      %126 = memref.load %arg3[%c70] : memref<98xf32, #tpu.memory_space<smem>>
      %127 = vector.extract_strided_slice %93 {offsets = [3, 0], sizes = [16, 16], strides = [1, 1]} : vector<22x16xf32> to vector<16x16xf32>
      %128 = vector.broadcast %125 : f32 to vector<16x16xf32>
      %129 = arith.mulf %127, %128 : vector<16x16xf32>
      %130 = arith.addf %110, %129 : vector<16x16xf32>
      %131 = vector.extract_strided_slice %94 {offsets = [3, 0], sizes = [16, 16], strides = [1, 1]} : vector<22x16xf32> to vector<16x16xf32>
      %132 = vector.broadcast %126 : f32 to vector<16x16xf32>
      %133 = arith.mulf %131, %132 : vector<16x16xf32>
      %134 = arith.addf %114, %133 : vector<16x16xf32>
      %c28 = arith.constant 28 : index
      %135 = memref.load %arg3[%c28] : memref<98xf32, #tpu.memory_space<smem>>
      %c77 = arith.constant 77 : index
      %136 = memref.load %arg3[%c77] : memref<98xf32, #tpu.memory_space<smem>>
      %137 = vector.extract_strided_slice %93 {offsets = [4, 0], sizes = [16, 16], strides = [1, 1]} : vector<22x16xf32> to vector<16x16xf32>
      %138 = vector.broadcast %135 : f32 to vector<16x16xf32>
      %139 = arith.mulf %137, %138 : vector<16x16xf32>
      %140 = arith.addf %120, %139 : vector<16x16xf32>
      %141 = vector.extract_strided_slice %94 {offsets = [4, 0], sizes = [16, 16], strides = [1, 1]} : vector<22x16xf32> to vector<16x16xf32>
      %142 = vector.broadcast %136 : f32 to vector<16x16xf32>
      %143 = arith.mulf %141, %142 : vector<16x16xf32>
      %144 = arith.addf %124, %143 : vector<16x16xf32>
      %c35 = arith.constant 35 : index
      %145 = memref.load %arg3[%c35] : memref<98xf32, #tpu.memory_space<smem>>
      %c84 = arith.constant 84 : index
      %146 = memref.load %arg3[%c84] : memref<98xf32, #tpu.memory_space<smem>>
      %147 = vector.extract_strided_slice %93 {offsets = [5, 0], sizes = [16, 16], strides = [1, 1]} : vector<22x16xf32> to vector<16x16xf32>
      %148 = vector.broadcast %145 : f32 to vector<16x16xf32>
      %149 = arith.mulf %147, %148 : vector<16x16xf32>
      %150 = arith.addf %130, %149 : vector<16x16xf32>
      %151 = vector.extract_strided_slice %94 {offsets = [5, 0], sizes = [16, 16], strides = [1, 1]} : vector<22x16xf32> to vector<16x16xf32>
      %152 = vector.broadcast %146 : f32 to vector<16x16xf32>
      %153 = arith.mulf %151, %152 : vector<16x16xf32>
      %154 = arith.addf %134, %153 : vector<16x16xf32>
      %c42 = arith.constant 42 : index
      %155 = memref.load %arg3[%c42] : memref<98xf32, #tpu.memory_space<smem>>
      %c91 = arith.constant 91 : index
      %156 = memref.load %arg3[%c91] : memref<98xf32, #tpu.memory_space<smem>>
      %157 = vector.extract_strided_slice %93 {offsets = [6, 0], sizes = [16, 16], strides = [1, 1]} : vector<22x16xf32> to vector<16x16xf32>
      %158 = vector.broadcast %155 : f32 to vector<16x16xf32>
      %159 = arith.mulf %157, %158 : vector<16x16xf32>
      %160 = arith.addf %140, %159 : vector<16x16xf32>
      %161 = vector.extract_strided_slice %94 {offsets = [6, 0], sizes = [16, 16], strides = [1, 1]} : vector<22x16xf32> to vector<16x16xf32>
      %162 = vector.broadcast %156 : f32 to vector<16x16xf32>
      %163 = arith.mulf %161, %162 : vector<16x16xf32>
      %164 = arith.addf %144, %163 : vector<16x16xf32>
      %165 = vector.extract_strided_slice %87 {offsets = [0, 1], sizes = [22, 16], strides = [1, 1]} : vector<22x22xf32> to vector<22x16xf32>
      %166 = vector.extract_strided_slice %88 {offsets = [0, 1], sizes = [22, 16], strides = [1, 1]} : vector<22x22xf32> to vector<22x16xf32>
      %c1 = arith.constant 1 : index
      %167 = memref.load %arg3[%c1] : memref<98xf32, #tpu.memory_space<smem>>
      %c50 = arith.constant 50 : index
      %168 = memref.load %arg3[%c50] : memref<98xf32, #tpu.memory_space<smem>>
      %169 = vector.extract_strided_slice %165 {offsets = [0, 0], sizes = [16, 16], strides = [1, 1]} : vector<22x16xf32> to vector<16x16xf32>
      %170 = vector.broadcast %167 : f32 to vector<16x16xf32>
      %171 = arith.mulf %169, %170 : vector<16x16xf32>
      %172 = arith.addf %160, %171 : vector<16x16xf32>
      %173 = vector.extract_strided_slice %166 {offsets = [0, 0], sizes = [16, 16], strides = [1, 1]} : vector<22x16xf32> to vector<16x16xf32>
      %174 = vector.broadcast %168 : f32 to vector<16x16xf32>
      %175 = arith.mulf %173, %174 : vector<16x16xf32>
      %176 = arith.addf %164, %175 : vector<16x16xf32>
      %c8_78 = arith.constant 8 : index
      %177 = memref.load %arg3[%c8_78] : memref<98xf32, #tpu.memory_space<smem>>
      %c57 = arith.constant 57 : index
      %178 = memref.load %arg3[%c57] : memref<98xf32, #tpu.memory_space<smem>>
      %179 = vector.extract_strided_slice %165 {offsets = [1, 0], sizes = [16, 16], strides = [1, 1]} : vector<22x16xf32> to vector<16x16xf32>
      %180 = vector.broadcast %177 : f32 to vector<16x16xf32>
      %181 = arith.mulf %179, %180 : vector<16x16xf32>
      %182 = arith.addf %150, %181 : vector<16x16xf32>
      %183 = vector.extract_strided_slice %166 {offsets = [1, 0], sizes = [16, 16], strides = [1, 1]} : vector<22x16xf32> to vector<16x16xf32>
      %184 = vector.broadcast %178 : f32 to vector<16x16xf32>
      %185 = arith.mulf %183, %184 : vector<16x16xf32>
      %186 = arith.addf %154, %185 : vector<16x16xf32>
      %c15_79 = arith.constant 15 : index
      %187 = memref.load %arg3[%c15_79] : memref<98xf32, #tpu.memory_space<smem>>
      %c64 = arith.constant 64 : index
      %188 = memref.load %arg3[%c64] : memref<98xf32, #tpu.memory_space<smem>>
      %189 = vector.extract_strided_slice %165 {offsets = [2, 0], sizes = [16, 16], strides = [1, 1]} : vector<22x16xf32> to vector<16x16xf32>
      %190 = vector.broadcast %187 : f32 to vector<16x16xf32>
      %191 = arith.mulf %189, %190 : vector<16x16xf32>
      %192 = arith.addf %172, %191 : vector<16x16xf32>
      %193 = vector.extract_strided_slice %166 {offsets = [2, 0], sizes = [16, 16], strides = [1, 1]} : vector<22x16xf32> to vector<16x16xf32>
      %194 = vector.broadcast %188 : f32 to vector<16x16xf32>
      %195 = arith.mulf %193, %194 : vector<16x16xf32>
      %196 = arith.addf %176, %195 : vector<16x16xf32>
      %c22 = arith.constant 22 : index
      %197 = memref.load %arg3[%c22] : memref<98xf32, #tpu.memory_space<smem>>
      %c71 = arith.constant 71 : index
      %198 = memref.load %arg3[%c71] : memref<98xf32, #tpu.memory_space<smem>>
      %199 = vector.extract_strided_slice %165 {offsets = [3, 0], sizes = [16, 16], strides = [1, 1]} : vector<22x16xf32> to vector<16x16xf32>
      %200 = vector.broadcast %197 : f32 to vector<16x16xf32>
      %201 = arith.mulf %199, %200 : vector<16x16xf32>
      %202 = arith.addf %182, %201 : vector<16x16xf32>
      %203 = vector.extract_strided_slice %166 {offsets = [3, 0], sizes = [16, 16], strides = [1, 1]} : vector<22x16xf32> to vector<16x16xf32>
      %204 = vector.broadcast %198 : f32 to vector<16x16xf32>
      %205 = arith.mulf %203, %204 : vector<16x16xf32>
      %206 = arith.addf %186, %205 : vector<16x16xf32>
      %c29 = arith.constant 29 : index
      %207 = memref.load %arg3[%c29] : memref<98xf32, #tpu.memory_space<smem>>
      %c78 = arith.constant 78 : index
      %208 = memref.load %arg3[%c78] : memref<98xf32, #tpu.memory_space<smem>>
      %209 = vector.extract_strided_slice %165 {offsets = [4, 0], sizes = [16, 16], strides = [1, 1]} : vector<22x16xf32> to vector<16x16xf32>
      %210 = vector.broadcast %207 : f32 to vector<16x16xf32>
      %211 = arith.mulf %209, %210 : vector<16x16xf32>
      %212 = arith.addf %192, %211 : vector<16x16xf32>
      %213 = vector.extract_strided_slice %166 {offsets = [4, 0], sizes = [16, 16], strides = [1, 1]} : vector<22x16xf32> to vector<16x16xf32>
      %214 = vector.broadcast %208 : f32 to vector<16x16xf32>
      %215 = arith.mulf %213, %214 : vector<16x16xf32>
      %216 = arith.addf %196, %215 : vector<16x16xf32>
      %c36 = arith.constant 36 : index
      %217 = memref.load %arg3[%c36] : memref<98xf32, #tpu.memory_space<smem>>
      %c85 = arith.constant 85 : index
      %218 = memref.load %arg3[%c85] : memref<98xf32, #tpu.memory_space<smem>>
      %219 = vector.extract_strided_slice %165 {offsets = [5, 0], sizes = [16, 16], strides = [1, 1]} : vector<22x16xf32> to vector<16x16xf32>
      %220 = vector.broadcast %217 : f32 to vector<16x16xf32>
      %221 = arith.mulf %219, %220 : vector<16x16xf32>
      %222 = arith.addf %202, %221 : vector<16x16xf32>
      %223 = vector.extract_strided_slice %166 {offsets = [5, 0], sizes = [16, 16], strides = [1, 1]} : vector<22x16xf32> to vector<16x16xf32>
      %224 = vector.broadcast %218 : f32 to vector<16x16xf32>
      %225 = arith.mulf %223, %224 : vector<16x16xf32>
      %226 = arith.addf %206, %225 : vector<16x16xf32>
      %c43 = arith.constant 43 : index
      %227 = memref.load %arg3[%c43] : memref<98xf32, #tpu.memory_space<smem>>
      %c92 = arith.constant 92 : index
      %228 = memref.load %arg3[%c92] : memref<98xf32, #tpu.memory_space<smem>>
      %229 = vector.extract_strided_slice %165 {offsets = [6, 0], sizes = [16, 16], strides = [1, 1]} : vector<22x16xf32> to vector<16x16xf32>
      %230 = vector.broadcast %227 : f32 to vector<16x16xf32>
      %231 = arith.mulf %229, %230 : vector<16x16xf32>
      %232 = arith.addf %212, %231 : vector<16x16xf32>
      %233 = vector.extract_strided_slice %166 {offsets = [6, 0], sizes = [16, 16], strides = [1, 1]} : vector<22x16xf32> to vector<16x16xf32>
      %234 = vector.broadcast %228 : f32 to vector<16x16xf32>
      %235 = arith.mulf %233, %234 : vector<16x16xf32>
      %236 = arith.addf %216, %235 : vector<16x16xf32>
      %237 = vector.extract_strided_slice %87 {offsets = [0, 2], sizes = [22, 16], strides = [1, 1]} : vector<22x22xf32> to vector<22x16xf32>
      %238 = vector.extract_strided_slice %88 {offsets = [0, 2], sizes = [22, 16], strides = [1, 1]} : vector<22x22xf32> to vector<22x16xf32>
      %c2 = arith.constant 2 : index
      %239 = memref.load %arg3[%c2] : memref<98xf32, #tpu.memory_space<smem>>
      %c51 = arith.constant 51 : index
      %240 = memref.load %arg3[%c51] : memref<98xf32, #tpu.memory_space<smem>>
      %241 = vector.extract_strided_slice %237 {offsets = [0, 0], sizes = [16, 16], strides = [1, 1]} : vector<22x16xf32> to vector<16x16xf32>
      %242 = vector.broadcast %239 : f32 to vector<16x16xf32>
      %243 = arith.mulf %241, %242 : vector<16x16xf32>
      %244 = arith.addf %232, %243 : vector<16x16xf32>
      %245 = vector.extract_strided_slice %238 {offsets = [0, 0], sizes = [16, 16], strides = [1, 1]} : vector<22x16xf32> to vector<16x16xf32>
      %246 = vector.broadcast %240 : f32 to vector<16x16xf32>
      %247 = arith.mulf %245, %246 : vector<16x16xf32>
      %248 = arith.addf %236, %247 : vector<16x16xf32>
      %c9_80 = arith.constant 9 : index
      %249 = memref.load %arg3[%c9_80] : memref<98xf32, #tpu.memory_space<smem>>
      %c58 = arith.constant 58 : index
      %250 = memref.load %arg3[%c58] : memref<98xf32, #tpu.memory_space<smem>>
      %251 = vector.extract_strided_slice %237 {offsets = [1, 0], sizes = [16, 16], strides = [1, 1]} : vector<22x16xf32> to vector<16x16xf32>
      %252 = vector.broadcast %249 : f32 to vector<16x16xf32>
      %253 = arith.mulf %251, %252 : vector<16x16xf32>
      %254 = arith.addf %222, %253 : vector<16x16xf32>
      %255 = vector.extract_strided_slice %238 {offsets = [1, 0], sizes = [16, 16], strides = [1, 1]} : vector<22x16xf32> to vector<16x16xf32>
      %256 = vector.broadcast %250 : f32 to vector<16x16xf32>
      %257 = arith.mulf %255, %256 : vector<16x16xf32>
      %258 = arith.addf %226, %257 : vector<16x16xf32>
      %c16_81 = arith.constant 16 : index
      %259 = memref.load %arg3[%c16_81] : memref<98xf32, #tpu.memory_space<smem>>
      %c65 = arith.constant 65 : index
      %260 = memref.load %arg3[%c65] : memref<98xf32, #tpu.memory_space<smem>>
      %261 = vector.extract_strided_slice %237 {offsets = [2, 0], sizes = [16, 16], strides = [1, 1]} : vector<22x16xf32> to vector<16x16xf32>
      %262 = vector.broadcast %259 : f32 to vector<16x16xf32>
      %263 = arith.mulf %261, %262 : vector<16x16xf32>
      %264 = arith.addf %244, %263 : vector<16x16xf32>
      %265 = vector.extract_strided_slice %238 {offsets = [2, 0], sizes = [16, 16], strides = [1, 1]} : vector<22x16xf32> to vector<16x16xf32>
      %266 = vector.broadcast %260 : f32 to vector<16x16xf32>
      %267 = arith.mulf %265, %266 : vector<16x16xf32>
      %268 = arith.addf %248, %267 : vector<16x16xf32>
      %c23 = arith.constant 23 : index
      %269 = memref.load %arg3[%c23] : memref<98xf32, #tpu.memory_space<smem>>
      %c72 = arith.constant 72 : index
      %270 = memref.load %arg3[%c72] : memref<98xf32, #tpu.memory_space<smem>>
      %271 = vector.extract_strided_slice %237 {offsets = [3, 0], sizes = [16, 16], strides = [1, 1]} : vector<22x16xf32> to vector<16x16xf32>
      %272 = vector.broadcast %269 : f32 to vector<16x16xf32>
      %273 = arith.mulf %271, %272 : vector<16x16xf32>
      %274 = arith.addf %254, %273 : vector<16x16xf32>
      %275 = vector.extract_strided_slice %238 {offsets = [3, 0], sizes = [16, 16], strides = [1, 1]} : vector<22x16xf32> to vector<16x16xf32>
      %276 = vector.broadcast %270 : f32 to vector<16x16xf32>
      %277 = arith.mulf %275, %276 : vector<16x16xf32>
      %278 = arith.addf %258, %277 : vector<16x16xf32>
      %c30 = arith.constant 30 : index
      %279 = memref.load %arg3[%c30] : memref<98xf32, #tpu.memory_space<smem>>
      %c79 = arith.constant 79 : index
      %280 = memref.load %arg3[%c79] : memref<98xf32, #tpu.memory_space<smem>>
      %281 = vector.extract_strided_slice %237 {offsets = [4, 0], sizes = [16, 16], strides = [1, 1]} : vector<22x16xf32> to vector<16x16xf32>
      %282 = vector.broadcast %279 : f32 to vector<16x16xf32>
      %283 = arith.mulf %281, %282 : vector<16x16xf32>
      %284 = arith.addf %264, %283 : vector<16x16xf32>
      %285 = vector.extract_strided_slice %238 {offsets = [4, 0], sizes = [16, 16], strides = [1, 1]} : vector<22x16xf32> to vector<16x16xf32>
      %286 = vector.broadcast %280 : f32 to vector<16x16xf32>
      %287 = arith.mulf %285, %286 : vector<16x16xf32>
      %288 = arith.addf %268, %287 : vector<16x16xf32>
      %c37 = arith.constant 37 : index
      %289 = memref.load %arg3[%c37] : memref<98xf32, #tpu.memory_space<smem>>
      %c86 = arith.constant 86 : index
      %290 = memref.load %arg3[%c86] : memref<98xf32, #tpu.memory_space<smem>>
      %291 = vector.extract_strided_slice %237 {offsets = [5, 0], sizes = [16, 16], strides = [1, 1]} : vector<22x16xf32> to vector<16x16xf32>
      %292 = vector.broadcast %289 : f32 to vector<16x16xf32>
      %293 = arith.mulf %291, %292 : vector<16x16xf32>
      %294 = arith.addf %274, %293 : vector<16x16xf32>
      %295 = vector.extract_strided_slice %238 {offsets = [5, 0], sizes = [16, 16], strides = [1, 1]} : vector<22x16xf32> to vector<16x16xf32>
      %296 = vector.broadcast %290 : f32 to vector<16x16xf32>
      %297 = arith.mulf %295, %296 : vector<16x16xf32>
      %298 = arith.addf %278, %297 : vector<16x16xf32>
      %c44 = arith.constant 44 : index
      %299 = memref.load %arg3[%c44] : memref<98xf32, #tpu.memory_space<smem>>
      %c93 = arith.constant 93 : index
      %300 = memref.load %arg3[%c93] : memref<98xf32, #tpu.memory_space<smem>>
      %301 = vector.extract_strided_slice %237 {offsets = [6, 0], sizes = [16, 16], strides = [1, 1]} : vector<22x16xf32> to vector<16x16xf32>
      %302 = vector.broadcast %299 : f32 to vector<16x16xf32>
      %303 = arith.mulf %301, %302 : vector<16x16xf32>
      %304 = arith.addf %284, %303 : vector<16x16xf32>
      %305 = vector.extract_strided_slice %238 {offsets = [6, 0], sizes = [16, 16], strides = [1, 1]} : vector<22x16xf32> to vector<16x16xf32>
      %306 = vector.broadcast %300 : f32 to vector<16x16xf32>
      %307 = arith.mulf %305, %306 : vector<16x16xf32>
      %308 = arith.addf %288, %307 : vector<16x16xf32>
      %309 = vector.extract_strided_slice %87 {offsets = [0, 3], sizes = [22, 16], strides = [1, 1]} : vector<22x22xf32> to vector<22x16xf32>
      %310 = vector.extract_strided_slice %88 {offsets = [0, 3], sizes = [22, 16], strides = [1, 1]} : vector<22x22xf32> to vector<22x16xf32>
      %c3_82 = arith.constant 3 : index
      %311 = memref.load %arg3[%c3_82] : memref<98xf32, #tpu.memory_space<smem>>
      %c52 = arith.constant 52 : index
      %312 = memref.load %arg3[%c52] : memref<98xf32, #tpu.memory_space<smem>>
      %313 = vector.extract_strided_slice %309 {offsets = [0, 0], sizes = [16, 16], strides = [1, 1]} : vector<22x16xf32> to vector<16x16xf32>
      %314 = vector.broadcast %311 : f32 to vector<16x16xf32>
      %315 = arith.mulf %313, %314 : vector<16x16xf32>
      %316 = arith.addf %304, %315 : vector<16x16xf32>
      %317 = vector.extract_strided_slice %310 {offsets = [0, 0], sizes = [16, 16], strides = [1, 1]} : vector<22x16xf32> to vector<16x16xf32>
      %318 = vector.broadcast %312 : f32 to vector<16x16xf32>
      %319 = arith.mulf %317, %318 : vector<16x16xf32>
      %320 = arith.addf %308, %319 : vector<16x16xf32>
      %c10_83 = arith.constant 10 : index
      %321 = memref.load %arg3[%c10_83] : memref<98xf32, #tpu.memory_space<smem>>
      %c59 = arith.constant 59 : index
      %322 = memref.load %arg3[%c59] : memref<98xf32, #tpu.memory_space<smem>>
      %323 = vector.extract_strided_slice %309 {offsets = [1, 0], sizes = [16, 16], strides = [1, 1]} : vector<22x16xf32> to vector<16x16xf32>
      %324 = vector.broadcast %321 : f32 to vector<16x16xf32>
      %325 = arith.mulf %323, %324 : vector<16x16xf32>
      %326 = arith.addf %294, %325 : vector<16x16xf32>
      %327 = vector.extract_strided_slice %310 {offsets = [1, 0], sizes = [16, 16], strides = [1, 1]} : vector<22x16xf32> to vector<16x16xf32>
      %328 = vector.broadcast %322 : f32 to vector<16x16xf32>
      %329 = arith.mulf %327, %328 : vector<16x16xf32>
      %330 = arith.addf %298, %329 : vector<16x16xf32>
      %c17_84 = arith.constant 17 : index
      %331 = memref.load %arg3[%c17_84] : memref<98xf32, #tpu.memory_space<smem>>
      %c66 = arith.constant 66 : index
      %332 = memref.load %arg3[%c66] : memref<98xf32, #tpu.memory_space<smem>>
      %333 = vector.extract_strided_slice %309 {offsets = [2, 0], sizes = [16, 16], strides = [1, 1]} : vector<22x16xf32> to vector<16x16xf32>
      %334 = vector.broadcast %331 : f32 to vector<16x16xf32>
      %335 = arith.mulf %333, %334 : vector<16x16xf32>
      %336 = arith.addf %316, %335 : vector<16x16xf32>
      %337 = vector.extract_strided_slice %310 {offsets = [2, 0], sizes = [16, 16], strides = [1, 1]} : vector<22x16xf32> to vector<16x16xf32>
      %338 = vector.broadcast %332 : f32 to vector<16x16xf32>
      %339 = arith.mulf %337, %338 : vector<16x16xf32>
      %340 = arith.addf %320, %339 : vector<16x16xf32>
      %c24 = arith.constant 24 : index
      %341 = memref.load %arg3[%c24] : memref<98xf32, #tpu.memory_space<smem>>
      %c73 = arith.constant 73 : index
      %342 = memref.load %arg3[%c73] : memref<98xf32, #tpu.memory_space<smem>>
      %343 = vector.extract_strided_slice %309 {offsets = [3, 0], sizes = [16, 16], strides = [1, 1]} : vector<22x16xf32> to vector<16x16xf32>
      %344 = vector.broadcast %341 : f32 to vector<16x16xf32>
      %345 = arith.mulf %343, %344 : vector<16x16xf32>
      %346 = arith.addf %326, %345 : vector<16x16xf32>
      %347 = vector.extract_strided_slice %310 {offsets = [3, 0], sizes = [16, 16], strides = [1, 1]} : vector<22x16xf32> to vector<16x16xf32>
      %348 = vector.broadcast %342 : f32 to vector<16x16xf32>
      %349 = arith.mulf %347, %348 : vector<16x16xf32>
      %350 = arith.addf %330, %349 : vector<16x16xf32>
      %c31 = arith.constant 31 : index
      %351 = memref.load %arg3[%c31] : memref<98xf32, #tpu.memory_space<smem>>
      %c80 = arith.constant 80 : index
      %352 = memref.load %arg3[%c80] : memref<98xf32, #tpu.memory_space<smem>>
      %353 = vector.extract_strided_slice %309 {offsets = [4, 0], sizes = [16, 16], strides = [1, 1]} : vector<22x16xf32> to vector<16x16xf32>
      %354 = vector.broadcast %351 : f32 to vector<16x16xf32>
      %355 = arith.mulf %353, %354 : vector<16x16xf32>
      %356 = arith.addf %336, %355 : vector<16x16xf32>
      %357 = vector.extract_strided_slice %310 {offsets = [4, 0], sizes = [16, 16], strides = [1, 1]} : vector<22x16xf32> to vector<16x16xf32>
      %358 = vector.broadcast %352 : f32 to vector<16x16xf32>
      %359 = arith.mulf %357, %358 : vector<16x16xf32>
      %360 = arith.addf %340, %359 : vector<16x16xf32>
      %c38 = arith.constant 38 : index
      %361 = memref.load %arg3[%c38] : memref<98xf32, #tpu.memory_space<smem>>
      %c87 = arith.constant 87 : index
      %362 = memref.load %arg3[%c87] : memref<98xf32, #tpu.memory_space<smem>>
      %363 = vector.extract_strided_slice %309 {offsets = [5, 0], sizes = [16, 16], strides = [1, 1]} : vector<22x16xf32> to vector<16x16xf32>
      %364 = vector.broadcast %361 : f32 to vector<16x16xf32>
      %365 = arith.mulf %363, %364 : vector<16x16xf32>
      %366 = arith.addf %346, %365 : vector<16x16xf32>
      %367 = vector.extract_strided_slice %310 {offsets = [5, 0], sizes = [16, 16], strides = [1, 1]} : vector<22x16xf32> to vector<16x16xf32>
      %368 = vector.broadcast %362 : f32 to vector<16x16xf32>
      %369 = arith.mulf %367, %368 : vector<16x16xf32>
      %370 = arith.addf %350, %369 : vector<16x16xf32>
      %c45 = arith.constant 45 : index
      %371 = memref.load %arg3[%c45] : memref<98xf32, #tpu.memory_space<smem>>
      %c94 = arith.constant 94 : index
      %372 = memref.load %arg3[%c94] : memref<98xf32, #tpu.memory_space<smem>>
      %373 = vector.extract_strided_slice %309 {offsets = [6, 0], sizes = [16, 16], strides = [1, 1]} : vector<22x16xf32> to vector<16x16xf32>
      %374 = vector.broadcast %371 : f32 to vector<16x16xf32>
      %375 = arith.mulf %373, %374 : vector<16x16xf32>
      %376 = arith.addf %356, %375 : vector<16x16xf32>
      %377 = vector.extract_strided_slice %310 {offsets = [6, 0], sizes = [16, 16], strides = [1, 1]} : vector<22x16xf32> to vector<16x16xf32>
      %378 = vector.broadcast %372 : f32 to vector<16x16xf32>
      %379 = arith.mulf %377, %378 : vector<16x16xf32>
      %380 = arith.addf %360, %379 : vector<16x16xf32>
      %381 = vector.extract_strided_slice %87 {offsets = [0, 4], sizes = [22, 16], strides = [1, 1]} : vector<22x22xf32> to vector<22x16xf32>
      %382 = vector.extract_strided_slice %88 {offsets = [0, 4], sizes = [22, 16], strides = [1, 1]} : vector<22x22xf32> to vector<22x16xf32>
      %c4_85 = arith.constant 4 : index
      %383 = memref.load %arg3[%c4_85] : memref<98xf32, #tpu.memory_space<smem>>
      %c53 = arith.constant 53 : index
      %384 = memref.load %arg3[%c53] : memref<98xf32, #tpu.memory_space<smem>>
      %385 = vector.extract_strided_slice %381 {offsets = [0, 0], sizes = [16, 16], strides = [1, 1]} : vector<22x16xf32> to vector<16x16xf32>
      %386 = vector.broadcast %383 : f32 to vector<16x16xf32>
      %387 = arith.mulf %385, %386 : vector<16x16xf32>
      %388 = arith.addf %376, %387 : vector<16x16xf32>
      %389 = vector.extract_strided_slice %382 {offsets = [0, 0], sizes = [16, 16], strides = [1, 1]} : vector<22x16xf32> to vector<16x16xf32>
      %390 = vector.broadcast %384 : f32 to vector<16x16xf32>
      %391 = arith.mulf %389, %390 : vector<16x16xf32>
      %392 = arith.addf %380, %391 : vector<16x16xf32>
      %c11_86 = arith.constant 11 : index
      %393 = memref.load %arg3[%c11_86] : memref<98xf32, #tpu.memory_space<smem>>
      %c60 = arith.constant 60 : index
      %394 = memref.load %arg3[%c60] : memref<98xf32, #tpu.memory_space<smem>>
      %395 = vector.extract_strided_slice %381 {offsets = [1, 0], sizes = [16, 16], strides = [1, 1]} : vector<22x16xf32> to vector<16x16xf32>
      %396 = vector.broadcast %393 : f32 to vector<16x16xf32>
      %397 = arith.mulf %395, %396 : vector<16x16xf32>
      %398 = arith.addf %366, %397 : vector<16x16xf32>
      %399 = vector.extract_strided_slice %382 {offsets = [1, 0], sizes = [16, 16], strides = [1, 1]} : vector<22x16xf32> to vector<16x16xf32>
      %400 = vector.broadcast %394 : f32 to vector<16x16xf32>
      %401 = arith.mulf %399, %400 : vector<16x16xf32>
      %402 = arith.addf %370, %401 : vector<16x16xf32>
      %c18_87 = arith.constant 18 : index
      %403 = memref.load %arg3[%c18_87] : memref<98xf32, #tpu.memory_space<smem>>
      %c67 = arith.constant 67 : index
      %404 = memref.load %arg3[%c67] : memref<98xf32, #tpu.memory_space<smem>>
      %405 = vector.extract_strided_slice %381 {offsets = [2, 0], sizes = [16, 16], strides = [1, 1]} : vector<22x16xf32> to vector<16x16xf32>
      %406 = vector.broadcast %403 : f32 to vector<16x16xf32>
      %407 = arith.mulf %405, %406 : vector<16x16xf32>
      %408 = arith.addf %388, %407 : vector<16x16xf32>
      %409 = vector.extract_strided_slice %382 {offsets = [2, 0], sizes = [16, 16], strides = [1, 1]} : vector<22x16xf32> to vector<16x16xf32>
      %410 = vector.broadcast %404 : f32 to vector<16x16xf32>
      %411 = arith.mulf %409, %410 : vector<16x16xf32>
      %412 = arith.addf %392, %411 : vector<16x16xf32>
      %c25 = arith.constant 25 : index
      %413 = memref.load %arg3[%c25] : memref<98xf32, #tpu.memory_space<smem>>
      %c74 = arith.constant 74 : index
      %414 = memref.load %arg3[%c74] : memref<98xf32, #tpu.memory_space<smem>>
      %415 = vector.extract_strided_slice %381 {offsets = [3, 0], sizes = [16, 16], strides = [1, 1]} : vector<22x16xf32> to vector<16x16xf32>
      %416 = vector.broadcast %413 : f32 to vector<16x16xf32>
      %417 = arith.mulf %415, %416 : vector<16x16xf32>
      %418 = arith.addf %398, %417 : vector<16x16xf32>
      %419 = vector.extract_strided_slice %382 {offsets = [3, 0], sizes = [16, 16], strides = [1, 1]} : vector<22x16xf32> to vector<16x16xf32>
      %420 = vector.broadcast %414 : f32 to vector<16x16xf32>
      %421 = arith.mulf %419, %420 : vector<16x16xf32>
      %422 = arith.addf %402, %421 : vector<16x16xf32>
      %c32 = arith.constant 32 : index
      %423 = memref.load %arg3[%c32] : memref<98xf32, #tpu.memory_space<smem>>
      %c81 = arith.constant 81 : index
      %424 = memref.load %arg3[%c81] : memref<98xf32, #tpu.memory_space<smem>>
      %425 = vector.extract_strided_slice %381 {offsets = [4, 0], sizes = [16, 16], strides = [1, 1]} : vector<22x16xf32> to vector<16x16xf32>
      %426 = vector.broadcast %423 : f32 to vector<16x16xf32>
      %427 = arith.mulf %425, %426 : vector<16x16xf32>
      %428 = arith.addf %408, %427 : vector<16x16xf32>
      %429 = vector.extract_strided_slice %382 {offsets = [4, 0], sizes = [16, 16], strides = [1, 1]} : vector<22x16xf32> to vector<16x16xf32>
      %430 = vector.broadcast %424 : f32 to vector<16x16xf32>
      %431 = arith.mulf %429, %430 : vector<16x16xf32>
      %432 = arith.addf %412, %431 : vector<16x16xf32>
      %c39 = arith.constant 39 : index
      %433 = memref.load %arg3[%c39] : memref<98xf32, #tpu.memory_space<smem>>
      %c88 = arith.constant 88 : index
      %434 = memref.load %arg3[%c88] : memref<98xf32, #tpu.memory_space<smem>>
      %435 = vector.extract_strided_slice %381 {offsets = [5, 0], sizes = [16, 16], strides = [1, 1]} : vector<22x16xf32> to vector<16x16xf32>
      %436 = vector.broadcast %433 : f32 to vector<16x16xf32>
      %437 = arith.mulf %435, %436 : vector<16x16xf32>
      %438 = arith.addf %418, %437 : vector<16x16xf32>
      %439 = vector.extract_strided_slice %382 {offsets = [5, 0], sizes = [16, 16], strides = [1, 1]} : vector<22x16xf32> to vector<16x16xf32>
      %440 = vector.broadcast %434 : f32 to vector<16x16xf32>
      %441 = arith.mulf %439, %440 : vector<16x16xf32>
      %442 = arith.addf %422, %441 : vector<16x16xf32>
      %c46 = arith.constant 46 : index
      %443 = memref.load %arg3[%c46] : memref<98xf32, #tpu.memory_space<smem>>
      %c95 = arith.constant 95 : index
      %444 = memref.load %arg3[%c95] : memref<98xf32, #tpu.memory_space<smem>>
      %445 = vector.extract_strided_slice %381 {offsets = [6, 0], sizes = [16, 16], strides = [1, 1]} : vector<22x16xf32> to vector<16x16xf32>
      %446 = vector.broadcast %443 : f32 to vector<16x16xf32>
      %447 = arith.mulf %445, %446 : vector<16x16xf32>
      %448 = arith.addf %428, %447 : vector<16x16xf32>
      %449 = vector.extract_strided_slice %382 {offsets = [6, 0], sizes = [16, 16], strides = [1, 1]} : vector<22x16xf32> to vector<16x16xf32>
      %450 = vector.broadcast %444 : f32 to vector<16x16xf32>
      %451 = arith.mulf %449, %450 : vector<16x16xf32>
      %452 = arith.addf %432, %451 : vector<16x16xf32>
      %453 = vector.extract_strided_slice %87 {offsets = [0, 5], sizes = [22, 16], strides = [1, 1]} : vector<22x22xf32> to vector<22x16xf32>
      %454 = vector.extract_strided_slice %88 {offsets = [0, 5], sizes = [22, 16], strides = [1, 1]} : vector<22x22xf32> to vector<22x16xf32>
      %c5_88 = arith.constant 5 : index
      %455 = memref.load %arg3[%c5_88] : memref<98xf32, #tpu.memory_space<smem>>
      %c54 = arith.constant 54 : index
      %456 = memref.load %arg3[%c54] : memref<98xf32, #tpu.memory_space<smem>>
      %457 = vector.extract_strided_slice %453 {offsets = [0, 0], sizes = [16, 16], strides = [1, 1]} : vector<22x16xf32> to vector<16x16xf32>
      %458 = vector.broadcast %455 : f32 to vector<16x16xf32>
      %459 = arith.mulf %457, %458 : vector<16x16xf32>
      %460 = arith.addf %448, %459 : vector<16x16xf32>
      %461 = vector.extract_strided_slice %454 {offsets = [0, 0], sizes = [16, 16], strides = [1, 1]} : vector<22x16xf32> to vector<16x16xf32>
      %462 = vector.broadcast %456 : f32 to vector<16x16xf32>
      %463 = arith.mulf %461, %462 : vector<16x16xf32>
      %464 = arith.addf %452, %463 : vector<16x16xf32>
      %c12_89 = arith.constant 12 : index
      %465 = memref.load %arg3[%c12_89] : memref<98xf32, #tpu.memory_space<smem>>
      %c61 = arith.constant 61 : index
      %466 = memref.load %arg3[%c61] : memref<98xf32, #tpu.memory_space<smem>>
      %467 = vector.extract_strided_slice %453 {offsets = [1, 0], sizes = [16, 16], strides = [1, 1]} : vector<22x16xf32> to vector<16x16xf32>
      %468 = vector.broadcast %465 : f32 to vector<16x16xf32>
      %469 = arith.mulf %467, %468 : vector<16x16xf32>
      %470 = arith.addf %438, %469 : vector<16x16xf32>
      %471 = vector.extract_strided_slice %454 {offsets = [1, 0], sizes = [16, 16], strides = [1, 1]} : vector<22x16xf32> to vector<16x16xf32>
      %472 = vector.broadcast %466 : f32 to vector<16x16xf32>
      %473 = arith.mulf %471, %472 : vector<16x16xf32>
      %474 = arith.addf %442, %473 : vector<16x16xf32>
      %c19 = arith.constant 19 : index
      %475 = memref.load %arg3[%c19] : memref<98xf32, #tpu.memory_space<smem>>
      %c68 = arith.constant 68 : index
      %476 = memref.load %arg3[%c68] : memref<98xf32, #tpu.memory_space<smem>>
      %477 = vector.extract_strided_slice %453 {offsets = [2, 0], sizes = [16, 16], strides = [1, 1]} : vector<22x16xf32> to vector<16x16xf32>
      %478 = vector.broadcast %475 : f32 to vector<16x16xf32>
      %479 = arith.mulf %477, %478 : vector<16x16xf32>
      %480 = arith.addf %460, %479 : vector<16x16xf32>
      %481 = vector.extract_strided_slice %454 {offsets = [2, 0], sizes = [16, 16], strides = [1, 1]} : vector<22x16xf32> to vector<16x16xf32>
      %482 = vector.broadcast %476 : f32 to vector<16x16xf32>
      %483 = arith.mulf %481, %482 : vector<16x16xf32>
      %484 = arith.addf %464, %483 : vector<16x16xf32>
      %c26 = arith.constant 26 : index
      %485 = memref.load %arg3[%c26] : memref<98xf32, #tpu.memory_space<smem>>
      %c75 = arith.constant 75 : index
      %486 = memref.load %arg3[%c75] : memref<98xf32, #tpu.memory_space<smem>>
      %487 = vector.extract_strided_slice %453 {offsets = [3, 0], sizes = [16, 16], strides = [1, 1]} : vector<22x16xf32> to vector<16x16xf32>
      %488 = vector.broadcast %485 : f32 to vector<16x16xf32>
      %489 = arith.mulf %487, %488 : vector<16x16xf32>
      %490 = arith.addf %470, %489 : vector<16x16xf32>
      %491 = vector.extract_strided_slice %454 {offsets = [3, 0], sizes = [16, 16], strides = [1, 1]} : vector<22x16xf32> to vector<16x16xf32>
      %492 = vector.broadcast %486 : f32 to vector<16x16xf32>
      %493 = arith.mulf %491, %492 : vector<16x16xf32>
      %494 = arith.addf %474, %493 : vector<16x16xf32>
      %c33 = arith.constant 33 : index
      %495 = memref.load %arg3[%c33] : memref<98xf32, #tpu.memory_space<smem>>
      %c82 = arith.constant 82 : index
      %496 = memref.load %arg3[%c82] : memref<98xf32, #tpu.memory_space<smem>>
      %497 = vector.extract_strided_slice %453 {offsets = [4, 0], sizes = [16, 16], strides = [1, 1]} : vector<22x16xf32> to vector<16x16xf32>
      %498 = vector.broadcast %495 : f32 to vector<16x16xf32>
      %499 = arith.mulf %497, %498 : vector<16x16xf32>
      %500 = arith.addf %480, %499 : vector<16x16xf32>
      %501 = vector.extract_strided_slice %454 {offsets = [4, 0], sizes = [16, 16], strides = [1, 1]} : vector<22x16xf32> to vector<16x16xf32>
      %502 = vector.broadcast %496 : f32 to vector<16x16xf32>
      %503 = arith.mulf %501, %502 : vector<16x16xf32>
      %504 = arith.addf %484, %503 : vector<16x16xf32>
      %c40 = arith.constant 40 : index
      %505 = memref.load %arg3[%c40] : memref<98xf32, #tpu.memory_space<smem>>
      %c89 = arith.constant 89 : index
      %506 = memref.load %arg3[%c89] : memref<98xf32, #tpu.memory_space<smem>>
      %507 = vector.extract_strided_slice %453 {offsets = [5, 0], sizes = [16, 16], strides = [1, 1]} : vector<22x16xf32> to vector<16x16xf32>
      %508 = vector.broadcast %505 : f32 to vector<16x16xf32>
      %509 = arith.mulf %507, %508 : vector<16x16xf32>
      %510 = arith.addf %490, %509 : vector<16x16xf32>
      %511 = vector.extract_strided_slice %454 {offsets = [5, 0], sizes = [16, 16], strides = [1, 1]} : vector<22x16xf32> to vector<16x16xf32>
      %512 = vector.broadcast %506 : f32 to vector<16x16xf32>
      %513 = arith.mulf %511, %512 : vector<16x16xf32>
      %514 = arith.addf %494, %513 : vector<16x16xf32>
      %c47 = arith.constant 47 : index
      %515 = memref.load %arg3[%c47] : memref<98xf32, #tpu.memory_space<smem>>
      %c96 = arith.constant 96 : index
      %516 = memref.load %arg3[%c96] : memref<98xf32, #tpu.memory_space<smem>>
      %517 = vector.extract_strided_slice %453 {offsets = [6, 0], sizes = [16, 16], strides = [1, 1]} : vector<22x16xf32> to vector<16x16xf32>
      %518 = vector.broadcast %515 : f32 to vector<16x16xf32>
      %519 = arith.mulf %517, %518 : vector<16x16xf32>
      %520 = arith.addf %500, %519 : vector<16x16xf32>
      %521 = vector.extract_strided_slice %454 {offsets = [6, 0], sizes = [16, 16], strides = [1, 1]} : vector<22x16xf32> to vector<16x16xf32>
      %522 = vector.broadcast %516 : f32 to vector<16x16xf32>
      %523 = arith.mulf %521, %522 : vector<16x16xf32>
      %524 = arith.addf %504, %523 : vector<16x16xf32>
      %525 = vector.extract_strided_slice %87 {offsets = [0, 6], sizes = [22, 16], strides = [1, 1]} : vector<22x22xf32> to vector<22x16xf32>
      %526 = vector.extract_strided_slice %88 {offsets = [0, 6], sizes = [22, 16], strides = [1, 1]} : vector<22x22xf32> to vector<22x16xf32>
      %c6_90 = arith.constant 6 : index
      %527 = memref.load %arg3[%c6_90] : memref<98xf32, #tpu.memory_space<smem>>
      %c55 = arith.constant 55 : index
      %528 = memref.load %arg3[%c55] : memref<98xf32, #tpu.memory_space<smem>>
      %529 = vector.extract_strided_slice %525 {offsets = [0, 0], sizes = [16, 16], strides = [1, 1]} : vector<22x16xf32> to vector<16x16xf32>
      %530 = vector.broadcast %527 : f32 to vector<16x16xf32>
      %531 = arith.mulf %529, %530 : vector<16x16xf32>
      %532 = arith.addf %520, %531 : vector<16x16xf32>
      %533 = vector.extract_strided_slice %526 {offsets = [0, 0], sizes = [16, 16], strides = [1, 1]} : vector<22x16xf32> to vector<16x16xf32>
      %534 = vector.broadcast %528 : f32 to vector<16x16xf32>
      %535 = arith.mulf %533, %534 : vector<16x16xf32>
      %536 = arith.addf %524, %535 : vector<16x16xf32>
      %c13_91 = arith.constant 13 : index
      %537 = memref.load %arg3[%c13_91] : memref<98xf32, #tpu.memory_space<smem>>
      %c62 = arith.constant 62 : index
      %538 = memref.load %arg3[%c62] : memref<98xf32, #tpu.memory_space<smem>>
      %539 = vector.extract_strided_slice %525 {offsets = [1, 0], sizes = [16, 16], strides = [1, 1]} : vector<22x16xf32> to vector<16x16xf32>
      %540 = vector.broadcast %537 : f32 to vector<16x16xf32>
      %541 = arith.mulf %539, %540 : vector<16x16xf32>
      %542 = arith.addf %510, %541 : vector<16x16xf32>
      %543 = vector.extract_strided_slice %526 {offsets = [1, 0], sizes = [16, 16], strides = [1, 1]} : vector<22x16xf32> to vector<16x16xf32>
      %544 = vector.broadcast %538 : f32 to vector<16x16xf32>
      %545 = arith.mulf %543, %544 : vector<16x16xf32>
      %546 = arith.addf %514, %545 : vector<16x16xf32>
      %c20 = arith.constant 20 : index
      %547 = memref.load %arg3[%c20] : memref<98xf32, #tpu.memory_space<smem>>
      %c69 = arith.constant 69 : index
      %548 = memref.load %arg3[%c69] : memref<98xf32, #tpu.memory_space<smem>>
      %549 = vector.extract_strided_slice %525 {offsets = [2, 0], sizes = [16, 16], strides = [1, 1]} : vector<22x16xf32> to vector<16x16xf32>
      %550 = vector.broadcast %547 : f32 to vector<16x16xf32>
      %551 = arith.mulf %549, %550 : vector<16x16xf32>
      %552 = arith.addf %532, %551 : vector<16x16xf32>
      %553 = vector.extract_strided_slice %526 {offsets = [2, 0], sizes = [16, 16], strides = [1, 1]} : vector<22x16xf32> to vector<16x16xf32>
      %554 = vector.broadcast %548 : f32 to vector<16x16xf32>
      %555 = arith.mulf %553, %554 : vector<16x16xf32>
      %556 = arith.addf %536, %555 : vector<16x16xf32>
      %c27 = arith.constant 27 : index
      %557 = memref.load %arg3[%c27] : memref<98xf32, #tpu.memory_space<smem>>
      %c76 = arith.constant 76 : index
      %558 = memref.load %arg3[%c76] : memref<98xf32, #tpu.memory_space<smem>>
      %559 = vector.extract_strided_slice %525 {offsets = [3, 0], sizes = [16, 16], strides = [1, 1]} : vector<22x16xf32> to vector<16x16xf32>
      %560 = vector.broadcast %557 : f32 to vector<16x16xf32>
      %561 = arith.mulf %559, %560 : vector<16x16xf32>
      %562 = arith.addf %542, %561 : vector<16x16xf32>
      %563 = vector.extract_strided_slice %526 {offsets = [3, 0], sizes = [16, 16], strides = [1, 1]} : vector<22x16xf32> to vector<16x16xf32>
      %564 = vector.broadcast %558 : f32 to vector<16x16xf32>
      %565 = arith.mulf %563, %564 : vector<16x16xf32>
      %566 = arith.addf %546, %565 : vector<16x16xf32>
      %c34 = arith.constant 34 : index
      %567 = memref.load %arg3[%c34] : memref<98xf32, #tpu.memory_space<smem>>
      %c83 = arith.constant 83 : index
      %568 = memref.load %arg3[%c83] : memref<98xf32, #tpu.memory_space<smem>>
      %569 = vector.extract_strided_slice %525 {offsets = [4, 0], sizes = [16, 16], strides = [1, 1]} : vector<22x16xf32> to vector<16x16xf32>
      %570 = vector.broadcast %567 : f32 to vector<16x16xf32>
      %571 = arith.mulf %569, %570 : vector<16x16xf32>
      %572 = arith.addf %552, %571 : vector<16x16xf32>
      %573 = vector.extract_strided_slice %526 {offsets = [4, 0], sizes = [16, 16], strides = [1, 1]} : vector<22x16xf32> to vector<16x16xf32>
      %574 = vector.broadcast %568 : f32 to vector<16x16xf32>
      %575 = arith.mulf %573, %574 : vector<16x16xf32>
      %576 = arith.addf %556, %575 : vector<16x16xf32>
      %c41 = arith.constant 41 : index
      %577 = memref.load %arg3[%c41] : memref<98xf32, #tpu.memory_space<smem>>
      %c90 = arith.constant 90 : index
      %578 = memref.load %arg3[%c90] : memref<98xf32, #tpu.memory_space<smem>>
      %579 = vector.extract_strided_slice %525 {offsets = [5, 0], sizes = [16, 16], strides = [1, 1]} : vector<22x16xf32> to vector<16x16xf32>
      %580 = vector.broadcast %577 : f32 to vector<16x16xf32>
      %581 = arith.mulf %579, %580 : vector<16x16xf32>
      %582 = arith.addf %562, %581 : vector<16x16xf32>
      %583 = vector.extract_strided_slice %526 {offsets = [5, 0], sizes = [16, 16], strides = [1, 1]} : vector<22x16xf32> to vector<16x16xf32>
      %584 = vector.broadcast %578 : f32 to vector<16x16xf32>
      %585 = arith.mulf %583, %584 : vector<16x16xf32>
      %586 = arith.addf %566, %585 : vector<16x16xf32>
      %c48 = arith.constant 48 : index
      %587 = memref.load %arg3[%c48] : memref<98xf32, #tpu.memory_space<smem>>
      %c97 = arith.constant 97 : index
      %588 = memref.load %arg3[%c97] : memref<98xf32, #tpu.memory_space<smem>>
      %589 = vector.extract_strided_slice %525 {offsets = [6, 0], sizes = [16, 16], strides = [1, 1]} : vector<22x16xf32> to vector<16x16xf32>
      %590 = vector.broadcast %587 : f32 to vector<16x16xf32>
      %591 = arith.mulf %589, %590 : vector<16x16xf32>
      %592 = arith.addf %572, %591 : vector<16x16xf32>
      %593 = vector.extract_strided_slice %526 {offsets = [6, 0], sizes = [16, 16], strides = [1, 1]} : vector<22x16xf32> to vector<16x16xf32>
      %594 = vector.broadcast %588 : f32 to vector<16x16xf32>
      %595 = arith.mulf %593, %594 : vector<16x16xf32>
      %596 = arith.addf %576, %595 : vector<16x16xf32>
      %597 = arith.addf %592, %596 : vector<16x16xf32>
      %598 = arith.addf %582, %586 : vector<16x16xf32>
      %599 = arith.addf %597, %598 : vector<16x16xf32>
      %600 = arith.negf %599 : vector<16x16xf32>
      %601 = math.exp %600 : vector<16x16xf32>
      %cst_92 = arith.constant 1.000000e+00 : f32
      %602 = vector.broadcast %cst_92 : f32 to vector<16x16xf32>
      %603 = arith.addf %602, %601 : vector<16x16xf32>
      %604 = arith.divf %602, %603 : vector<16x16xf32>
      %c0_93 = arith.constant 0 : index
      %c0_94 = arith.constant 0 : index
      %c0_95 = arith.constant 0 : index
      %c0_96 = arith.constant 0 : index
      %605 = vector.load %arg4[%c0_93, %c0_94, %c0_95, %c0_96] : memref<1x1x16x16xf32, #tpu.memory_space<vmem>>, vector<1x1x16x16xf32>
      %606 = vector.shape_cast %605 : vector<1x1x16x16xf32> to vector<16x16xf32>
      %607 = vector.shape_cast %604 : vector<16x16xf32> to vector<1x1x16x16xf32>
      tpu.vector_store %arg4[%c0_93, %c0_94, %c0_95, %c0_96], %607 {strides = array<i32>} : memref<1x1x16x16xf32, #tpu.memory_space<vmem>>, vector<1x1x16x16xf32>,
    } else {
    }
    return
  }
  func.func @transform_0(%arg0: i32, %arg1: i32) -> (i32, i32, i32) {
    %c0_i32 = arith.constant 0 : i32
    %c0_i32_0 = arith.constant 0 : i32
    return %arg0, %arg1, %c0_i32 : i32, i32, i32
  }
  func.func @transform_1(%arg0: i32, %arg1: i32) -> i32 {
    %c0_i32 = arith.constant 0 : i32
    %c0_i32_0 = arith.constant 0 : i32
    return %c0_i32 : i32
  }
  func.func @transform_2(%arg0: i32, %arg1: i32) -> (i32, i32, i32, i32) {
    %c0_i32 = arith.constant 0 : i32
    %c0_i32_0 = arith.constant 0 : i32
    %c0_i32_1 = arith.constant 0 : i32
    %c0_i32_2 = arith.constant 0 : i32
    return %arg0, %c0_i32, %c0_i32_0, %c0_i32_1 : i32, i32, i32, i32
  }
}

</mosaic_0001>

<llo_original>
// kernel: tpu_custom_call.1
$region0: #{tpu_custom_call.1}
  #allocation0 [shape = 'u32[]', space=smem, size = 0x4, offset = 0x4, fixed_abs, tag = 'smem constant byte address 0x4 - core index']
  #allocation1 [shape = 'u32[72,128]{1,0:T(1,128)}', space=vmem, size = 0x9000, scoped, tag = 'internal scratch']
  #allocation2 [shape = 'f32[1,256]{1,0:T(1,128)}', space=vmem, size = 0x400, scoped, tag = 'scratch operand']
  #allocation3 [shape = 'f32[1,256]{1,0:T(1,128)}', space=vmem, size = 0x400, scoped, tag = 'scratch operand']
  #allocation4 [shape = 'f32[22,22]{1,0:T(8,128)}', space=vmem, size = 0x3000, scoped, tag = 'scratch operand']
  #allocation5 [shape = 'f32[22,22]{1,0:T(8,128)}', space=vmem, size = 0x3000, scoped, tag = 'scratch operand']
  %s0 = inlined_call_operand.hbm [shape: f32[2,4,256], index: 0, kind: input, shape index: {}]
  %s1 = inlined_call_operand.hbm [shape: f32[98], index: 1, kind: input, shape index: {}]
  %s2 = inlined_call_operand.hbm [shape: f32[2,1,16,16], index: 2, kind: output, shape index: {}]
  %s3 = sld [smem:[#allocation0]]
  $region61: #{tpu_custom_call.1} parent=0
    _
  %s5 = ssub.s32 1, %s3
  %s6 = scalar_select 0, %s5, %s3
  $region1: #{tpu_custom_call.1} parent=0
    #allocation6 [shape = 'u8[8192]{0}', space=vmem, size = 0x2000, scoped, tag = 'input window, operand 0']
    #allocation7 [shape = 's32[2]{0}', space=sflag, size = 0x8, scoped, tag = 'scoped memory for tpu_custom_call.1']
    #allocation8 [shape = 's32[2]{0}', space=sflag, size = 0x8, scoped, tag = 'scoped memory for tpu_custom_call.1']
    #allocation9 [shape = 's32[2]{0}', space=sflag, size = 0x8, scoped, tag = 'scoped memory for tpu_custom_call.1']
    #allocation10 [shape = 'u8[512]{0}', space=smem, size = 0x200, scoped, tag = 'input window, operand 1, single buffered']
    #allocation11 [shape = 'u8[16384]{0}', space=vmem, size = 0x4000, scoped, tag = 'output window, operand 0']
    %7 = vsyncpa [#allocation7], 0
    %s8 = scalar_lea.sflag [#allocation7], 1
    %9 = vsyncpa %s8, 0
    %10 = vsyncpa [#allocation9], 0
    %11 = vsyncpa [#allocation8], 0
    %s12 = scalar_lea.sflag [#allocation8], 1
    %13 = vsyncpa %s12, 0
    loop: start=0, step=1, limit=4
    $region2: #{tpu_custom_call.1} parent=1 // loop_pre_header
      _
    $region3: #{tpu_custom_call.1} parent=1 // loop_header
      %s15 = sphi 0, %s19
      %p16 = scmp.ge.s32.totalorder %s15, 4
      %s22 = sphi 0, %s34
      %s23 = sphi 0, %s30
      %s24 = sphi 0, %s22
      %s25 = sphi 0, %s23
      %s26 = sphi 0, %s24
      %s27 = sphi 0, %s25
      %s39 = sphi 0, %s41
      %s42 = sphi 0, %s39
      %s43 = sphi 0, %s42
      %s59 = sphi 0, %s43
      %s63 = sphi 0, %s63
      %s65 = sphi 0, %s63
      %s66 = sphi 0, %s65
      %s80 = sphi 0, %s66
      %s86 = sphi 0, %s88
      %s89 = sphi 0, %s86
      %s90 = sphi 0, %s89
      %s106 = sphi 0, %s90
    $region4: #{tpu_custom_call.1} parent=1 // loop_header_branch
      %18 = sbr.rel (%p16) target = $region8
    $region5: #{tpu_custom_call.1} parent=1 // loop_body
      %s20 = ssub.s32 %s15, 1
      %s21 = ssub.s32 %s15, 2
      %s28 = sadd.s32 1, %s23
      %p29 = scmp.ge.s32.totalorder %s28, 1
      %s30 = scalar_select %p29, 0, %s28
      %s31 = sadd.s32 1, %s22
      %s32 = scalar_select %p29, %s31, %s22
      %p33 = scmp.ge.s32.totalorder %s32, 2
      %s34 = scalar_select %p33, 0, %s32
      %s35 = ssub.s32 %s22, %s34
      %s36 = ssub.s32 %s23, %s30
      %s37 = sor.u32 %s35, %s36
      %p38 = scmp.eq.s32.totalorder %s37, 0
      %s40 = sadd.s32 %s39, 1
      %s41 = scalar_select %p38, %s39, %s40
      %p44 = pneg %p38
      %p45 = scmp.eq.s32.totalorder %s15, 1
      %p46 = por %p44, %p45
      %p47 = scmp.ne.s32.totalorder %s39, %s42
      %p48 = scmp.eq.s32.totalorder %s15, 0
      %p49 = por %p47, %p48
      %p50 = scmp.ne.s32.totalorder %s39, %s42
      %p51 = scmp.eq.s32.totalorder %s20, 1
      %p52 = por %p50, %p51
      %p53 = scmp.ne.s32.totalorder %s42, %s43
      %p54 = scmp.eq.s32.totalorder %s20, 0
      %p55 = por %p53, %p54
      %p56 = scmp.ne.s32.totalorder %s42, %s43
      %p57 = scmp.eq.s32.totalorder %s21, 1
      %p58 = por %p56, %p57
      %p60 = scmp.ne.s32.totalorder %s43, %s59
      %p61 = scmp.eq.s32.totalorder %s21, 0
      %p62 = por %p60, %p61
      %s64 = sadd.s32 %s63, 1
      %p67 = scmp.eq.s32.totalorder %s15, 1
      %p68 = scmp.ne.s32.totalorder %s63, %s65
      %p69 = scmp.eq.s32.totalorder %s15, 0
      %p70 = por %p68, %p69
      %p71 = scmp.ne.s32.totalorder %s63, %s65
      %p72 = scmp.eq.s32.totalorder %s20, 1
      %p73 = por %p71, %p72
      %p74 = scmp.ne.s32.totalorder %s65, %s66
      %p75 = scmp.eq.s32.totalorder %s20, 0
      %p76 = por %p74, %p75
      %p77 = scmp.ne.s32.totalorder %s65, %s66
      %p78 = scmp.eq.s32.totalorder %s21, 1
      %p79 = por %p77, %p78
      %p81 = scmp.ne.s32.totalorder %s66, %s80
      %p82 = scmp.eq.s32.totalorder %s21, 0
      %p83 = por %p81, %p82
      %s84 = ssub.s32 %s22, %s34
      %p85 = scmp.eq.s32.totalorder %s84, 0
      %s87 = sadd.s32 %s86, 1
      %s88 = scalar_select %p85, %s86, %s87
      %p91 = pneg %p85
      %p92 = scmp.eq.s32.totalorder %s15, 1
      %p93 = por %p91, %p92
      %p94 = scmp.ne.s32.totalorder %s86, %s89
      %p95 = scmp.eq.s32.totalorder %s15, 0
      %p96 = por %p94, %p95
      %p97 = scmp.ne.s32.totalorder %s86, %s89
      %p98 = scmp.eq.s32.totalorder %s20, 1
      %p99 = por %p97, %p98
      %p100 = scmp.ne.s32.totalorder %s89, %s90
      %p101 = scmp.eq.s32.totalorder %s20, 0
      %p102 = por %p100, %p101
      %p103 = scmp.ne.s32.totalorder %s89, %s90
      %p104 = scmp.eq.s32.totalorder %s21, 1
      %p105 = por %p103, %p104
      %p107 = scmp.ne.s32.totalorder %s90, %s106
      %p108 = scmp.eq.s32.totalorder %s21, 0
      %p109 = por %p107, %p108
      %p110 = scmp.le.s32.totalorder 1, %s15
      %p111 = scmp.lt.s32.totalorder %s15, 3
      %p112 = pnand %p110, %p111
      %p113 = pneg %p112
      // Predicated region
      $region9: #{tpu_custom_call.1} parent=5 // pred_check
        _
      $region10: #{tpu_custom_call.1} parent=5 // pred_check_branch
        %115 = sbr.rel (%p112) target = $region12
      $region11: #{tpu_custom_call.1} parent=5 // pred_region
        %s116 = ssub.s32 %s15, 1
        // Predicated region
        $region13: #{tpu_custom_call.1} parent=11 // pred_check
          %p117 = pneg %p76
        $region14: #{tpu_custom_call.1} parent=11 // pred_check_branch
          %119 = sbr.rel (%p117) target = $region16
        $region15: #{tpu_custom_call.1} parent=11 // pred_region
          %121 = vsyncadd [#allocation9], 0
          %s123 = sshll.u32 %s1, 4
          %s124 = int_to_ptr.hbm [resolvable:$true] %s123
          %126 = dma.hbm_to_smem %s124, 16, [#allocation10], [#allocation9]
        $region16: #{tpu_custom_call.1} parent=11 // pred_fallthru
          _
      $region12: #{tpu_custom_call.1} parent=5 // pred_fallthru
        _
      %p127 = scmp.lt.s32.totalorder %s15, 2
      // Predicated region
      $region17: #{tpu_custom_call.1} parent=5 // pred_check
        %p128 = pneg %p127
      $region18: #{tpu_custom_call.1} parent=5 // pred_check_branch
        %130 = sbr.rel (%p128) target = $region20
      $region19: #{tpu_custom_call.1} parent=5 // pred_region
        // Predicated region
        $region21: #{tpu_custom_call.1} parent=19 // pred_check
          %p131 = pneg %p49
        $region22: #{tpu_custom_call.1} parent=19 // pred_check_branch
          %133 = sbr.rel (%p131) target = $region24
        $region23: #{tpu_custom_call.1} parent=19 // pred_region
          %s134 = sand.u32 %s39, 1
          %s135 = scalar_lea.sflag [#allocation7], %s134
          %s136 = sand.u32 %s39, 1
          %s137 = smul.addr %s136, 8
          %s138 = scalar_lea.vmem [#allocation6], %s137
          %140 = vsyncadd %s135, 0
          %s141 = smul.addr %s23, 2
          %s142 = smul.addr %s22, 2
          %s143 = sadd.s32 %s141, %s142
          %s144 = smul.addr %s143, 4
          %s145 = scalar_lea.hbm %s0, %s144
          %s147 = sshll.u32 %s145, 4
          %s148 = int_to_ptr.hbm [resolvable:$true] %s147
          %s149 = sshll.u32 %s138, 4
          %s150 = int_to_ptr.vmem [resolvable:$true] %s149
          %152 = dma.hbm_to_vmem [thread:$0]  %s148, 128, %s150, %s135
        $region24: #{tpu_custom_call.1} parent=19 // pred_fallthru
          _
      $region20: #{tpu_custom_call.1} parent=5 // pred_fallthru
        _
      %p153 = scmp.le.s32.totalorder 1, %s15
      %p154 = scmp.lt.s32.totalorder %s15, 3
      %p155 = pnand %p153, %p154
      %p156 = pneg %p155
      // Predicated region
      $region25: #{tpu_custom_call.1} parent=5 // pred_check
        _
      $region26: #{tpu_custom_call.1} parent=5 // pred_check_branch
        %158 = sbr.rel (%p155) target = $region28
      $region27: #{tpu_custom_call.1} parent=5 // pred_region
        %s159 = ssub.s32 %s15, 1
        %s160 = sand.u32 %s42, 1
        %s161 = scalar_lea.sflag [#allocation7], %s160
        %s162 = sand.u32 %s42, 1
        %s163 = smul.addr %s162, 8
        %s164 = scalar_lea.vmem [#allocation6], %s163
        // Predicated region
        $region29: #{tpu_custom_call.1} parent=27 // pred_check
          %p165 = pneg %p55
        $region30: #{tpu_custom_call.1} parent=27 // pred_check_branch
          %167 = sbr.rel (%p165) target = $region32
        $region31: #{tpu_custom_call.1} parent=27 // pred_region
          %169 = dma.done %s161, 128
        $region32: #{tpu_custom_call.1} parent=27 // pred_fallthru
          _
        // Predicated region
        $region33: #{tpu_custom_call.1} parent=27 // pred_check
          %p170 = pneg %p76
        $region34: #{tpu_custom_call.1} parent=27 // pred_check_branch
          %172 = sbr.rel (%p170) target = $region36
        $region35: #{tpu_custom_call.1} parent=27 // pred_region
          %174 = dma.done [#allocation9], 16
        $region36: #{tpu_custom_call.1} parent=27 // pred_fallthru
          _
        %175 = sfence
        %s176 = sand.u32 %s42, 1
        %s177 = scalar_lea.sflag [#allocation7], %s176
        %s178 = sand.u32 %s42, 1
        %s179 = smul.addr %s178, 8
        %s180 = scalar_lea.vmem [#allocation6], %s179
        %p181 = pneg %p55
        %p182 = pneg %p52
        %p183 = pneg %p76
        %p184 = pneg %p73
        %p185 = pneg %p102
        %p186 = pneg %p99
        %s187 = sand.u32 %s89, 1
        %s188 = scalar_lea.sflag [#allocation8], %s187
        %s189 = sand.u32 %s89, 1
        %s190 = smul.addr %s189, 16
        %s191 = scalar_lea.vmem [#allocation11], %s190
        %v192 = vld [vmem:[%s164] sm:$0xff]
        %194 = vst [vmem:[#allocation1] ss:$2 sm:$0xff] %v192
        %v195 = vld.sshfl [vmem:[#allocation1] sm:$0xff pattern:$0x75316420]
        %v196 = vld.sshfl [vmem:[#allocation1 + $0x8] sm:$0xff pattern:$0x75316420]
        %vm199 = vcmask 1043456
        %v200 = vsel %vm199, %v195, 0.0
        %v201 = vrot.slane %v200, 4
        %v202 = vadd.f32 %v200, %v201
        %v203 = vrot.slane %v202, 2
        %v204 = vadd.f32 %v202, %v203
        %v205 = vrot.slane %v204, 1
        %v206 = vadd.f32 %v204, %v205
        %v207 = vsel %vm199, %v196, 0.0
        %v208 = vrot.slane %v207, 4
        %v209 = vadd.f32 %v207, %v208
        %v210 = vrot.slane %v209, 2
        %v211 = vadd.f32 %v209, %v210
        %v212 = vrot.slane %v211, 1
        %v213 = vadd.f32 %v211, %v212
        %214 = vst [vmem:[#allocation1] ss:$2 sm:$0xff] %v192
        %v215 = vld.sshfl [vmem:[#allocation1] sm:$0xff pattern:$0x75316420]
        %v216 = vld.sshfl [vmem:[#allocation1 + $0x8] sm:$0xff pattern:$0x75316420]
        %v219 = vsel %vm199, %v215, -inf
        %v220 = vrot.slane %v219, 4
        %v221 = vmax.f32 %v219, %v220
        %v222 = vrot.slane %v221, 2
        %v223 = vmax.f32 %v221, %v222
        %v224 = vrot.slane %v223, 1
        %v225 = vmax.f32 %v223, %v224
        %v226 = vsel %vm199, %v216, -inf
        %v227 = vrot.slane %v226, 4
        %v228 = vmax.f32 %v226, %v227
        %v229 = vrot.slane %v228, 2
        %v230 = vmax.f32 %v228, %v229
        %v231 = vrot.slane %v230, 1
        %v232 = vmax.f32 %v230, %v231
        %p233 = scmp.eq.s32.totalorder %s25, 0
        // Predicated region
        $region37: #{tpu_custom_call.1} parent=27 // pred_check
          %p234 = pneg %p233
        $region38: #{tpu_custom_call.1} parent=27 // pred_check_branch
          %236 = sbr.rel (%p234) target = $region40
        $region39: #{tpu_custom_call.1} parent=27 // pred_region
          %v239 = vrot.slane %v213, 7
          %vm240 = vcmask 1040384
          %v241 = vsel %vm240, %v206, %v239
          %v243 = vlaneseq
          %vm244 = vcmp.ge.s32.totalorder %v243, 0
          %vm245 = vcmp.lt.s32.totalorder %v243, 256
          %vm246 = vmand %vm244, %vm245
          %247 = vst.msk [vmem:[#allocation2] sm:$0x3] %vm246, %v241
          %v250 = vrot.slane %v232, 7
          %v251 = vsel %vm240, %v225, %v250
          %253 = vst.msk [vmem:[#allocation3] sm:$0x3] %vm246, %v251
        $region40: #{tpu_custom_call.1} parent=27 // pred_fallthru
          _
        %p254 = scmp.gt.s32.totalorder %s25, 0
        // Predicated region
        $region41: #{tpu_custom_call.1} parent=27 // pred_check
          %p255 = pneg %p254
        $region42: #{tpu_custom_call.1} parent=27 // pred_check_branch
          %257 = sbr.rel (%p255) target = $region44
        $region43: #{tpu_custom_call.1} parent=27 // pred_region
          %v258 = vld [vmem:[#allocation2] sm:$0x3]
          %v261 = vrot.slane %v213, 7
          %vm262 = vcmask 1040384
          %v263 = vsel %vm262, %v206, %v261
          %v265 = vadd.f32 %v258, %v263
          %v266 = vlaneseq
          %vm267 = vcmp.ge.s32.totalorder %v266, 0
          %vm268 = vcmp.lt.s32.totalorder %v266, 256
          %vm269 = vmand %vm267, %vm268
          %270 = vst.msk [vmem:[#allocation2] sm:$0x3] %vm269, %v265
          %v271 = vld [vmem:[#allocation3] sm:$0x3]
          %v274 = vrot.slane %v232, 7
          %v275 = vsel %vm262, %v225, %v274
          %v277 = vmax.f32 %v271, %v275
          %278 = vst.msk [vmem:[#allocation3] sm:$0x3] %vm269, %v277
        $region44: #{tpu_custom_call.1} parent=27 // pred_fallthru
          _
        // Predicated region
        $region45: #{tpu_custom_call.1} parent=27 // pred_check
          %p279 = pneg %p233
        $region46: #{tpu_custom_call.1} parent=27 // pred_check_branch
          %281 = sbr.rel (%p279) target = $region48
        $region47: #{tpu_custom_call.1} parent=27 // pred_region
          %v282 = vld [vmem:[#allocation2] sm:$0x3]
          %v283 = vmul.f32 %v282, 0.25
          %v284 = vld [vmem:[#allocation3] sm:$0x3]
          %vm285 = vcmask 179200
          %286 = vst.msk [vmem:[#allocation4] sm:$0xff] %vm285, 0.0
          %287 = vst.msk [vmem:[#allocation4 + $0x8] sm:$0xff] %vm285, 0.0
          %vm288 = vcmask 177152
          %289 = vst.msk [vmem:[#allocation4 + $0x10] sm:$0x3f] %vm288, 0.0
          %290 = vst.msk [vmem:[#allocation5] sm:$0xff] %vm285, 0.0
          %291 = vst.msk [vmem:[#allocation5 + $0x8] sm:$0xff] %vm285, 0.0
          %292 = vst.msk [vmem:[#allocation5 + $0x10] sm:$0x3f] %vm288, 0.0
          %v294 = vperm.slane %v283, 0
          %295 = vrot.lane.b32.xlu0 %v294, 3
          %v296 = vpop.permute.xlu0 %295
          %vm298 = vcmask 147480
          %299 = vst.msk [vmem:[#allocation4 + $0x3] sm:$0x1] %vm298, %v296
          %v301 = vperm.slane %v284, 0
          %302 = vrot.lane.b32.xlu0 %v301, 3
          %v303 = vpop.permute.xlu0 %302
          %305 = vst.msk [vmem:[#allocation5 + $0x3] sm:$0x1] %vm298, %v303
          %306 = vrot.lane.b32.xlu0 %v294, 115
          %v307 = vpop.permute.xlu0 %306
          %309 = vst.msk [vmem:[#allocation4 + $0x4] sm:$0x1] %vm298, %v307
          %310 = vrot.lane.b32.xlu0 %v301, 115
          %v311 = vpop.permute.xlu0 %310
          %313 = vst.msk [vmem:[#allocation5 + $0x4] sm:$0x1] %vm298, %v311
          %314 = vrot.lane.b32.xlu0 %v294, 99
          %v315 = vpop.permute.xlu0 %314
          %317 = vst.msk [vmem:[#allocation4 + $0x5] sm:$0x1] %vm298, %v315
          %318 = vrot.lane.b32.xlu0 %v301, 99
          %v319 = vpop.permute.xlu0 %318
          %321 = vst.msk [vmem:[#allocation5 + $0x5] sm:$0x1] %vm298, %v319
          %322 = vrot.lane.b32.xlu0 %v294, 83
          %v323 = vpop.permute.xlu0 %322
          %325 = vst.msk [vmem:[#allocation4 + $0x6] sm:$0x1] %vm298, %v323
          %326 = vrot.lane.b32.xlu0 %v301, 83
          %v327 = vpop.permute.xlu0 %326
          %329 = vst.msk [vmem:[#allocation5 + $0x6] sm:$0x1] %vm298, %v327
          %330 = vrot.lane.b32.xlu0 %v294, 67
          %v331 = vpop.permute.xlu0 %330
          %333 = vst.msk [vmem:[#allocation4 + $0x7] sm:$0x1] %vm298, %v331
          %334 = vrot.lane.b32.xlu0 %v301, 67
          %v335 = vpop.permute.xlu0 %334
          %337 = vst.msk [vmem:[#allocation5 + $0x7] sm:$0x1] %vm298, %v335
          %338 = vrot.lane.b32.xlu0 %v294, 51
          %v339 = vpop.permute.xlu0 %338
          %341 = vst.msk [vmem:[#allocation4 + $0x8] sm:$0x1] %vm298, %v339
          %342 = vrot.lane.b32.xlu0 %v301, 51
          %v343 = vpop.permute.xlu0 %342
          %345 = vst.msk [vmem:[#allocation5 + $0x8] sm:$0x1] %vm298, %v343
          %346 = vrot.lane.b32.xlu0 %v294, 35
          %v347 = vpop.permute.xlu0 %346
          %349 = vst.msk [vmem:[#allocation4 + $0x9] sm:$0x1] %vm298, %v347
          %350 = vrot.lane.b32.xlu0 %v301, 35
          %v351 = vpop.permute.xlu0 %350
          %353 = vst.msk [vmem:[#allocation5 + $0x9] sm:$0x1] %vm298, %v351
          %354 = vrot.lane.b32.xlu0 %v294, 19
          %v355 = vpop.permute.xlu0 %354
          %357 = vst.msk [vmem:[#allocation4 + $0xa] sm:$0x1] %vm298, %v355
          %358 = vrot.lane.b32.xlu0 %v301, 19
          %v359 = vpop.permute.xlu0 %358
          %361 = vst.msk [vmem:[#allocation5 + $0xa] sm:$0x1] %vm298, %v359
          %v362 = vperm.slane %v283, 1
          %363 = vrot.lane.b32.xlu0 %v362, 3
          %v364 = vpop.permute.xlu0 %363
          %366 = vst.msk [vmem:[#allocation4 + $0xb] sm:$0x1] %vm298, %v364
          %v367 = vperm.slane %v284, 1
          %368 = vrot.lane.b32.xlu0 %v367, 3
          %v369 = vpop.permute.xlu0 %368
          %371 = vst.msk [vmem:[#allocation5 + $0xb] sm:$0x1] %vm298, %v369
          %372 = vrot.lane.b32.xlu0 %v362, 115
          %v373 = vpop.permute.xlu0 %372
          %375 = vst.msk [vmem:[#allocation4 + $0xc] sm:$0x1] %vm298, %v373
          %376 = vrot.lane.b32.xlu0 %v367, 115
          %v377 = vpop.permute.xlu0 %376
          %379 = vst.msk [vmem:[#allocation5 + $0xc] sm:$0x1] %vm298, %v377
          %380 = vrot.lane.b32.xlu0 %v362, 99
          %v381 = vpop.permute.xlu0 %380
          %383 = vst.msk [vmem:[#allocation4 + $0xd] sm:$0x1] %vm298, %v381
          %384 = vrot.lane.b32.xlu0 %v367, 99
          %v385 = vpop.permute.xlu0 %384
          %387 = vst.msk [vmem:[#allocation5 + $0xd] sm:$0x1] %vm298, %v385
          %388 = vrot.lane.b32.xlu0 %v362, 83
          %v389 = vpop.permute.xlu0 %388
          %391 = vst.msk [vmem:[#allocation4 + $0xe] sm:$0x1] %vm298, %v389
          %392 = vrot.lane.b32.xlu0 %v367, 83
          %v393 = vpop.permute.xlu0 %392
          %395 = vst.msk [vmem:[#allocation5 + $0xe] sm:$0x1] %vm298, %v393
          %396 = vrot.lane.b32.xlu0 %v362, 67
          %v397 = vpop.permute.xlu0 %396
          %399 = vst.msk [vmem:[#allocation4 + $0xf] sm:$0x1] %vm298, %v397
          %400 = vrot.lane.b32.xlu0 %v367, 67
          %v401 = vpop.permute.xlu0 %400
          %403 = vst.msk [vmem:[#allocation5 + $0xf] sm:$0x1] %vm298, %v401
          %404 = vrot.lane.b32.xlu0 %v362, 51
          %v405 = vpop.permute.xlu0 %404
          %407 = vst.msk [vmem:[#allocation4 + $0x10] sm:$0x1] %vm298, %v405
          %408 = vrot.lane.b32.xlu0 %v367, 51
          %v409 = vpop.permute.xlu0 %408
          %411 = vst.msk [vmem:[#allocation5 + $0x10] sm:$0x1] %vm298, %v409
          %412 = vrot.lane.b32.xlu0 %v362, 35
          %v413 = vpop.permute.xlu0 %412
          %415 = vst.msk [vmem:[#allocation4 + $0x11] sm:$0x1] %vm298, %v413
          %416 = vrot.lane.b32.xlu0 %v367, 35
          %v417 = vpop.permute.xlu0 %416
          %419 = vst.msk [vmem:[#allocation5 + $0x11] sm:$0x1] %vm298, %v417
          %420 = vrot.lane.b32.xlu0 %v362, 19
          %v421 = vpop.permute.xlu0 %420
          %423 = vst.msk [vmem:[#allocation4 + $0x12] sm:$0x1] %vm298, %v421
          %424 = vrot.lane.b32.xlu0 %v367, 19
          %v425 = vpop.permute.xlu0 %424
          %427 = vst.msk [vmem:[#allocation5 + $0x12] sm:$0x1] %vm298, %v425
          %v428 = vld [vmem:[#allocation4] sm:$0xff]
          %v429 = vld [vmem:[#allocation4 + $0x8] sm:$0xff]
          %v430 = vld [vmem:[#allocation4 + $0x10] sm:$0x3f]
          %v431 = vld [vmem:[#allocation5] sm:$0xff]
          %v432 = vld [vmem:[#allocation5 + $0x8] sm:$0xff]
          %v433 = vld [vmem:[#allocation5 + $0x10] sm:$0x3f]
          %s434 = sld [smem:[#allocation10]]
          %s435 = sld [smem:[#allocation10 + $0x31]]
          %v436 = vstv %s434
          %v437 = vmul.f32 %v428, %v436
          %v438 = vmul.f32 %v429, %v436
          %v439 = vadd.f32 %v437, 0.0
          %v440 = vadd.f32 %v438, 0.0
          %v441 = vstv %s435
          %v442 = vmul.f32 %v431, %v441
          %v443 = vmul.f32 %v432, %v441
          %v444 = vadd.f32 %v442, 0.0
          %v445 = vadd.f32 %v443, 0.0
          %s446 = sld [smem:[#allocation10 + $0x7]]
          %s447 = sld [smem:[#allocation10 + $0x38]]
          %v448 = vstv %s446
          %v449 = vmul.f32 %v428, %v448
          %v450 = vmul.f32 %v429, %v448
          %v451 = vmul.f32 %v430, %v448
          %v452 = vadd.f32 %v449, 0.0
          %v453 = vadd.f32 %v450, 0.0
          %v454 = vadd.f32 %v451, 0.0
          %v455 = vstv %s447
          %v456 = vmul.f32 %v431, %v455
          %v457 = vmul.f32 %v432, %v455
          %v458 = vmul.f32 %v433, %v455
          %v459 = vadd.f32 %v456, 0.0
          %v460 = vadd.f32 %v457, 0.0
          %v461 = vadd.f32 %v458, 0.0
          %s462 = sld [smem:[#allocation10 + $0xe]]
          %s463 = sld [smem:[#allocation10 + $0x3f]]
          %v464 = vstv %s462
          %v465 = vmul.f32 %v428, %v464
          %v466 = vmul.f32 %v429, %v464
          %v467 = vmul.f32 %v430, %v464
          %vm471 = vcmask 1045504
          %v472 = vrot.slane %v465, 2
          %v473 = vrot.slane %v466, 2
          %v474 = vsel %vm471, %v472, %v473
          %v475 = vrot.slane %v467, 2
          %v476 = vsel %vm471, %v473, %v475
          %v479 = vadd.f32 %v439, %v474
          %v480 = vadd.f32 %v440, %v476
          %v481 = vstv %s463
          %v482 = vmul.f32 %v431, %v481
          %v483 = vmul.f32 %v432, %v481
          %v484 = vmul.f32 %v433, %v481
          %v488 = vrot.slane %v482, 2
          %v489 = vrot.slane %v483, 2
          %v490 = vsel %vm471, %v488, %v489
          %v491 = vrot.slane %v484, 2
          %v492 = vsel %vm471, %v489, %v491
          %v495 = vadd.f32 %v444, %v490
          %v496 = vadd.f32 %v445, %v492
          %s497 = sld [smem:[#allocation10 + $0x15]]
          %s498 = sld [smem:[#allocation10 + $0x46]]
          %v499 = vstv %s497
          %v500 = vmul.f32 %v428, %v499
          %v501 = vmul.f32 %v429, %v499
          %v502 = vmul.f32 %v430, %v499
          %v506 = vrot.slane %v500, 2
          %v507 = vrot.slane %v501, 2
          %v508 = vsel %vm471, %v506, %v507
          %v509 = vrot.slane %v502, 2
          %v510 = vsel %vm471, %v507, %v509
          %v514 = vadd.f32 %v452, %v508
          %v515 = vadd.f32 %v453, %v510
          %v516 = vadd.f32 %v454, %v509
          %v517 = vstv %s498
          %v518 = vmul.f32 %v431, %v517
          %v519 = vmul.f32 %v432, %v517
          %v520 = vmul.f32 %v433, %v517
          %v524 = vrot.slane %v518, 2
          %v525 = vrot.slane %v519, 2
          %v526 = vsel %vm471, %v524, %v525
          %v527 = vrot.slane %v520, 2
          %v528 = vsel %vm471, %v525, %v527
          %v532 = vadd.f32 %v459, %v526
          %v533 = vadd.f32 %v460, %v528
          %v534 = vadd.f32 %v461, %v527
          %s535 = sld [smem:[#allocation10 + $0x1c]]
          %s536 = sld [smem:[#allocation10 + $0x4d]]
          %v537 = vstv %s535
          %v538 = vmul.f32 %v428, %v537
          %v539 = vmul.f32 %v429, %v537
          %v540 = vmul.f32 %v430, %v537
          %v544 = vrot.slane %v538, 4
          %v545 = vrot.slane %v539, 4
          %v546 = vsel %vm199, %v544, %v545
          %v547 = vrot.slane %v540, 4
          %v548 = vsel %vm199, %v545, %v547
          %v551 = vadd.f32 %v479, %v546
          %v552 = vadd.f32 %v480, %v548
          %v553 = vstv %s536
          %v554 = vmul.f32 %v431, %v553
          %v555 = vmul.f32 %v432, %v553
          %v556 = vmul.f32 %v433, %v553
          %v560 = vrot.slane %v554, 4
          %v561 = vrot.slane %v555, 4
          %v562 = vsel %vm199, %v560, %v561
          %v563 = vrot.slane %v556, 4
          %v564 = vsel %vm199, %v561, %v563
          %v567 = vadd.f32 %v495, %v562
          %v568 = vadd.f32 %v496, %v564
          %s569 = sld [smem:[#allocation10 + $0x23]]
          %s570 = sld [smem:[#allocation10 + $0x54]]
          %v571 = vstv %s569
          %v572 = vmul.f32 %v428, %v571
          %v573 = vmul.f32 %v429, %v571
          %v574 = vmul.f32 %v430, %v571
          %v578 = vrot.slane %v572, 4
          %v579 = vrot.slane %v573, 4
          %v580 = vsel %vm199, %v578, %v579
          %v581 = vrot.slane %v574, 4
          %v582 = vsel %vm199, %v579, %v581
          %v586 = vadd.f32 %v514, %v580
          %v587 = vadd.f32 %v515, %v582
          %v588 = vadd.f32 %v516, %v581
          %v589 = vstv %s570
          %v590 = vmul.f32 %v431, %v589
          %v591 = vmul.f32 %v432, %v589
          %v592 = vmul.f32 %v433, %v589
          %v596 = vrot.slane %v590, 4
          %v597 = vrot.slane %v591, 4
          %v598 = vsel %vm199, %v596, %v597
          %v599 = vrot.slane %v592, 4
          %v600 = vsel %vm199, %v597, %v599
          %v604 = vadd.f32 %v532, %v598
          %v605 = vadd.f32 %v533, %v600
          %v606 = vadd.f32 %v534, %v599
          %s607 = sld [smem:[#allocation10 + $0x2a]]
          %s608 = sld [smem:[#allocation10 + $0x5b]]
          %v609 = vstv %s607
          %v610 = vmul.f32 %v428, %v609
          %v611 = vmul.f32 %v429, %v609
          %v612 = vmul.f32 %v430, %v609
          %vm616 = vcmask 1041408
          %v617 = vrot.slane %v610, 6
          %v618 = vrot.slane %v611, 6
          %v619 = vsel %vm616, %v617, %v618
          %v620 = vrot.slane %v612, 6
          %v621 = vsel %vm616, %v618, %v620
          %v624 = vadd.f32 %v551, %v619
          %v625 = vadd.f32 %v552, %v621
          %v626 = vstv %s608
          %v627 = vmul.f32 %v431, %v626
          %v628 = vmul.f32 %v432, %v626
          %v629 = vmul.f32 %v433, %v626
          %v633 = vrot.slane %v627, 6
          %v634 = vrot.slane %v628, 6
          %v635 = vsel %vm616, %v633, %v634
          %v636 = vrot.slane %v629, 6
          %v637 = vsel %vm616, %v634, %v636
          %v640 = vadd.f32 %v567, %v635
          %v641 = vadd.f32 %v568, %v637
          %s642 = sld [smem:[#allocation10 + $0x1]]
          %s643 = sld [smem:[#allocation10 + $0x32]]
          %v644 = vstv %s642
          %v645 = vmul.f32 %v428, %v644
          %v646 = vmul.f32 %v429, %v644
          %649 = vrot.lane.b32.xlu0 %v645, 127
          %v650 = vpop.permute.xlu0 %649
          %651 = vrot.lane.b32.xlu0 %v646, 127
          %v652 = vpop.permute.xlu0 %651
          %v655 = vadd.f32 %v624, %v650
          %v656 = vadd.f32 %v625, %v652
          %v657 = vstv %s643
          %v658 = vmul.f32 %v431, %v657
          %v659 = vmul.f32 %v432, %v657
          %662 = vrot.lane.b32.xlu0 %v658, 127
          %v663 = vpop.permute.xlu0 %662
          %664 = vrot.lane.b32.xlu0 %v659, 127
          %v665 = vpop.permute.xlu0 %664
          %v668 = vadd.f32 %v640, %v663
          %v669 = vadd.f32 %v641, %v665
          %s670 = sld [smem:[#allocation10 + $0x8]]
          %s671 = sld [smem:[#allocation10 + $0x39]]
          %v672 = vstv %s670
          %v673 = vmul.f32 %v428, %v672
          %v674 = vmul.f32 %v429, %v672
          %v675 = vmul.f32 %v430, %v672
          %679 = vrot.lane.b32.xlu0 %v673, 127
          %v680 = vpop.permute.xlu0 %679
          %681 = vrot.lane.b32.xlu0 %v674, 127
          %v682 = vpop.permute.xlu0 %681
          %683 = vrot.lane.b32.xlu0 %v675, 127
          %v684 = vpop.permute.xlu0 %683
          %v688 = vadd.f32 %v586, %v680
          %v689 = vadd.f32 %v587, %v682
          %v690 = vadd.f32 %v588, %v684
          %v691 = vstv %s671
          %v692 = vmul.f32 %v431, %v691
          %v693 = vmul.f32 %v432, %v691
          %v694 = vmul.f32 %v433, %v691
          %698 = vrot.lane.b32.xlu0 %v692, 127
          %v699 = vpop.permute.xlu0 %698
          %700 = vrot.lane.b32.xlu0 %v693, 127
          %v701 = vpop.permute.xlu0 %700
          %702 = vrot.lane.b32.xlu0 %v694, 127
          %v703 = vpop.permute.xlu0 %702
          %v707 = vadd.f32 %v604, %v699
          %v708 = vadd.f32 %v605, %v701
          %v709 = vadd.f32 %v606, %v703
          %s710 = sld [smem:[#allocation10 + $0xf]]
          %s711 = sld [smem:[#allocation10 + $0x40]]
          %v712 = vstv %s710
          %v713 = vmul.f32 %v428, %v712
          %v714 = vmul.f32 %v429, %v712
          %v715 = vmul.f32 %v430, %v712
          %v719 = vrot.slane %v713, 2
          %v720 = vrot.slane %v714, 2
          %v721 = vsel %vm471, %v719, %v720
          %v722 = vrot.slane %v715, 2
          %v723 = vsel %vm471, %v720, %v722
          %724 = vrot.lane.b32.xlu0 %v721, 127
          %v725 = vpop.permute.xlu0 %724
          %726 = vrot.lane.b32.xlu0 %v723, 127
          %v727 = vpop.permute.xlu0 %726
          %v730 = vadd.f32 %v655, %v725
          %v731 = vadd.f32 %v656, %v727
          %v732 = vstv %s711
          %v733 = vmul.f32 %v431, %v732
          %v734 = vmul.f32 %v432, %v732
          %v735 = vmul.f32 %v433, %v732
          %v739 = vrot.slane %v733, 2
          %v740 = vrot.slane %v734, 2
          %v741 = vsel %vm471, %v739, %v740
          %v742 = vrot.slane %v735, 2
          %v743 = vsel %vm471, %v740, %v742
          %744 = vrot.lane.b32.xlu0 %v741, 127
          %v745 = vpop.permute.xlu0 %744
          %746 = vrot.lane.b32.xlu0 %v743, 127
          %v747 = vpop.permute.xlu0 %746
          %v750 = vadd.f32 %v668, %v745
          %v751 = vadd.f32 %v669, %v747
          %s752 = sld [smem:[#allocation10 + $0x16]]
          %s753 = sld [smem:[#allocation10 + $0x47]]
          %v754 = vstv %s752
          %v755 = vmul.f32 %v428, %v754
          %v756 = vmul.f32 %v429, %v754
          %v757 = vmul.f32 %v430, %v754
          %v761 = vrot.slane %v755, 2
          %v762 = vrot.slane %v756, 2
          %v763 = vsel %vm471, %v761, %v762
          %v764 = vrot.slane %v757, 2
          %v765 = vsel %vm471, %v762, %v764
          %766 = vrot.lane.b32.xlu0 %v763, 127
          %v767 = vpop.permute.xlu0 %766
          %768 = vrot.lane.b32.xlu0 %v765, 127
          %v769 = vpop.permute.xlu0 %768
          %770 = vrot.lane.b32.xlu0 %v764, 127
          %v771 = vpop.permute.xlu0 %770
          %v775 = vadd.f32 %v688, %v767
          %v776 = vadd.f32 %v689, %v769
          %v777 = vadd.f32 %v690, %v771
          %v778 = vstv %s753
          %v779 = vmul.f32 %v431, %v778
          %v780 = vmul.f32 %v432, %v778
          %v781 = vmul.f32 %v433, %v778
          %v785 = vrot.slane %v779, 2
          %v786 = vrot.slane %v780, 2
          %v787 = vsel %vm471, %v785, %v786
          %v788 = vrot.slane %v781, 2
          %v789 = vsel %vm471, %v786, %v788
          %790 = vrot.lane.b32.xlu0 %v787, 127
          %v791 = vpop.permute.xlu0 %790
          %792 = vrot.lane.b32.xlu0 %v789, 127
          %v793 = vpop.permute.xlu0 %792
          %794 = vrot.lane.b32.xlu0 %v788, 127
          %v795 = vpop.permute.xlu0 %794
          %v799 = vadd.f32 %v707, %v791
          %v800 = vadd.f32 %v708, %v793
          %v801 = vadd.f32 %v709, %v795
          %s802 = sld [smem:[#allocation10 + $0x1d]]
          %s803 = sld [smem:[#allocation10 + $0x4e]]
          %v804 = vstv %s802
          %v805 = vmul.f32 %v428, %v804
          %v806 = vmul.f32 %v429, %v804
          %v807 = vmul.f32 %v430, %v804
          %v811 = vrot.slane %v805, 4
          %v812 = vrot.slane %v806, 4
          %v813 = vsel %vm199, %v811, %v812
          %v814 = vrot.slane %v807, 4
          %v815 = vsel %vm199, %v812, %v814
          %816 = vrot.lane.b32.xlu0 %v813, 127
          %v817 = vpop.permute.xlu0 %816
          %818 = vrot.lane.b32.xlu0 %v815, 127
          %v819 = vpop.permute.xlu0 %818
          %v822 = vadd.f32 %v730, %v817
          %v823 = vadd.f32 %v731, %v819
          %v824 = vstv %s803
          %v825 = vmul.f32 %v431, %v824
          %v826 = vmul.f32 %v432, %v824
          %v827 = vmul.f32 %v433, %v824
          %v831 = vrot.slane %v825, 4
          %v832 = vrot.slane %v826, 4
          %v833 = vsel %vm199, %v831, %v832
          %v834 = vrot.slane %v827, 4
          %v835 = vsel %vm199, %v832, %v834
          %836 = vrot.lane.b32.xlu0 %v833, 127
          %v837 = vpop.permute.xlu0 %836
          %838 = vrot.lane.b32.xlu0 %v835, 127
          %v839 = vpop.permute.xlu0 %838
          %v842 = vadd.f32 %v750, %v837
          %v843 = vadd.f32 %v751, %v839
          %s844 = sld [smem:[#allocation10 + $0x24]]
          %s845 = sld [smem:[#allocation10 + $0x55]]
          %v846 = vstv %s844
          %v847 = vmul.f32 %v428, %v846
          %v848 = vmul.f32 %v429, %v846
          %v849 = vmul.f32 %v430, %v846
          %v853 = vrot.slane %v847, 4
          %v854 = vrot.slane %v848, 4
          %v855 = vsel %vm199, %v853, %v854
          %v856 = vrot.slane %v849, 4
          %v857 = vsel %vm199, %v854, %v856
          %858 = vrot.lane.b32.xlu0 %v855, 127
          %v859 = vpop.permute.xlu0 %858
          %860 = vrot.lane.b32.xlu0 %v857, 127
          %v861 = vpop.permute.xlu0 %860
          %862 = vrot.lane.b32.xlu0 %v856, 127
          %v863 = vpop.permute.xlu0 %862
          %v867 = vadd.f32 %v775, %v859
          %v868 = vadd.f32 %v776, %v861
          %v869 = vadd.f32 %v777, %v863
          %v870 = vstv %s845
          %v871 = vmul.f32 %v431, %v870
          %v872 = vmul.f32 %v432, %v870
          %v873 = vmul.f32 %v433, %v870
          %v877 = vrot.slane %v871, 4
          %v878 = vrot.slane %v872, 4
          %v879 = vsel %vm199, %v877, %v878
          %v880 = vrot.slane %v873, 4
          %v881 = vsel %vm199, %v878, %v880
          %882 = vrot.lane.b32.xlu0 %v879, 127
          %v883 = vpop.permute.xlu0 %882
          %884 = vrot.lane.b32.xlu0 %v881, 127
          %v885 = vpop.permute.xlu0 %884
          %886 = vrot.lane.b32.xlu0 %v880, 127
          %v887 = vpop.permute.xlu0 %886
          %v891 = vadd.f32 %v799, %v883
          %v892 = vadd.f32 %v800, %v885
          %v893 = vadd.f32 %v801, %v887
          %s894 = sld [smem:[#allocation10 + $0x2b]]
          %s895 = sld [smem:[#allocation10 + $0x5c]]
          %v896 = vstv %s894
          %v897 = vmul.f32 %v428, %v896
          %v898 = vmul.f32 %v429, %v896
          %v899 = vmul.f32 %v430, %v896
          %v903 = vrot.slane %v897, 6
          %v904 = vrot.slane %v898, 6
          %v905 = vsel %vm616, %v903, %v904
          %v906 = vrot.slane %v899, 6
          %v907 = vsel %vm616, %v904, %v906
          %908 = vrot.lane.b32.xlu0 %v905, 127
          %v909 = vpop.permute.xlu0 %908
          %910 = vrot.lane.b32.xlu0 %v907, 127
          %v911 = vpop.permute.xlu0 %910
          %v914 = vadd.f32 %v822, %v909
          %v915 = vadd.f32 %v823, %v911
          %v916 = vstv %s895
          %v917 = vmul.f32 %v431, %v916
          %v918 = vmul.f32 %v432, %v916
          %v919 = vmul.f32 %v433, %v916
          %v923 = vrot.slane %v917, 6
          %v924 = vrot.slane %v918, 6
          %v925 = vsel %vm616, %v923, %v924
          %v926 = vrot.slane %v919, 6
          %v927 = vsel %vm616, %v924, %v926
          %928 = vrot.lane.b32.xlu0 %v925, 127
          %v929 = vpop.permute.xlu0 %928
          %930 = vrot.lane.b32.xlu0 %v927, 127
          %v931 = vpop.permute.xlu0 %930
          %v934 = vadd.f32 %v842, %v929
          %v935 = vadd.f32 %v843, %v931
          %s936 = sld [smem:[#allocation10 + $0x2]]
          %s937 = sld [smem:[#allocation10 + $0x33]]
          %v938 = vstv %s936
          %v939 = vmul.f32 %v428, %v938
          %v940 = vmul.f32 %v429, %v938
          %943 = vrot.lane.b32.xlu0 %v939, 126
          %v944 = vpop.permute.xlu0 %943
          %945 = vrot.lane.b32.xlu0 %v940, 126
          %v946 = vpop.permute.xlu0 %945
          %v949 = vadd.f32 %v914, %v944
          %v950 = vadd.f32 %v915, %v946
          %v951 = vstv %s937
          %v952 = vmul.f32 %v431, %v951
          %v953 = vmul.f32 %v432, %v951
          %956 = vrot.lane.b32.xlu0 %v952, 126
          %v957 = vpop.permute.xlu0 %956
          %958 = vrot.lane.b32.xlu0 %v953, 126
          %v959 = vpop.permute.xlu0 %958
          %v962 = vadd.f32 %v934, %v957
          %v963 = vadd.f32 %v935, %v959
          %s964 = sld [smem:[#allocation10 + $0x9]]
          %s965 = sld [smem:[#allocation10 + $0x3a]]
          %v966 = vstv %s964
          %v967 = vmul.f32 %v428, %v966
          %v968 = vmul.f32 %v429, %v966
          %v969 = vmul.f32 %v430, %v966
          %973 = vrot.lane.b32.xlu0 %v967, 126
          %v974 = vpop.permute.xlu0 %973
          %975 = vrot.lane.b32.xlu0 %v968, 126
          %v976 = vpop.permute.xlu0 %975
          %977 = vrot.lane.b32.xlu0 %v969, 126
          %v978 = vpop.permute.xlu0 %977
          %v982 = vadd.f32 %v867, %v974
          %v983 = vadd.f32 %v868, %v976
          %v984 = vadd.f32 %v869, %v978
          %v985 = vstv %s965
          %v986 = vmul.f32 %v431, %v985
          %v987 = vmul.f32 %v432, %v985
          %v988 = vmul.f32 %v433, %v985
          %992 = vrot.lane.b32.xlu0 %v986, 126
          %v993 = vpop.permute.xlu0 %992
          %994 = vrot.lane.b32.xlu0 %v987, 126
          %v995 = vpop.permute.xlu0 %994
          %996 = vrot.lane.b32.xlu0 %v988, 126
          %v997 = vpop.permute.xlu0 %996
          %v1001 = vadd.f32 %v891, %v993
          %v1002 = vadd.f32 %v892, %v995
          %v1003 = vadd.f32 %v893, %v997
          %s1004 = sld [smem:[#allocation10 + $0x10]]
          %s1005 = sld [smem:[#allocation10 + $0x41]]
          %v1006 = vstv %s1004
          %v1007 = vmul.f32 %v428, %v1006
          %v1008 = vmul.f32 %v429, %v1006
          %v1009 = vmul.f32 %v430, %v1006
          %v1013 = vrot.slane %v1007, 2
          %v1014 = vrot.slane %v1008, 2
          %v1015 = vsel %vm471, %v1013, %v1014
          %v1016 = vrot.slane %v1009, 2
          %v1017 = vsel %vm471, %v1014, %v1016
          %1018 = vrot.lane.b32.xlu0 %v1015, 126
          %v1019 = vpop.permute.xlu0 %1018
          %1020 = vrot.lane.b32.xlu0 %v1017, 126
          %v1021 = vpop.permute.xlu0 %1020
          %v1024 = vadd.f32 %v949, %v1019
          %v1025 = vadd.f32 %v950, %v1021
          %v1026 = vstv %s1005
          %v1027 = vmul.f32 %v431, %v1026
          %v1028 = vmul.f32 %v432, %v1026
          %v1029 = vmul.f32 %v433, %v1026
          %v1033 = vrot.slane %v1027, 2
          %v1034 = vrot.slane %v1028, 2
          %v1035 = vsel %vm471, %v1033, %v1034
          %v1036 = vrot.slane %v1029, 2
          %v1037 = vsel %vm471, %v1034, %v1036
          %1038 = vrot.lane.b32.xlu0 %v1035, 126
          %v1039 = vpop.permute.xlu0 %1038
          %1040 = vrot.lane.b32.xlu0 %v1037, 126
          %v1041 = vpop.permute.xlu0 %1040
          %v1044 = vadd.f32 %v962, %v1039
          %v1045 = vadd.f32 %v963, %v1041
          %s1046 = sld [smem:[#allocation10 + $0x17]]
          %s1047 = sld [smem:[#allocation10 + $0x48]]
          %v1048 = vstv %s1046
          %v1049 = vmul.f32 %v428, %v1048
          %v1050 = vmul.f32 %v429, %v1048
          %v1051 = vmul.f32 %v430, %v1048
          %v1055 = vrot.slane %v1049, 2
          %v1056 = vrot.slane %v1050, 2
          %v1057 = vsel %vm471, %v1055, %v1056
          %v1058 = vrot.slane %v1051, 2
          %v1059 = vsel %vm471, %v1056, %v1058
          %1060 = vrot.lane.b32.xlu0 %v1057, 126
          %v1061 = vpop.permute.xlu0 %1060
          %1062 = vrot.lane.b32.xlu0 %v1059, 126
          %v1063 = vpop.permute.xlu0 %1062
          %1064 = vrot.lane.b32.xlu0 %v1058, 126
          %v1065 = vpop.permute.xlu0 %1064
          %v1069 = vadd.f32 %v982, %v1061
          %v1070 = vadd.f32 %v983, %v1063
          %v1071 = vadd.f32 %v984, %v1065
          %v1072 = vstv %s1047
          %v1073 = vmul.f32 %v431, %v1072
          %v1074 = vmul.f32 %v432, %v1072
          %v1075 = vmul.f32 %v433, %v1072
          %v1079 = vrot.slane %v1073, 2
          %v1080 = vrot.slane %v1074, 2
          %v1081 = vsel %vm471, %v1079, %v1080
          %v1082 = vrot.slane %v1075, 2
          %v1083 = vsel %vm471, %v1080, %v1082
          %1084 = vrot.lane.b32.xlu0 %v1081, 126
          %v1085 = vpop.permute.xlu0 %1084
          %1086 = vrot.lane.b32.xlu0 %v1083, 126
          %v1087 = vpop.permute.xlu0 %1086
          %1088 = vrot.lane.b32.xlu0 %v1082, 126
          %v1089 = vpop.permute.xlu0 %1088
          %v1093 = vadd.f32 %v1001, %v1085
          %v1094 = vadd.f32 %v1002, %v1087
          %v1095 = vadd.f32 %v1003, %v1089
          %s1096 = sld [smem:[#allocation10 + $0x1e]]
          %s1097 = sld [smem:[#allocation10 + $0x4f]]
          %v1098 = vstv %s1096
          %v1099 = vmul.f32 %v428, %v1098
          %v1100 = vmul.f32 %v429, %v1098
          %v1101 = vmul.f32 %v430, %v1098
          %v1105 = vrot.slane %v1099, 4
          %v1106 = vrot.slane %v1100, 4
          %v1107 = vsel %vm199, %v1105, %v1106
          %v1108 = vrot.slane %v1101, 4
          %v1109 = vsel %vm199, %v1106, %v1108
          %1110 = vrot.lane.b32.xlu0 %v1107, 126
          %v1111 = vpop.permute.xlu0 %1110
          %1112 = vrot.lane.b32.xlu0 %v1109, 126
          %v1113 = vpop.permute.xlu0 %1112
          %v1116 = vadd.f32 %v1024, %v1111
          %v1117 = vadd.f32 %v1025, %v1113
          %v1118 = vstv %s1097
          %v1119 = vmul.f32 %v431, %v1118
          %v1120 = vmul.f32 %v432, %v1118
          %v1121 = vmul.f32 %v433, %v1118
          %v1125 = vrot.slane %v1119, 4
          %v1126 = vrot.slane %v1120, 4
          %v1127 = vsel %vm199, %v1125, %v1126
          %v1128 = vrot.slane %v1121, 4
          %v1129 = vsel %vm199, %v1126, %v1128
          %1130 = vrot.lane.b32.xlu0 %v1127, 126
          %v1131 = vpop.permute.xlu0 %1130
          %1132 = vrot.lane.b32.xlu0 %v1129, 126
          %v1133 = vpop.permute.xlu0 %1132
          %v1136 = vadd.f32 %v1044, %v1131
          %v1137 = vadd.f32 %v1045, %v1133
          %s1138 = sld [smem:[#allocation10 + $0x25]]
          %s1139 = sld [smem:[#allocation10 + $0x56]]
          %v1140 = vstv %s1138
          %v1141 = vmul.f32 %v428, %v1140
          %v1142 = vmul.f32 %v429, %v1140
          %v1143 = vmul.f32 %v430, %v1140
          %v1147 = vrot.slane %v1141, 4
          %v1148 = vrot.slane %v1142, 4
          %v1149 = vsel %vm199, %v1147, %v1148
          %v1150 = vrot.slane %v1143, 4
          %v1151 = vsel %vm199, %v1148, %v1150
          %1152 = vrot.lane.b32.xlu0 %v1149, 126
          %v1153 = vpop.permute.xlu0 %1152
          %1154 = vrot.lane.b32.xlu0 %v1151, 126
          %v1155 = vpop.permute.xlu0 %1154
          %1156 = vrot.lane.b32.xlu0 %v1150, 126
          %v1157 = vpop.permute.xlu0 %1156
          %v1161 = vadd.f32 %v1069, %v1153
          %v1162 = vadd.f32 %v1070, %v1155
          %v1163 = vadd.f32 %v1071, %v1157
          %v1164 = vstv %s1139
          %v1165 = vmul.f32 %v431, %v1164
          %v1166 = vmul.f32 %v432, %v1164
          %v1167 = vmul.f32 %v433, %v1164
          %v1171 = vrot.slane %v1165, 4
          %v1172 = vrot.slane %v1166, 4
          %v1173 = vsel %vm199, %v1171, %v1172
          %v1174 = vrot.slane %v1167, 4
          %v1175 = vsel %vm199, %v1172, %v1174
          %1176 = vrot.lane.b32.xlu0 %v1173, 126
          %v1177 = vpop.permute.xlu0 %1176
          %1178 = vrot.lane.b32.xlu0 %v1175, 126
          %v1179 = vpop.permute.xlu0 %1178
          %1180 = vrot.lane.b32.xlu0 %v1174, 126
          %v1181 = vpop.permute.xlu0 %1180
          %v1185 = vadd.f32 %v1093, %v1177
          %v1186 = vadd.f32 %v1094, %v1179
          %v1187 = vadd.f32 %v1095, %v1181
          %s1188 = sld [smem:[#allocation10 + $0x2c]]
          %s1189 = sld [smem:[#allocation10 + $0x5d]]
          %v1190 = vstv %s1188
          %v1191 = vmul.f32 %v428, %v1190
          %v1192 = vmul.f32 %v429, %v1190
          %v1193 = vmul.f32 %v430, %v1190
          %v1197 = vrot.slane %v1191, 6
          %v1198 = vrot.slane %v1192, 6
          %v1199 = vsel %vm616, %v1197, %v1198
          %v1200 = vrot.slane %v1193, 6
          %v1201 = vsel %vm616, %v1198, %v1200
          %1202 = vrot.lane.b32.xlu0 %v1199, 126
          %v1203 = vpop.permute.xlu0 %1202
          %1204 = vrot.lane.b32.xlu0 %v1201, 126
          %v1205 = vpop.permute.xlu0 %1204
          %v1208 = vadd.f32 %v1116, %v1203
          %v1209 = vadd.f32 %v1117, %v1205
          %v1210 = vstv %s1189
          %v1211 = vmul.f32 %v431, %v1210
          %v1212 = vmul.f32 %v432, %v1210
          %v1213 = vmul.f32 %v433, %v1210
          %v1217 = vrot.slane %v1211, 6
          %v1218 = vrot.slane %v1212, 6
          %v1219 = vsel %vm616, %v1217, %v1218
          %v1220 = vrot.slane %v1213, 6
          %v1221 = vsel %vm616, %v1218, %v1220
          %1222 = vrot.lane.b32.xlu0 %v1219, 126
          %v1223 = vpop.permute.xlu0 %1222
          %1224 = vrot.lane.b32.xlu0 %v1221, 126
          %v1225 = vpop.permute.xlu0 %1224
          %v1228 = vadd.f32 %v1136, %v1223
          %v1229 = vadd.f32 %v1137, %v1225
          %s1230 = sld [smem:[#allocation10 + $0x3]]
          %s1231 = sld [smem:[#allocation10 + $0x34]]
          %v1232 = vstv %s1230
          %v1233 = vmul.f32 %v428, %v1232
          %v1234 = vmul.f32 %v429, %v1232
          %1237 = vrot.lane.b32.xlu0 %v1233, 125
          %v1238 = vpop.permute.xlu0 %1237
          %1239 = vrot.lane.b32.xlu0 %v1234, 125
          %v1240 = vpop.permute.xlu0 %1239
          %v1243 = vadd.f32 %v1208, %v1238
          %v1244 = vadd.f32 %v1209, %v1240
          %v1245 = vstv %s1231
          %v1246 = vmul.f32 %v431, %v1245
          %v1247 = vmul.f32 %v432, %v1245
          %1250 = vrot.lane.b32.xlu0 %v1246, 125
          %v1251 = vpop.permute.xlu0 %1250
          %1252 = vrot.lane.b32.xlu0 %v1247, 125
          %v1253 = vpop.permute.xlu0 %1252
          %v1256 = vadd.f32 %v1228, %v1251
          %v1257 = vadd.f32 %v1229, %v1253
          %s1258 = sld [smem:[#allocation10 + $0xa]]
          %s1259 = sld [smem:[#allocation10 + $0x3b]]
          %v1260 = vstv %s1258
          %v1261 = vmul.f32 %v428, %v1260
          %v1262 = vmul.f32 %v429, %v1260
          %v1263 = vmul.f32 %v430, %v1260
          %1267 = vrot.lane.b32.xlu0 %v1261, 125
          %v1268 = vpop.permute.xlu0 %1267
          %1269 = vrot.lane.b32.xlu0 %v1262, 125
          %v1270 = vpop.permute.xlu0 %1269
          %1271 = vrot.lane.b32.xlu0 %v1263, 125
          %v1272 = vpop.permute.xlu0 %1271
          %v1276 = vadd.f32 %v1161, %v1268
          %v1277 = vadd.f32 %v1162, %v1270
          %v1278 = vadd.f32 %v1163, %v1272
          %v1279 = vstv %s1259
          %v1280 = vmul.f32 %v431, %v1279
          %v1281 = vmul.f32 %v432, %v1279
          %v1282 = vmul.f32 %v433, %v1279
          %1286 = vrot.lane.b32.xlu0 %v1280, 125
          %v1287 = vpop.permute.xlu0 %1286
          %1288 = vrot.lane.b32.xlu0 %v1281, 125
          %v1289 = vpop.permute.xlu0 %1288
          %1290 = vrot.lane.b32.xlu0 %v1282, 125
          %v1291 = vpop.permute.xlu0 %1290
          %v1295 = vadd.f32 %v1185, %v1287
          %v1296 = vadd.f32 %v1186, %v1289
          %v1297 = vadd.f32 %v1187, %v1291
          %s1298 = sld [smem:[#allocation10 + $0x11]]
          %s1299 = sld [smem:[#allocation10 + $0x42]]
          %v1300 = vstv %s1298
          %v1301 = vmul.f32 %v428, %v1300
          %v1302 = vmul.f32 %v429, %v1300
          %v1303 = vmul.f32 %v430, %v1300
          %v1307 = vrot.slane %v1301, 2
          %v1308 = vrot.slane %v1302, 2
          %v1309 = vsel %vm471, %v1307, %v1308
          %v1310 = vrot.slane %v1303, 2
          %v1311 = vsel %vm471, %v1308, %v1310
          %1312 = vrot.lane.b32.xlu0 %v1309, 125
          %v1313 = vpop.permute.xlu0 %1312
          %1314 = vrot.lane.b32.xlu0 %v1311, 125
          %v1315 = vpop.permute.xlu0 %1314
          %v1318 = vadd.f32 %v1243, %v1313
          %v1319 = vadd.f32 %v1244, %v1315
          %v1320 = vstv %s1299
          %v1321 = vmul.f32 %v431, %v1320
          %v1322 = vmul.f32 %v432, %v1320
          %v1323 = vmul.f32 %v433, %v1320
          %v1327 = vrot.slane %v1321, 2
          %v1328 = vrot.slane %v1322, 2
          %v1329 = vsel %vm471, %v1327, %v1328
          %v1330 = vrot.slane %v1323, 2
          %v1331 = vsel %vm471, %v1328, %v1330
          %1332 = vrot.lane.b32.xlu0 %v1329, 125
          %v1333 = vpop.permute.xlu0 %1332
          %1334 = vrot.lane.b32.xlu0 %v1331, 125
          %v1335 = vpop.permute.xlu0 %1334
          %v1338 = vadd.f32 %v1256, %v1333
          %v1339 = vadd.f32 %v1257, %v1335
          %s1340 = sld [smem:[#allocation10 + $0x18]]
          %s1341 = sld [smem:[#allocation10 + $0x49]]
          %v1342 = vstv %s1340
          %v1343 = vmul.f32 %v428, %v1342
          %v1344 = vmul.f32 %v429, %v1342
          %v1345 = vmul.f32 %v430, %v1342
          %v1349 = vrot.slane %v1343, 2
          %v1350 = vrot.slane %v1344, 2
          %v1351 = vsel %vm471, %v1349, %v1350
          %v1352 = vrot.slane %v1345, 2
          %v1353 = vsel %vm471, %v1350, %v1352
          %1354 = vrot.lane.b32.xlu0 %v1351, 125
          %v1355 = vpop.permute.xlu0 %1354
          %1356 = vrot.lane.b32.xlu0 %v1353, 125
          %v1357 = vpop.permute.xlu0 %1356
          %1358 = vrot.lane.b32.xlu0 %v1352, 125
          %v1359 = vpop.permute.xlu0 %1358
          %v1363 = vadd.f32 %v1276, %v1355
          %v1364 = vadd.f32 %v1277, %v1357
          %v1365 = vadd.f32 %v1278, %v1359
          %v1366 = vstv %s1341
          %v1367 = vmul.f32 %v431, %v1366
          %v1368 = vmul.f32 %v432, %v1366
          %v1369 = vmul.f32 %v433, %v1366
          %v1373 = vrot.slane %v1367, 2
          %v1374 = vrot.slane %v1368, 2
          %v1375 = vsel %vm471, %v1373, %v1374
          %v1376 = vrot.slane %v1369, 2
          %v1377 = vsel %vm471, %v1374, %v1376
          %1378 = vrot.lane.b32.xlu0 %v1375, 125
          %v1379 = vpop.permute.xlu0 %1378
          %1380 = vrot.lane.b32.xlu0 %v1377, 125
          %v1381 = vpop.permute.xlu0 %1380
          %1382 = vrot.lane.b32.xlu0 %v1376, 125
          %v1383 = vpop.permute.xlu0 %1382
          %v1387 = vadd.f32 %v1295, %v1379
          %v1388 = vadd.f32 %v1296, %v1381
          %v1389 = vadd.f32 %v1297, %v1383
          %s1390 = sld [smem:[#allocation10 + $0x1f]]
          %s1391 = sld [smem:[#allocation10 + $0x50]]
          %v1392 = vstv %s1390
          %v1393 = vmul.f32 %v428, %v1392
          %v1394 = vmul.f32 %v429, %v1392
          %v1395 = vmul.f32 %v430, %v1392
          %v1399 = vrot.slane %v1393, 4
          %v1400 = vrot.slane %v1394, 4
          %v1401 = vsel %vm199, %v1399, %v1400
          %v1402 = vrot.slane %v1395, 4
          %v1403 = vsel %vm199, %v1400, %v1402
          %1404 = vrot.lane.b32.xlu0 %v1401, 125
          %v1405 = vpop.permute.xlu0 %1404
          %1406 = vrot.lane.b32.xlu0 %v1403, 125
          %v1407 = vpop.permute.xlu0 %1406
          %v1410 = vadd.f32 %v1318, %v1405
          %v1411 = vadd.f32 %v1319, %v1407
          %v1412 = vstv %s1391
          %v1413 = vmul.f32 %v431, %v1412
          %v1414 = vmul.f32 %v432, %v1412
          %v1415 = vmul.f32 %v433, %v1412
          %v1419 = vrot.slane %v1413, 4
          %v1420 = vrot.slane %v1414, 4
          %v1421 = vsel %vm199, %v1419, %v1420
          %v1422 = vrot.slane %v1415, 4
          %v1423 = vsel %vm199, %v1420, %v1422
          %1424 = vrot.lane.b32.xlu0 %v1421, 125
          %v1425 = vpop.permute.xlu0 %1424
          %1426 = vrot.lane.b32.xlu0 %v1423, 125
          %v1427 = vpop.permute.xlu0 %1426
          %v1430 = vadd.f32 %v1338, %v1425
          %v1431 = vadd.f32 %v1339, %v1427
          %s1432 = sld [smem:[#allocation10 + $0x26]]
          %s1433 = sld [smem:[#allocation10 + $0x57]]
          %v1434 = vstv %s1432
          %v1435 = vmul.f32 %v428, %v1434
          %v1436 = vmul.f32 %v429, %v1434
          %v1437 = vmul.f32 %v430, %v1434
          %v1441 = vrot.slane %v1435, 4
          %v1442 = vrot.slane %v1436, 4
          %v1443 = vsel %vm199, %v1441, %v1442
          %v1444 = vrot.slane %v1437, 4
          %v1445 = vsel %vm199, %v1442, %v1444
          %1446 = vrot.lane.b32.xlu0 %v1443, 125
          %v1447 = vpop.permute.xlu0 %1446
          %1448 = vrot.lane.b32.xlu0 %v1445, 125
          %v1449 = vpop.permute.xlu0 %1448
          %1450 = vrot.lane.b32.xlu0 %v1444, 125
          %v1451 = vpop.permute.xlu0 %1450
          %v1455 = vadd.f32 %v1363, %v1447
          %v1456 = vadd.f32 %v1364, %v1449
          %v1457 = vadd.f32 %v1365, %v1451
          %v1458 = vstv %s1433
          %v1459 = vmul.f32 %v431, %v1458
          %v1460 = vmul.f32 %v432, %v1458
          %v1461 = vmul.f32 %v433, %v1458
          %v1465 = vrot.slane %v1459, 4
          %v1466 = vrot.slane %v1460, 4
          %v1467 = vsel %vm199, %v1465, %v1466
          %v1468 = vrot.slane %v1461, 4
          %v1469 = vsel %vm199, %v1466, %v1468
          %1470 = vrot.lane.b32.xlu0 %v1467, 125
          %v1471 = vpop.permute.xlu0 %1470
          %1472 = vrot.lane.b32.xlu0 %v1469, 125
          %v1473 = vpop.permute.xlu0 %1472
          %1474 = vrot.lane.b32.xlu0 %v1468, 125
          %v1475 = vpop.permute.xlu0 %1474
          %v1479 = vadd.f32 %v1387, %v1471
          %v1480 = vadd.f32 %v1388, %v1473
          %v1481 = vadd.f32 %v1389, %v1475
          %s1482 = sld [smem:[#allocation10 + $0x2d]]
          %s1483 = sld [smem:[#allocation10 + $0x5e]]
          %v1484 = vstv %s1482
          %v1485 = vmul.f32 %v428, %v1484
          %v1486 = vmul.f32 %v429, %v1484
          %v1487 = vmul.f32 %v430, %v1484
          %v1491 = vrot.slane %v1485, 6
          %v1492 = vrot.slane %v1486, 6
          %v1493 = vsel %vm616, %v1491, %v1492
          %v1494 = vrot.slane %v1487, 6
          %v1495 = vsel %vm616, %v1492, %v1494
          %1496 = vrot.lane.b32.xlu0 %v1493, 125
          %v1497 = vpop.permute.xlu0 %1496
          %1498 = vrot.lane.b32.xlu0 %v1495, 125
          %v1499 = vpop.permute.xlu0 %1498
          %v1502 = vadd.f32 %v1410, %v1497
          %v1503 = vadd.f32 %v1411, %v1499
          %v1504 = vstv %s1483
          %v1505 = vmul.f32 %v431, %v1504
          %v1506 = vmul.f32 %v432, %v1504
          %v1507 = vmul.f32 %v433, %v1504
          %v1511 = vrot.slane %v1505, 6
          %v1512 = vrot.slane %v1506, 6
          %v1513 = vsel %vm616, %v1511, %v1512
          %v1514 = vrot.slane %v1507, 6
          %v1515 = vsel %vm616, %v1512, %v1514
          %1516 = vrot.lane.b32.xlu0 %v1513, 125
          %v1517 = vpop.permute.xlu0 %1516
          %1518 = vrot.lane.b32.xlu0 %v1515, 125
          %v1519 = vpop.permute.xlu0 %1518
          %v1522 = vadd.f32 %v1430, %v1517
          %v1523 = vadd.f32 %v1431, %v1519
          %s1524 = sld [smem:[#allocation10 + $0x4]]
          %s1525 = sld [smem:[#allocation10 + $0x35]]
          %v1526 = vstv %s1524
          %v1527 = vmul.f32 %v428, %v1526
          %v1528 = vmul.f32 %v429, %v1526
          %1531 = vrot.lane.b32.xlu0 %v1527, 124
          %v1532 = vpop.permute.xlu0 %1531
          %1533 = vrot.lane.b32.xlu0 %v1528, 124
          %v1534 = vpop.permute.xlu0 %1533
          %v1537 = vadd.f32 %v1502, %v1532
          %v1538 = vadd.f32 %v1503, %v1534
          %v1539 = vstv %s1525
          %v1540 = vmul.f32 %v431, %v1539
          %v1541 = vmul.f32 %v432, %v1539
          %1544 = vrot.lane.b32.xlu0 %v1540, 124
          %v1545 = vpop.permute.xlu0 %1544
          %1546 = vrot.lane.b32.xlu0 %v1541, 124
          %v1547 = vpop.permute.xlu0 %1546
          %v1550 = vadd.f32 %v1522, %v1545
          %v1551 = vadd.f32 %v1523, %v1547
          %s1552 = sld [smem:[#allocation10 + $0xb]]
          %s1553 = sld [smem:[#allocation10 + $0x3c]]
          %v1554 = vstv %s1552
          %v1555 = vmul.f32 %v428, %v1554
          %v1556 = vmul.f32 %v429, %v1554
          %v1557 = vmul.f32 %v430, %v1554
          %1561 = vrot.lane.b32.xlu0 %v1555, 124
          %v1562 = vpop.permute.xlu0 %1561
          %1563 = vrot.lane.b32.xlu0 %v1556, 124
          %v1564 = vpop.permute.xlu0 %1563
          %1565 = vrot.lane.b32.xlu0 %v1557, 124
          %v1566 = vpop.permute.xlu0 %1565
          %v1570 = vadd.f32 %v1455, %v1562
          %v1571 = vadd.f32 %v1456, %v1564
          %v1572 = vadd.f32 %v1457, %v1566
          %v1573 = vstv %s1553
          %v1574 = vmul.f32 %v431, %v1573
          %v1575 = vmul.f32 %v432, %v1573
          %v1576 = vmul.f32 %v433, %v1573
          %1580 = vrot.lane.b32.xlu0 %v1574, 124
          %v1581 = vpop.permute.xlu0 %1580
          %1582 = vrot.lane.b32.xlu0 %v1575, 124
          %v1583 = vpop.permute.xlu0 %1582
          %1584 = vrot.lane.b32.xlu0 %v1576, 124
          %v1585 = vpop.permute.xlu0 %1584
          %v1589 = vadd.f32 %v1479, %v1581
          %v1590 = vadd.f32 %v1480, %v1583
          %v1591 = vadd.f32 %v1481, %v1585
          %s1592 = sld [smem:[#allocation10 + $0x12]]
          %s1593 = sld [smem:[#allocation10 + $0x43]]
          %v1594 = vstv %s1592
          %v1595 = vmul.f32 %v428, %v1594
          %v1596 = vmul.f32 %v429, %v1594
          %v1597 = vmul.f32 %v430, %v1594
          %v1601 = vrot.slane %v1595, 2
          %v1602 = vrot.slane %v1596, 2
          %v1603 = vsel %vm471, %v1601, %v1602
          %v1604 = vrot.slane %v1597, 2
          %v1605 = vsel %vm471, %v1602, %v1604
          %1606 = vrot.lane.b32.xlu0 %v1603, 124
          %v1607 = vpop.permute.xlu0 %1606
          %1608 = vrot.lane.b32.xlu0 %v1605, 124
          %v1609 = vpop.permute.xlu0 %1608
          %v1612 = vadd.f32 %v1537, %v1607
          %v1613 = vadd.f32 %v1538, %v1609
          %v1614 = vstv %s1593
          %v1615 = vmul.f32 %v431, %v1614
          %v1616 = vmul.f32 %v432, %v1614
          %v1617 = vmul.f32 %v433, %v1614
          %v1621 = vrot.slane %v1615, 2
          %v1622 = vrot.slane %v1616, 2
          %v1623 = vsel %vm471, %v1621, %v1622
          %v1624 = vrot.slane %v1617, 2
          %v1625 = vsel %vm471, %v1622, %v1624
          %1626 = vrot.lane.b32.xlu0 %v1623, 124
          %v1627 = vpop.permute.xlu0 %1626
          %1628 = vrot.lane.b32.xlu0 %v1625, 124
          %v1629 = vpop.permute.xlu0 %1628
          %v1632 = vadd.f32 %v1550, %v1627
          %v1633 = vadd.f32 %v1551, %v1629
          %s1634 = sld [smem:[#allocation10 + $0x19]]
          %s1635 = sld [smem:[#allocation10 + $0x4a]]
          %v1636 = vstv %s1634
          %v1637 = vmul.f32 %v428, %v1636
          %v1638 = vmul.f32 %v429, %v1636
          %v1639 = vmul.f32 %v430, %v1636
          %v1643 = vrot.slane %v1637, 2
          %v1644 = vrot.slane %v1638, 2
          %v1645 = vsel %vm471, %v1643, %v1644
          %v1646 = vrot.slane %v1639, 2
          %v1647 = vsel %vm471, %v1644, %v1646
          %1648 = vrot.lane.b32.xlu0 %v1645, 124
          %v1649 = vpop.permute.xlu0 %1648
          %1650 = vrot.lane.b32.xlu0 %v1647, 124
          %v1651 = vpop.permute.xlu0 %1650
          %1652 = vrot.lane.b32.xlu0 %v1646, 124
          %v1653 = vpop.permute.xlu0 %1652
          %v1657 = vadd.f32 %v1570, %v1649
          %v1658 = vadd.f32 %v1571, %v1651
          %v1659 = vadd.f32 %v1572, %v1653
          %v1660 = vstv %s1635
          %v1661 = vmul.f32 %v431, %v1660
          %v1662 = vmul.f32 %v432, %v1660
          %v1663 = vmul.f32 %v433, %v1660
          %v1667 = vrot.slane %v1661, 2
          %v1668 = vrot.slane %v1662, 2
          %v1669 = vsel %vm471, %v1667, %v1668
          %v1670 = vrot.slane %v1663, 2
          %v1671 = vsel %vm471, %v1668, %v1670
          %1672 = vrot.lane.b32.xlu0 %v1669, 124
          %v1673 = vpop.permute.xlu0 %1672
          %1674 = vrot.lane.b32.xlu0 %v1671, 124
          %v1675 = vpop.permute.xlu0 %1674
          %1676 = vrot.lane.b32.xlu0 %v1670, 124
          %v1677 = vpop.permute.xlu0 %1676
          %v1681 = vadd.f32 %v1589, %v1673
          %v1682 = vadd.f32 %v1590, %v1675
          %v1683 = vadd.f32 %v1591, %v1677
          %s1684 = sld [smem:[#allocation10 + $0x20]]
          %s1685 = sld [smem:[#allocation10 + $0x51]]
          %v1686 = vstv %s1684
          %v1687 = vmul.f32 %v428, %v1686
          %v1688 = vmul.f32 %v429, %v1686
          %v1689 = vmul.f32 %v430, %v1686
          %v1693 = vrot.slane %v1687, 4
          %v1694 = vrot.slane %v1688, 4
          %v1695 = vsel %vm199, %v1693, %v1694
          %v1696 = vrot.slane %v1689, 4
          %v1697 = vsel %vm199, %v1694, %v1696
          %1698 = vrot.lane.b32.xlu0 %v1695, 124
          %v1699 = vpop.permute.xlu0 %1698
          %1700 = vrot.lane.b32.xlu0 %v1697, 124
          %v1701 = vpop.permute.xlu0 %1700
          %v1704 = vadd.f32 %v1612, %v1699
          %v1705 = vadd.f32 %v1613, %v1701
          %v1706 = vstv %s1685
          %v1707 = vmul.f32 %v431, %v1706
          %v1708 = vmul.f32 %v432, %v1706
          %v1709 = vmul.f32 %v433, %v1706
          %v1713 = vrot.slane %v1707, 4
          %v1714 = vrot.slane %v1708, 4
          %v1715 = vsel %vm199, %v1713, %v1714
          %v1716 = vrot.slane %v1709, 4
          %v1717 = vsel %vm199, %v1714, %v1716
          %1718 = vrot.lane.b32.xlu0 %v1715, 124
          %v1719 = vpop.permute.xlu0 %1718
          %1720 = vrot.lane.b32.xlu0 %v1717, 124
          %v1721 = vpop.permute.xlu0 %1720
          %v1724 = vadd.f32 %v1632, %v1719
          %v1725 = vadd.f32 %v1633, %v1721
          %s1726 = sld [smem:[#allocation10 + $0x27]]
          %s1727 = sld [smem:[#allocation10 + $0x58]]
          %v1728 = vstv %s1726
          %v1729 = vmul.f32 %v428, %v1728
          %v1730 = vmul.f32 %v429, %v1728
          %v1731 = vmul.f32 %v430, %v1728
          %v1735 = vrot.slane %v1729, 4
          %v1736 = vrot.slane %v1730, 4
          %v1737 = vsel %vm199, %v1735, %v1736
          %v1738 = vrot.slane %v1731, 4
          %v1739 = vsel %vm199, %v1736, %v1738
          %1740 = vrot.lane.b32.xlu0 %v1737, 124
          %v1741 = vpop.permute.xlu0 %1740
          %1742 = vrot.lane.b32.xlu0 %v1739, 124
          %v1743 = vpop.permute.xlu0 %1742
          %1744 = vrot.lane.b32.xlu0 %v1738, 124
          %v1745 = vpop.permute.xlu0 %1744
          %v1749 = vadd.f32 %v1657, %v1741
          %v1750 = vadd.f32 %v1658, %v1743
          %v1751 = vadd.f32 %v1659, %v1745
          %v1752 = vstv %s1727
          %v1753 = vmul.f32 %v431, %v1752
          %v1754 = vmul.f32 %v432, %v1752
          %v1755 = vmul.f32 %v433, %v1752
          %v1759 = vrot.slane %v1753, 4
          %v1760 = vrot.slane %v1754, 4
          %v1761 = vsel %vm199, %v1759, %v1760
          %v1762 = vrot.slane %v1755, 4
          %v1763 = vsel %vm199, %v1760, %v1762
          %1764 = vrot.lane.b32.xlu0 %v1761, 124
          %v1765 = vpop.permute.xlu0 %1764
          %1766 = vrot.lane.b32.xlu0 %v1763, 124
          %v1767 = vpop.permute.xlu0 %1766
          %1768 = vrot.lane.b32.xlu0 %v1762, 124
          %v1769 = vpop.permute.xlu0 %1768
          %v1773 = vadd.f32 %v1681, %v1765
          %v1774 = vadd.f32 %v1682, %v1767
          %v1775 = vadd.f32 %v1683, %v1769
          %s1776 = sld [smem:[#allocation10 + $0x2e]]
          %s1777 = sld [smem:[#allocation10 + $0x5f]]
          %v1778 = vstv %s1776
          %v1779 = vmul.f32 %v428, %v1778
          %v1780 = vmul.f32 %v429, %v1778
          %v1781 = vmul.f32 %v430, %v1778
          %v1785 = vrot.slane %v1779, 6
          %v1786 = vrot.slane %v1780, 6
          %v1787 = vsel %vm616, %v1785, %v1786
          %v1788 = vrot.slane %v1781, 6
          %v1789 = vsel %vm616, %v1786, %v1788
          %1790 = vrot.lane.b32.xlu0 %v1787, 124
          %v1791 = vpop.permute.xlu0 %1790
          %1792 = vrot.lane.b32.xlu0 %v1789, 124
          %v1793 = vpop.permute.xlu0 %1792
          %v1796 = vadd.f32 %v1704, %v1791
          %v1797 = vadd.f32 %v1705, %v1793
          %v1798 = vstv %s1777
          %v1799 = vmul.f32 %v431, %v1798
          %v1800 = vmul.f32 %v432, %v1798
          %v1801 = vmul.f32 %v433, %v1798
          %v1805 = vrot.slane %v1799, 6
          %v1806 = vrot.slane %v1800, 6
          %v1807 = vsel %vm616, %v1805, %v1806
          %v1808 = vrot.slane %v1801, 6
          %v1809 = vsel %vm616, %v1806, %v1808
          %1810 = vrot.lane.b32.xlu0 %v1807, 124
          %v1811 = vpop.permute.xlu0 %1810
          %1812 = vrot.lane.b32.xlu0 %v1809, 124
          %v1813 = vpop.permute.xlu0 %1812
          %v1816 = vadd.f32 %v1724, %v1811
          %v1817 = vadd.f32 %v1725, %v1813
          %s1818 = sld [smem:[#allocation10 + $0x5]]
          %s1819 = sld [smem:[#allocation10 + $0x36]]
          %v1820 = vstv %s1818
          %v1821 = vmul.f32 %v428, %v1820
          %v1822 = vmul.f32 %v429, %v1820
          %1825 = vrot.lane.b32.xlu0 %v1821, 123
          %v1826 = vpop.permute.xlu0 %1825
          %1827 = vrot.lane.b32.xlu0 %v1822, 123
          %v1828 = vpop.permute.xlu0 %1827
          %v1831 = vadd.f32 %v1796, %v1826
          %v1832 = vadd.f32 %v1797, %v1828
          %v1833 = vstv %s1819
          %v1834 = vmul.f32 %v431, %v1833
          %v1835 = vmul.f32 %v432, %v1833
          %1838 = vrot.lane.b32.xlu0 %v1834, 123
          %v1839 = vpop.permute.xlu0 %1838
          %1840 = vrot.lane.b32.xlu0 %v1835, 123
          %v1841 = vpop.permute.xlu0 %1840
          %v1844 = vadd.f32 %v1816, %v1839
          %v1845 = vadd.f32 %v1817, %v1841
          %s1846 = sld [smem:[#allocation10 + $0xc]]
          %s1847 = sld [smem:[#allocation10 + $0x3d]]
          %v1848 = vstv %s1846
          %v1849 = vmul.f32 %v428, %v1848
          %v1850 = vmul.f32 %v429, %v1848
          %v1851 = vmul.f32 %v430, %v1848
          %1855 = vrot.lane.b32.xlu0 %v1849, 123
          %v1856 = vpop.permute.xlu0 %1855
          %1857 = vrot.lane.b32.xlu0 %v1850, 123
          %v1858 = vpop.permute.xlu0 %1857
          %1859 = vrot.lane.b32.xlu0 %v1851, 123
          %v1860 = vpop.permute.xlu0 %1859
          %v1864 = vadd.f32 %v1749, %v1856
          %v1865 = vadd.f32 %v1750, %v1858
          %v1866 = vadd.f32 %v1751, %v1860
          %v1867 = vstv %s1847
          %v1868 = vmul.f32 %v431, %v1867
          %v1869 = vmul.f32 %v432, %v1867
          %v1870 = vmul.f32 %v433, %v1867
          %1874 = vrot.lane.b32.xlu0 %v1868, 123
          %v1875 = vpop.permute.xlu0 %1874
          %1876 = vrot.lane.b32.xlu0 %v1869, 123
          %v1877 = vpop.permute.xlu0 %1876
          %1878 = vrot.lane.b32.xlu0 %v1870, 123
          %v1879 = vpop.permute.xlu0 %1878
          %v1883 = vadd.f32 %v1773, %v1875
          %v1884 = vadd.f32 %v1774, %v1877
          %v1885 = vadd.f32 %v1775, %v1879
          %s1886 = sld [smem:[#allocation10 + $0x13]]
          %s1887 = sld [smem:[#allocation10 + $0x44]]
          %v1888 = vstv %s1886
          %v1889 = vmul.f32 %v428, %v1888
          %v1890 = vmul.f32 %v429, %v1888
          %v1891 = vmul.f32 %v430, %v1888
          %v1895 = vrot.slane %v1889, 2
          %v1896 = vrot.slane %v1890, 2
          %v1897 = vsel %vm471, %v1895, %v1896
          %v1898 = vrot.slane %v1891, 2
          %v1899 = vsel %vm471, %v1896, %v1898
          %1900 = vrot.lane.b32.xlu0 %v1897, 123
          %v1901 = vpop.permute.xlu0 %1900
          %1902 = vrot.lane.b32.xlu0 %v1899, 123
          %v1903 = vpop.permute.xlu0 %1902
          %v1906 = vadd.f32 %v1831, %v1901
          %v1907 = vadd.f32 %v1832, %v1903
          %v1908 = vstv %s1887
          %v1909 = vmul.f32 %v431, %v1908
          %v1910 = vmul.f32 %v432, %v1908
          %v1911 = vmul.f32 %v433, %v1908
          %v1915 = vrot.slane %v1909, 2
          %v1916 = vrot.slane %v1910, 2
          %v1917 = vsel %vm471, %v1915, %v1916
          %v1918 = vrot.slane %v1911, 2
          %v1919 = vsel %vm471, %v1916, %v1918
          %1920 = vrot.lane.b32.xlu0 %v1917, 123
          %v1921 = vpop.permute.xlu0 %1920
          %1922 = vrot.lane.b32.xlu0 %v1919, 123
          %v1923 = vpop.permute.xlu0 %1922
          %v1926 = vadd.f32 %v1844, %v1921
          %v1927 = vadd.f32 %v1845, %v1923
          %s1928 = sld [smem:[#allocation10 + $0x1a]]
          %s1929 = sld [smem:[#allocation10 + $0x4b]]
          %v1930 = vstv %s1928
          %v1931 = vmul.f32 %v428, %v1930
          %v1932 = vmul.f32 %v429, %v1930
          %v1933 = vmul.f32 %v430, %v1930
          %v1937 = vrot.slane %v1931, 2
          %v1938 = vrot.slane %v1932, 2
          %v1939 = vsel %vm471, %v1937, %v1938
          %v1940 = vrot.slane %v1933, 2
          %v1941 = vsel %vm471, %v1938, %v1940
          %1942 = vrot.lane.b32.xlu0 %v1939, 123
          %v1943 = vpop.permute.xlu0 %1942
          %1944 = vrot.lane.b32.xlu0 %v1941, 123
          %v1945 = vpop.permute.xlu0 %1944
          %1946 = vrot.lane.b32.xlu0 %v1940, 123
          %v1947 = vpop.permute.xlu0 %1946
          %v1951 = vadd.f32 %v1864, %v1943
          %v1952 = vadd.f32 %v1865, %v1945
          %v1953 = vadd.f32 %v1866, %v1947
          %v1954 = vstv %s1929
          %v1955 = vmul.f32 %v431, %v1954
          %v1956 = vmul.f32 %v432, %v1954
          %v1957 = vmul.f32 %v433, %v1954
          %v1961 = vrot.slane %v1955, 2
          %v1962 = vrot.slane %v1956, 2
          %v1963 = vsel %vm471, %v1961, %v1962
          %v1964 = vrot.slane %v1957, 2
          %v1965 = vsel %vm471, %v1962, %v1964
          %1966 = vrot.lane.b32.xlu0 %v1963, 123
          %v1967 = vpop.permute.xlu0 %1966
          %1968 = vrot.lane.b32.xlu0 %v1965, 123
          %v1969 = vpop.permute.xlu0 %1968
          %1970 = vrot.lane.b32.xlu0 %v1964, 123
          %v1971 = vpop.permute.xlu0 %1970
          %v1975 = vadd.f32 %v1883, %v1967
          %v1976 = vadd.f32 %v1884, %v1969
          %v1977 = vadd.f32 %v1885, %v1971
          %s1978 = sld [smem:[#allocation10 + $0x21]]
          %s1979 = sld [smem:[#allocation10 + $0x52]]
          %v1980 = vstv %s1978
          %v1981 = vmul.f32 %v428, %v1980
          %v1982 = vmul.f32 %v429, %v1980
          %v1983 = vmul.f32 %v430, %v1980
          %v1987 = vrot.slane %v1981, 4
          %v1988 = vrot.slane %v1982, 4
          %v1989 = vsel %vm199, %v1987, %v1988
          %v1990 = vrot.slane %v1983, 4
          %v1991 = vsel %vm199, %v1988, %v1990
          %1992 = vrot.lane.b32.xlu0 %v1989, 123
          %v1993 = vpop.permute.xlu0 %1992
          %1994 = vrot.lane.b32.xlu0 %v1991, 123
          %v1995 = vpop.permute.xlu0 %1994
          %v1998 = vadd.f32 %v1906, %v1993
          %v1999 = vadd.f32 %v1907, %v1995
          %v2000 = vstv %s1979
          %v2001 = vmul.f32 %v431, %v2000
          %v2002 = vmul.f32 %v432, %v2000
          %v2003 = vmul.f32 %v433, %v2000
          %v2007 = vrot.slane %v2001, 4
          %v2008 = vrot.slane %v2002, 4
          %v2009 = vsel %vm199, %v2007, %v2008
          %v2010 = vrot.slane %v2003, 4
          %v2011 = vsel %vm199, %v2008, %v2010
          %2012 = vrot.lane.b32.xlu0 %v2009, 123
          %v2013 = vpop.permute.xlu0 %2012
          %2014 = vrot.lane.b32.xlu0 %v2011, 123
          %v2015 = vpop.permute.xlu0 %2014
          %v2018 = vadd.f32 %v1926, %v2013
          %v2019 = vadd.f32 %v1927, %v2015
          %s2020 = sld [smem:[#allocation10 + $0x28]]
          %s2021 = sld [smem:[#allocation10 + $0x59]]
          %v2022 = vstv %s2020
          %v2023 = vmul.f32 %v428, %v2022
          %v2024 = vmul.f32 %v429, %v2022
          %v2025 = vmul.f32 %v430, %v2022
          %v2029 = vrot.slane %v2023, 4
          %v2030 = vrot.slane %v2024, 4
          %v2031 = vsel %vm199, %v2029, %v2030
          %v2032 = vrot.slane %v2025, 4
          %v2033 = vsel %vm199, %v2030, %v2032
          %2034 = vrot.lane.b32.xlu0 %v2031, 123
          %v2035 = vpop.permute.xlu0 %2034
          %2036 = vrot.lane.b32.xlu0 %v2033, 123
          %v2037 = vpop.permute.xlu0 %2036
          %2038 = vrot.lane.b32.xlu0 %v2032, 123
          %v2039 = vpop.permute.xlu0 %2038
          %v2043 = vadd.f32 %v1951, %v2035
          %v2044 = vadd.f32 %v1952, %v2037
          %v2045 = vadd.f32 %v1953, %v2039
          %v2046 = vstv %s2021
          %v2047 = vmul.f32 %v431, %v2046
          %v2048 = vmul.f32 %v432, %v2046
          %v2049 = vmul.f32 %v433, %v2046
          %v2053 = vrot.slane %v2047, 4
          %v2054 = vrot.slane %v2048, 4
          %v2055 = vsel %vm199, %v2053, %v2054
          %v2056 = vrot.slane %v2049, 4
          %v2057 = vsel %vm199, %v2054, %v2056
          %2058 = vrot.lane.b32.xlu0 %v2055, 123
          %v2059 = vpop.permute.xlu0 %2058
          %2060 = vrot.lane.b32.xlu0 %v2057, 123
          %v2061 = vpop.permute.xlu0 %2060
          %2062 = vrot.lane.b32.xlu0 %v2056, 123
          %v2063 = vpop.permute.xlu0 %2062
          %v2067 = vadd.f32 %v1975, %v2059
          %v2068 = vadd.f32 %v1976, %v2061
          %v2069 = vadd.f32 %v1977, %v2063
          %s2070 = sld [smem:[#allocation10 + $0x2f]]
          %s2071 = sld [smem:[#allocation10 + $0x60]]
          %v2072 = vstv %s2070
          %v2073 = vmul.f32 %v428, %v2072
          %v2074 = vmul.f32 %v429, %v2072
          %v2075 = vmul.f32 %v430, %v2072
          %v2079 = vrot.slane %v2073, 6
          %v2080 = vrot.slane %v2074, 6
          %v2081 = vsel %vm616, %v2079, %v2080
          %v2082 = vrot.slane %v2075, 6
          %v2083 = vsel %vm616, %v2080, %v2082
          %2084 = vrot.lane.b32.xlu0 %v2081, 123
          %v2085 = vpop.permute.xlu0 %2084
          %2086 = vrot.lane.b32.xlu0 %v2083, 123
          %v2087 = vpop.permute.xlu0 %2086
          %v2090 = vadd.f32 %v1998, %v2085
          %v2091 = vadd.f32 %v1999, %v2087
          %v2092 = vstv %s2071
          %v2093 = vmul.f32 %v431, %v2092
          %v2094 = vmul.f32 %v432, %v2092
          %v2095 = vmul.f32 %v433, %v2092
          %v2099 = vrot.slane %v2093, 6
          %v2100 = vrot.slane %v2094, 6
          %v2101 = vsel %vm616, %v2099, %v2100
          %v2102 = vrot.slane %v2095, 6
          %v2103 = vsel %vm616, %v2100, %v2102
          %2104 = vrot.lane.b32.xlu0 %v2101, 123
          %v2105 = vpop.permute.xlu0 %2104
          %2106 = vrot.lane.b32.xlu0 %v2103, 123
          %v2107 = vpop.permute.xlu0 %2106
          %v2110 = vadd.f32 %v2018, %v2105
          %v2111 = vadd.f32 %v2019, %v2107
          %s2112 = sld [smem:[#allocation10 + $0x6]]
          %s2113 = sld [smem:[#allocation10 + $0x37]]
          %v2114 = vstv %s2112
          %v2115 = vmul.f32 %v428, %v2114
          %v2116 = vmul.f32 %v429, %v2114
          %2119 = vrot.lane.b32.xlu0 %v2115, 122
          %v2120 = vpop.permute.xlu0 %2119
          %2121 = vrot.lane.b32.xlu0 %v2116, 122
          %v2122 = vpop.permute.xlu0 %2121
          %v2125 = vadd.f32 %v2090, %v2120
          %v2126 = vadd.f32 %v2091, %v2122
          %v2127 = vstv %s2113
          %v2128 = vmul.f32 %v431, %v2127
          %v2129 = vmul.f32 %v432, %v2127
          %2132 = vrot.lane.b32.xlu0 %v2128, 122
          %v2133 = vpop.permute.xlu0 %2132
          %2134 = vrot.lane.b32.xlu0 %v2129, 122
          %v2135 = vpop.permute.xlu0 %2134
          %v2138 = vadd.f32 %v2110, %v2133
          %v2139 = vadd.f32 %v2111, %v2135
          %s2140 = sld [smem:[#allocation10 + $0xd]]
          %s2141 = sld [smem:[#allocation10 + $0x3e]]
          %v2142 = vstv %s2140
          %v2143 = vmul.f32 %v428, %v2142
          %v2144 = vmul.f32 %v429, %v2142
          %v2145 = vmul.f32 %v430, %v2142
          %2149 = vrot.lane.b32.xlu0 %v2143, 122
          %v2150 = vpop.permute.xlu0 %2149
          %2151 = vrot.lane.b32.xlu0 %v2144, 122
          %v2152 = vpop.permute.xlu0 %2151
          %2153 = vrot.lane.b32.xlu0 %v2145, 122
          %v2154 = vpop.permute.xlu0 %2153
          %v2158 = vadd.f32 %v2043, %v2150
          %v2159 = vadd.f32 %v2044, %v2152
          %v2160 = vadd.f32 %v2045, %v2154
          %v2161 = vstv %s2141
          %v2162 = vmul.f32 %v431, %v2161
          %v2163 = vmul.f32 %v432, %v2161
          %v2164 = vmul.f32 %v433, %v2161
          %2168 = vrot.lane.b32.xlu0 %v2162, 122
          %v2169 = vpop.permute.xlu0 %2168
          %2170 = vrot.lane.b32.xlu0 %v2163, 122
          %v2171 = vpop.permute.xlu0 %2170
          %2172 = vrot.lane.b32.xlu0 %v2164, 122
          %v2173 = vpop.permute.xlu0 %2172
          %v2177 = vadd.f32 %v2067, %v2169
          %v2178 = vadd.f32 %v2068, %v2171
          %v2179 = vadd.f32 %v2069, %v2173
          %s2180 = sld [smem:[#allocation10 + $0x14]]
          %s2181 = sld [smem:[#allocation10 + $0x45]]
          %v2182 = vstv %s2180
          %v2183 = vmul.f32 %v428, %v2182
          %v2184 = vmul.f32 %v429, %v2182
          %v2185 = vmul.f32 %v430, %v2182
          %v2189 = vrot.slane %v2183, 2
          %v2190 = vrot.slane %v2184, 2
          %v2191 = vsel %vm471, %v2189, %v2190
          %v2192 = vrot.slane %v2185, 2
          %v2193 = vsel %vm471, %v2190, %v2192
          %2194 = vrot.lane.b32.xlu0 %v2191, 122
          %v2195 = vpop.permute.xlu0 %2194
          %2196 = vrot.lane.b32.xlu0 %v2193, 122
          %v2197 = vpop.permute.xlu0 %2196
          %v2200 = vadd.f32 %v2125, %v2195
          %v2201 = vadd.f32 %v2126, %v2197
          %v2202 = vstv %s2181
          %v2203 = vmul.f32 %v431, %v2202
          %v2204 = vmul.f32 %v432, %v2202
          %v2205 = vmul.f32 %v433, %v2202
          %v2209 = vrot.slane %v2203, 2
          %v2210 = vrot.slane %v2204, 2
          %v2211 = vsel %vm471, %v2209, %v2210
          %v2212 = vrot.slane %v2205, 2
          %v2213 = vsel %vm471, %v2210, %v2212
          %2214 = vrot.lane.b32.xlu0 %v2211, 122
          %v2215 = vpop.permute.xlu0 %2214
          %2216 = vrot.lane.b32.xlu0 %v2213, 122
          %v2217 = vpop.permute.xlu0 %2216
          %v2220 = vadd.f32 %v2138, %v2215
          %v2221 = vadd.f32 %v2139, %v2217
          %s2222 = sld [smem:[#allocation10 + $0x1b]]
          %s2223 = sld [smem:[#allocation10 + $0x4c]]
          %v2224 = vstv %s2222
          %v2225 = vmul.f32 %v428, %v2224
          %v2226 = vmul.f32 %v429, %v2224
          %v2227 = vmul.f32 %v430, %v2224
          %v2231 = vrot.slane %v2225, 2
          %v2232 = vrot.slane %v2226, 2
          %v2233 = vsel %vm471, %v2231, %v2232
          %v2234 = vrot.slane %v2227, 2
          %v2235 = vsel %vm471, %v2232, %v2234
          %2236 = vrot.lane.b32.xlu0 %v2233, 122
          %v2237 = vpop.permute.xlu0 %2236
          %2238 = vrot.lane.b32.xlu0 %v2235, 122
          %v2239 = vpop.permute.xlu0 %2238
          %2240 = vrot.lane.b32.xlu0 %v2234, 122
          %v2241 = vpop.permute.xlu0 %2240
          %v2245 = vadd.f32 %v2158, %v2237
          %v2246 = vadd.f32 %v2159, %v2239
          %v2247 = vadd.f32 %v2160, %v2241
          %v2248 = vstv %s2223
          %v2249 = vmul.f32 %v431, %v2248
          %v2250 = vmul.f32 %v432, %v2248
          %v2251 = vmul.f32 %v433, %v2248
          %v2255 = vrot.slane %v2249, 2
          %v2256 = vrot.slane %v2250, 2
          %v2257 = vsel %vm471, %v2255, %v2256
          %v2258 = vrot.slane %v2251, 2
          %v2259 = vsel %vm471, %v2256, %v2258
          %2260 = vrot.lane.b32.xlu0 %v2257, 122
          %v2261 = vpop.permute.xlu0 %2260
          %2262 = vrot.lane.b32.xlu0 %v2259, 122
          %v2263 = vpop.permute.xlu0 %2262
          %2264 = vrot.lane.b32.xlu0 %v2258, 122
          %v2265 = vpop.permute.xlu0 %2264
          %v2269 = vadd.f32 %v2177, %v2261
          %v2270 = vadd.f32 %v2178, %v2263
          %v2271 = vadd.f32 %v2179, %v2265
          %s2272 = sld [smem:[#allocation10 + $0x22]]
          %s2273 = sld [smem:[#allocation10 + $0x53]]
          %v2274 = vstv %s2272
          %v2275 = vmul.f32 %v428, %v2274
          %v2276 = vmul.f32 %v429, %v2274
          %v2277 = vmul.f32 %v430, %v2274
          %v2281 = vrot.slane %v2275, 4
          %v2282 = vrot.slane %v2276, 4
          %v2283 = vsel %vm199, %v2281, %v2282
          %v2284 = vrot.slane %v2277, 4
          %v2285 = vsel %vm199, %v2282, %v2284
          %2286 = vrot.lane.b32.xlu0 %v2283, 122
          %v2287 = vpop.permute.xlu0 %2286
          %2288 = vrot.lane.b32.xlu0 %v2285, 122
          %v2289 = vpop.permute.xlu0 %2288
          %v2292 = vadd.f32 %v2200, %v2287
          %v2293 = vadd.f32 %v2201, %v2289
          %v2294 = vstv %s2273
          %v2295 = vmul.f32 %v431, %v2294
          %v2296 = vmul.f32 %v432, %v2294
          %v2297 = vmul.f32 %v433, %v2294
          %v2301 = vrot.slane %v2295, 4
          %v2302 = vrot.slane %v2296, 4
          %v2303 = vsel %vm199, %v2301, %v2302
          %v2304 = vrot.slane %v2297, 4
          %v2305 = vsel %vm199, %v2302, %v2304
          %2306 = vrot.lane.b32.xlu0 %v2303, 122
          %v2307 = vpop.permute.xlu0 %2306
          %2308 = vrot.lane.b32.xlu0 %v2305, 122
          %v2309 = vpop.permute.xlu0 %2308
          %v2312 = vadd.f32 %v2220, %v2307
          %v2313 = vadd.f32 %v2221, %v2309
          %s2314 = sld [smem:[#allocation10 + $0x29]]
          %s2315 = sld [smem:[#allocation10 + $0x5a]]
          %v2316 = vstv %s2314
          %v2317 = vmul.f32 %v428, %v2316
          %v2318 = vmul.f32 %v429, %v2316
          %v2319 = vmul.f32 %v430, %v2316
          %v2323 = vrot.slane %v2317, 4
          %v2324 = vrot.slane %v2318, 4
          %v2325 = vsel %vm199, %v2323, %v2324
          %v2326 = vrot.slane %v2319, 4
          %v2327 = vsel %vm199, %v2324, %v2326
          %2328 = vrot.lane.b32.xlu0 %v2325, 122
          %v2329 = vpop.permute.xlu0 %2328
          %2330 = vrot.lane.b32.xlu0 %v2327, 122
          %v2331 = vpop.permute.xlu0 %2330
          %2332 = vrot.lane.b32.xlu0 %v2326, 122
          %v2333 = vpop.permute.xlu0 %2332
          %v2337 = vadd.f32 %v2245, %v2329
          %v2338 = vadd.f32 %v2246, %v2331
          %v2339 = vadd.f32 %v2247, %v2333
          %v2340 = vstv %s2315
          %v2341 = vmul.f32 %v431, %v2340
          %v2342 = vmul.f32 %v432, %v2340
          %v2343 = vmul.f32 %v433, %v2340
          %v2347 = vrot.slane %v2341, 4
          %v2348 = vrot.slane %v2342, 4
          %v2349 = vsel %vm199, %v2347, %v2348
          %v2350 = vrot.slane %v2343, 4
          %v2351 = vsel %vm199, %v2348, %v2350
          %2352 = vrot.lane.b32.xlu0 %v2349, 122
          %v2353 = vpop.permute.xlu0 %2352
          %2354 = vrot.lane.b32.xlu0 %v2351, 122
          %v2355 = vpop.permute.xlu0 %2354
          %2356 = vrot.lane.b32.xlu0 %v2350, 122
          %v2357 = vpop.permute.xlu0 %2356
          %v2361 = vadd.f32 %v2269, %v2353
          %v2362 = vadd.f32 %v2270, %v2355
          %v2363 = vadd.f32 %v2271, %v2357
          %s2364 = sld [smem:[#allocation10 + $0x30]]
          %s2365 = sld [smem:[#allocation10 + $0x61]]
          %v2366 = vstv %s2364
          %v2367 = vmul.f32 %v428, %v2366
          %v2368 = vmul.f32 %v429, %v2366
          %v2369 = vmul.f32 %v430, %v2366
          %v2373 = vrot.slane %v2367, 6
          %v2374 = vrot.slane %v2368, 6
          %v2375 = vsel %vm616, %v2373, %v2374
          %v2376 = vrot.slane %v2369, 6
          %v2377 = vsel %vm616, %v2374, %v2376
          %2378 = vrot.lane.b32.xlu0 %v2375, 122
          %v2379 = vpop.permute.xlu0 %2378
          %2380 = vrot.lane.b32.xlu0 %v2377, 122
          %v2381 = vpop.permute.xlu0 %2380
          %v2384 = vadd.f32 %v2292, %v2379
          %v2385 = vadd.f32 %v2293, %v2381
          %v2386 = vstv %s2365
          %v2387 = vmul.f32 %v431, %v2386
          %v2388 = vmul.f32 %v432, %v2386
          %v2389 = vmul.f32 %v433, %v2386
          %v2393 = vrot.slane %v2387, 6
          %v2394 = vrot.slane %v2388, 6
          %v2395 = vsel %vm616, %v2393, %v2394
          %v2396 = vrot.slane %v2389, 6
          %v2397 = vsel %vm616, %v2394, %v2396
          %2398 = vrot.lane.b32.xlu0 %v2395, 122
          %v2399 = vpop.permute.xlu0 %2398
          %2400 = vrot.lane.b32.xlu0 %v2397, 122
          %v2401 = vpop.permute.xlu0 %2400
          %v2404 = vadd.f32 %v2312, %v2399
          %v2405 = vadd.f32 %v2313, %v2401
          %v2406 = vadd.f32 %v2384, %v2404
          %v2407 = vadd.f32 %v2385, %v2405
          %v2408 = vadd.f32 %v2337, %v2361
          %v2409 = vadd.f32 %v2338, %v2362
          %v2410 = vadd.f32 %v2339, %v2363
          %vm2414 = vcmask 1046528
          %v2415 = vrot.slane %v2408, 1
          %v2416 = vrot.slane %v2409, 1
          %v2417 = vsel %vm2414, %v2415, %v2416
          %v2418 = vrot.slane %v2410, 1
          %v2419 = vsel %vm2414, %v2416, %v2418
          %v2422 = vadd.f32 %v2406, %v2417
          %v2423 = vadd.f32 %v2407, %v2419
          %v2424 = vxor.u32 %v2422, 2147483648
          %v2425 = vxor.u32 %v2423, 2147483648
          %v2426 = vmul.f32 %v2424, 1.442695
          %v2427 = vpow.pop %v2426
          %v2428 = vmul.f32 %v2425, 1.442695
          %v2429 = vpow.pop %v2428
          %v2430 = vadd.f32 %v2427, 1.0
          %v2431 = vadd.f32 %v2429, 1.0
          %v2432 = vrcp.pop %v2430
          %v2433 = vmul.f32 %v2430, %v2432
          %v2434 = vsub.f32 1.0, %v2433
          %v2435 = vmul.f32 %v2432, %v2434
          %v2436 = vadd.f32 %v2432, %v2435
          %vm2437 = vweird.f32 %v2430
          %vm2438 = vweird.f32 %v2432
          %vm2439 = vmor %vm2437, %vm2438
          %v2440 = vsel %vm2439, %v2432, %v2436
          %v2441 = vand.u32 2147483647, %v2430
          %vm2442 = vcmp.eq.f32.partialorder %v2441, 8.507059e+37
          %v2443 = vand.u32 %v2430, 2147483648
          %v2444 = vor.u32 1.1754944e-38, %v2443
          %v2445 = vsel %vm2442, %v2444, %v2440
          %v2446 = vmul.f32 1.0, %v2445
          %v2447 = vrcp.pop %v2431
          %v2448 = vmul.f32 %v2431, %v2447
          %v2449 = vsub.f32 1.0, %v2448
          %v2450 = vmul.f32 %v2447, %v2449
          %v2451 = vadd.f32 %v2447, %v2450
          %vm2452 = vweird.f32 %v2431
          %vm2453 = vweird.f32 %v2447
          %vm2454 = vmor %vm2452, %vm2453
          %v2455 = vsel %vm2454, %v2447, %v2451
          %v2456 = vand.u32 2147483647, %v2431
          %vm2457 = vcmp.eq.f32.partialorder %v2456, 8.507059e+37
          %v2458 = vand.u32 %v2431, 2147483648
          %v2459 = vor.u32 1.1754944e-38, %v2458
          %v2460 = vsel %vm2457, %v2459, %v2455
          %v2461 = vmul.f32 1.0, %v2460
          %vm2462 = vcmask 130048
          %2463 = vst.msk [vmem:[%s191] sm:$0xff] %vm2462, %v2446
          %2464 = vst.msk [vmem:[%s191 + $0x8] sm:$0xff] %vm2462, %v2461
        $region48: #{tpu_custom_call.1} parent=27 // pred_fallthru
          _
        %s2465 = sand.u32 %s89, 1
        %s2466 = scalar_lea.sflag [#allocation8], %s2465
        %s2467 = sand.u32 %s89, 1
        %s2468 = smul.addr %s2467, 16
        %s2469 = scalar_lea.vmem [#allocation11], %s2468
        // Predicated region
        $region49: #{tpu_custom_call.1} parent=27 // pred_check
          %p2470 = pneg %p99
        $region50: #{tpu_custom_call.1} parent=27 // pred_check_branch
          %2472 = sbr.rel (%p2470) target = $region52
        $region51: #{tpu_custom_call.1} parent=27 // pred_region
          %2474 = vsyncadd %s2466, 0
          %s2475 = smul.addr %s24, 2
          %s2476 = smul.addr %s2475, 8
          %s2477 = scalar_lea.hbm %s2, %s2476
          %s2478 = sshll.u32 %s2469, 4
          %s2479 = int_to_ptr.vmem [resolvable:$true] %s2478
          %s2480 = sshll.u32 %s2477, 4
          %s2481 = int_to_ptr.hbm [resolvable:$true] %s2480
          %2486 = dma.vmem_to_hbm [thread:$0]  %s2479, 256, %s2481, %s2466, 128, 128, 8
        $region52: #{tpu_custom_call.1} parent=27 // pred_fallthru
          _
      $region28: #{tpu_custom_call.1} parent=5 // pred_fallthru
        _
      %p2487 = scmp.le.s32.totalorder 2, %s15
      // Predicated region
      $region53: #{tpu_custom_call.1} parent=5 // pred_check
        %p2488 = pneg %p2487
      $region54: #{tpu_custom_call.1} parent=5 // pred_check_branch
        %2490 = sbr.rel (%p2488) target = $region56
      $region55: #{tpu_custom_call.1} parent=5 // pred_region
        %s2491 = ssub.s32 %s15, 2
        // Predicated region
        $region57: #{tpu_custom_call.1} parent=55 // pred_check
          %p2492 = pneg %p105
        $region58: #{tpu_custom_call.1} parent=55 // pred_check_branch
          %2494 = sbr.rel (%p2492) target = $region60
        $region59: #{tpu_custom_call.1} parent=55 // pred_region
          %s2495 = sand.u32 %s90, 1
          %s2496 = scalar_lea.sflag [#allocation8], %s2495
          %s2497 = sand.u32 %s90, 1
          %s2498 = smul.addr %s2497, 16
          %s2499 = scalar_lea.vmem [#allocation11], %s2498
          %2501 = dma.done %s2496, 256
        $region60: #{tpu_custom_call.1} parent=55 // pred_fallthru
          _
      $region56: #{tpu_custom_call.1} parent=5 // pred_fallthru
        _
    $region6: #{tpu_custom_call.1} parent=1 // loop_footer
      %s19 = sadd.s32 1, %s15
    $region7: #{tpu_custom_call.1} parent=1 // loop_footer_branch
      %14 = sbr.rel target = $region3
    $region8: #{tpu_custom_call.1} parent=1 // loop_exit
      _
    %2502 = vsyncpa [#allocation7], 1
    %s2503 = scalar_lea.sflag [#allocation7], 1
    %2504 = vsyncpa %s2503, 1
    %2505 = vsyncpa [#allocation8], 1
    %s2506 = scalar_lea.sflag [#allocation8], 1
    %2507 = vsyncpa %s2506, 1
    %2508 = vsyncpa [#allocation9], 1
    %s2509 = scalar_lea.sflag [#allocation9], 1
    %2510 = vsyncpa %s2509, 1

</llo_original>
